<compile_context>
chip_gen: v6e
topology: v6e:2x2x1
jax: 0.10.0
libtpu: 0.0.40
codegen_flags: <defaults>
</compile_context>

<pallas_src>
import functools

import numpy as np
import jax
import jax.numpy as jnp
from jax.experimental import pallas as pl
from jax.experimental.pallas import tpu as pltpu

_EPS = 1e-5
# ConvTranspose2d(k=4, s=2, p=1):  oh = 2*ih - 1 + kh.
# For an output row of parity r, the contributing (row-offset dh, kernel-row kh):
_TAPS = {0: ((0, 1), (-1, 3)), 1: ((0, 2), (1, 0))}


# ------------------------- host-side weight packing ------------------------- #

def _banded_convt_mats(w, w_in, cout_major=False):
    """ConvTranspose2d(k=4,s=2,p=1) weight (Cin,Cout,4,4) -> two block-banded
    matrices (one per output-row parity), each of shape (2*w_in*Cin, w_out*Cout).

    Row index    = tap*(w_in*Cin) + iw*Cin + ci     (tap indexes _TAPS[parity])
    Column index = ow*Cout + co   (or co*w_out + ow when cout_major=True).
    The width taps / padding are folded into the band structure; the +-1 row
    shifts are supplied by the kernel from the zero-padded VMEM activation.
    """
    w = np.asarray(w, np.float32)
    cin, cout = w.shape[0], w.shape[1]
    w_out = 2 * w_in
    mats = []
    for rh in (0, 1):
        m = np.zeros((2 * w_in * cin, w_out * cout), np.float32)
        for t, (_, kh) in enumerate(_TAPS[rh]):
            for ow in range(w_out):
                qw, rw = divmod(ow, 2)
                for dw, kw in _TAPS[rw]:
                    iw = qw + dw
                    if 0 <= iw < w_in:
                        rows = slice(t * w_in * cin + iw * cin,
                                     t * w_in * cin + (iw + 1) * cin)
                        cols = (np.arange(cout) * w_out + ow) if cout_major \
                            else (ow * cout + np.arange(cout))
                        m[rows, cols] += w[:, :, kh, kw]
        mats.append(m)
    return mats


def pack_params(params):
    """Pre-pack PyTorch-layout parameters into the kernel's matrices (done once)."""
    (lw1, lb1), (lw2, lb2), (lw3, lb3) = params["linear"]
    w1, b1, g1, be1 = params["block1"]      # ConvT(nz -> 8f, 4, 1, 0) + BN + ReLU
    w2, b2, g2, be2 = params["block2"]      # ConvT(8f -> 4f, 4, 2, 1) + BN + ReLU
    w3, b3 = params["block3"]               # ConvT(4f -> 2f, 4, 2, 1) + ReLU
    w4, b4 = params["block4"]               # ConvT(2f -> nc, 4, 2, 1)

    bf = lambda a: jnp.asarray(a, jnp.bfloat16)
    f32row = lambda a: jnp.asarray(a, jnp.float32).reshape(1, -1)

    # block1: 1x1 input, stride 1, pad 0 -> plain GEMM; columns ordered (h, w, c).
    w1 = np.asarray(w1, np.float32)
    c1 = w1.shape[1]
    w1m = np.transpose(w1, (0, 2, 3, 1)).reshape(w1.shape[0], 16 * c1)
    b1m = np.tile(np.asarray(b1, np.float32), 16)

    w2e, w2o = _banded_convt_mats(w2, w_in=4)
    b2m = np.tile(np.asarray(b2, np.float32), 8)
    w3e, w3o = _banded_convt_mats(w3, w_in=8)
    b3m = np.tile(np.asarray(b3, np.float32), 16)

    # block4: zero-pad Cout to a multiple of 4 so output lanes = nc_pad*32 is a
    # multiple of 128 (lane-dense stores + full MXU lane tile); channel-major
    # lanes -> kernel output is (n, oh, (c, ow)); wrapper strips the pad channel.
    w4 = np.asarray(w4, np.float32)
    b4 = np.asarray(b4, np.float32)
    nc = w4.shape[1]
    nc_pad = max(4, -(-nc // 4) * 4)
    w4p = np.zeros((w4.shape[0], nc_pad, 4, 4), np.float32)
    w4p[:, :nc] = w4
    b4p = np.zeros((nc_pad,), np.float32)
    b4p[:nc] = b4
    w4e, w4o = _banded_convt_mats(w4p, w_in=16, cout_major=True)
    b4m = np.repeat(b4p, 32)

    return (
        bf(lw1), f32row(lb1), bf(lw2), f32row(lb2), bf(lw3), f32row(lb3),
        bf(w1m), f32row(b1m), f32row(g1), f32row(be1),
        bf(w2e), bf(w2o), f32row(b2m), f32row(g2), f32row(be2),
        bf(w3e), bf(w3o), f32row(b3m),
        bf(w4e), bf(w4o), f32row(b4m),
    )


# --------------------------------- kernel ---------------------------------- #

def _tile_lanes(x, k):
    # (1, c) -> (1, k*c) lane tiling (group-major, channel-minor).
    return jnp.concatenate([x] * k, axis=-1)


def _fold_groups(s, groups, c):
    # (1, groups*c) lanes (group-major, channel-minor) -> per-channel (1, c) sum.
    out = s[:, :c]
    for g_i in range(1, groups):
        out = out + s[:, g_i * c:(g_i + 1) * c]
    return out


def _generator_kernel(z_ref, lw1, lb1, lw2, lb2, lw3, lb3,
                      w1m, b1m, g1, be1,
                      w2e, w2o, b2m, g2, be2,
                      w3e, w3o, b3m,
                      w4e, w4o, b4m,
                      o_ref, a1_ref, a2_ref, a3_ref, *, n):
    bf16, f32 = jnp.bfloat16, jnp.float32

    def mm(x, w_ref):
        return jnp.dot(x.astype(bf16), w_ref[...], preferred_element_type=f32)

    # ------------------- linear stack: 3 chained Linear layers -------------------
    h = z_ref[...]
    h = mm(h, lw1) + lb1[...]
    h = mm(h, lw2) + lb2[...]
    h = mm(h, lw3) + lb3[...]

    # ------- block1: ConvT(nz->8f, 4, 1, 0) on 1x1 -> 4x4, + BN + ReLU ----------
    c1 = g1.shape[-1]
    y = mm(h, w1m) + b1m[...]                       # (n, 16*c1), lanes (h, w, c)
    cnt = float(n * 16)                             # N * H_out * W_out
    mean = _fold_groups(jnp.sum(y, axis=0, keepdims=True), 16, c1) / cnt
    yc = y - _tile_lanes(mean, 16)                  # two-pass BN: center first
    var = _fold_groups(jnp.sum(yc * yc, axis=0, keepdims=True), 16, c1) / cnt
    scale = g1[...] * jax.lax.rsqrt(var + _EPS)
    y = jnp.maximum(yc * _tile_lanes(scale, 16) + _tile_lanes(be1[...], 16), 0.0)

    lanes1 = 4 * c1
    zrow1 = jnp.zeros((n, 1, lanes1), f32)
    a1_ref[:, 0:1, :] = zrow1                       # zero only the border rows
    a1_ref[:, 5:6, :] = zrow1
    a1_ref[:, 1:5, :] = y.reshape(n, 4, lanes1)     # one dense block store

    # ----------- generic stride-2 ConvT block (row-parity decomposition) --------
    def convt_block(src, dst, h_in, lanes_in, we_ref, wo_ref, b_ref,
                    gamma, beta, c_out, relu, dst_is_padded):
        w_out = 2 * h_in                            # square activations
        lanes_out = b_ref.shape[-1]
        bias_v = b_ref[...]
        src_v = src[...]                            # (n, h_in+2, lanes_in)
        wmats = (we_ref[...], wo_ref[...])

        # One batched GEMM per output-row parity: M = n*h_in, K = 2*lanes_in.
        yps = []
        for rh in (0, 1):
            d0, d1 = _TAPS[rh][0][0], _TAPS[rh][1][0]
            lhs = jnp.concatenate(
                [src_v[:, 1 + d0:1 + d0 + h_in, :],
                 src_v[:, 1 + d1:1 + d1 + h_in, :]],
                axis=-1).reshape(n * h_in, 2 * lanes_in)
            yps.append(jnp.dot(lhs.astype(bf16), wmats[rh],
                               preferred_element_type=f32) + bias_v)

        if gamma is not None:                       # training-mode BatchNorm2d
            cnt_l = float(n * 2 * h_in * w_out)     # = N * H_out * W_out
            s_l = (jnp.sum(yps[0], axis=0, keepdims=True)
                   + jnp.sum(yps[1], axis=0, keepdims=True))
            mean_l = _fold_groups(s_l, w_out, c_out) / cnt_l
            mean_t = _tile_lanes(mean_l, w_out)
            yps = [p - mean_t for p in yps]         # two-pass variance
            ss_l = (jnp.sum(yps[0] * yps[0], axis=0, keepdims=True)
                    + jnp.sum(yps[1] * yps[1], axis=0, keepdims=True))
            var_l = _fold_groups(ss_l, w_out, c_out) / cnt_l
            scale_t = _tile_lanes(gamma[...] * jax.lax.rsqrt(var_l + _EPS), w_out)
            shift_t = _tile_lanes(beta[...], w_out)
            yps = [p * scale_t + shift_t for p in yps]

        if relu:
            yps = [jnp.maximum(p, 0.0) for p in yps]

        # Interleave the two parities along the output-row axis with one relayout:
        # lane-concat -> (n*h_in, 2*lanes_out), reshape -> (n, 2*h_in, lanes_out);
        # row 2q holds parity 0, row 2q+1 parity 1.
        inter = jnp.concatenate(yps, axis=-1).reshape(n, 2 * h_in, lanes_out)

        off = 1 if dst_is_padded else 0
        if dst_is_padded:
            zrow = jnp.zeros((n, 1, lanes_out), f32)
            dst[:, 0:1, :] = zrow                   # zero only the border rows
            dst[:, 2 * h_in + 1:2 * h_in + 2, :] = zrow
        dst[:, off:off + 2 * h_in, :] = inter       # one dense block store

    c2 = g2.shape[-1]
    c3 = b3m.shape[-1] // 16

    # block2: ConvT(8f->4f, 4, 2, 1) 4x4 -> 8x8, + BN + ReLU
    convt_block(a1_ref, a2_ref, 4, 4 * c1, w2e, w2o, b2m, g2, be2, c2, True, True)
    # block3: ConvT(4f->2f, 4, 2, 1) 8x8 -> 16x16, + ReLU
    convt_block(a2_ref, a3_ref, 8, 8 * c2, w3e, w3o, b3m, None, None, None, True, True)
    # block4: ConvT(2f->nc_pad, 4, 2, 1) 16x16 -> 32x32, lane-dense (c, ow) lanes
    convt_block(a3_ref, o_ref, 16, 16 * c3, w4e, w4o, b4m, None, None, None, False, False)


# --------------------------------- wrapper --------------------------------- #

def _full_spec(shape):
    nd = len(shape)
    return pl.BlockSpec(shape, lambda i, _nd=nd: (0,) * _nd)


def generator_forward(x, packed, nc):
    """x: (N, nz) float32, like the PyTorch module's `input`. Returns NCHW."""
    n = x.shape[0]
    c1 = packed[8].shape[-1]           # BN1 gamma
    c2 = packed[13].shape[-1]          # BN2 gamma
    c3 = packed[17].shape[-1] // 16    # block3 tiled bias
    c4p = packed[20].shape[-1] // 32   # block4 zero-padded output channels
    args = (x,) + tuple(packed)

    out = pl.pallas_call(
        functools.partial(_generator_kernel, n=n),
        grid=(1,),
        in_specs=[_full_spec(a.shape) for a in args],
        out_specs=_full_spec((n, 32, 32 * c4p)),
        out_shape=jax.ShapeDtypeStruct((n, 32, 32 * c4p), jnp.float32),
        scratch_shapes=[
            pltpu.VMEM((n, 6, 4 * c1), jnp.float32),    # block1 out (4x4), padded H
            pltpu.VMEM((n, 10, 8 * c2), jnp.float32),   # block2 out (8x8), padded H
            pltpu.VMEM((n, 18, 16 * c3), jnp.float32),  # block3 out (16x16), padded H
        ],
        compiler_params=pltpu.CompilerParams(
            dimension_semantics=("arbitrary",),
            vmem_limit_bytes=32 * 1024 * 1024,
        ),
    )(*args)
    # kernel rows are (sample, oh); lanes are (channel-major, ow)  ->  NCHW,
    # dropping the zero pad channel(s).
    return out.reshape(n, 32, c4p, 32).transpose(0, 2, 1, 3)[:, :nc]


# ------------------------------ parameter init ----------------------------- #

def init_params(key, nz=32, f=8, nc=3):
    ks = jax.random.split(key, 8)

    def lin(k, din, dout):
        kw, kb = jax.random.split(k)
        s = 1.0 / (din ** 0.5)
        return (jax.random.uniform(kw, (din, dout), jnp.float32, -s, s),
                jax.random.uniform(kb, (dout,), jnp.float32, -s, s))

    def convt(k, cin, cout, ksz=4):
        kw, kb = jax.random.split(k)
        s = 1.0 / ((cin * ksz * ksz) ** 0.5)
        return (jax.random.uniform(kw, (cin, cout, ksz, ksz), jnp.float32, -s, s),
                jax.random.uniform(kb, (cout,), jnp.float32, -s, s))

    p = {}
    p["linear"] = (lin(ks[0], nz, 128), lin(ks[1], 128, 256), lin(ks[2], 256, nz))
    w, b = convt(ks[3], nz, 8 * f)
    p["block1"] = (w, b, jnp.ones((8 * f,), jnp.float32), jnp.zeros((8 * f,), jnp.float32))
    w, b = convt(ks[4], 8 * f, 4 * f)
    p["block2"] = (w, b, jnp.ones((4 * f,), jnp.float32), jnp.zeros((4 * f,), jnp.float32))
    p["block3"] = convt(ks[5], 4 * f, 2 * f)
    p["block4"] = convt(ks[6], 2 * f, nc)
    return p


# ---------------------------------- main ----------------------------------- #

if __name__ == "__main__":
    NZ, F, NC, N = 32, 8, 3, 4                     # small shapes: nz=32, feat_fact=8
    key = jax.random.PRNGKey(0)
    kx, kp = jax.random.split(key)
    x = jax.random.normal(kx, (N, NZ), jnp.float32)
    params = init_params(kp, nz=NZ, f=F, nc=NC)
    packed = pack_params(params)                   # host-side, once

    fwd = jax.jit(lambda inp: generator_forward(inp, packed, NC))
    out = jax.block_until_ready(fwd(x))

    assert out.shape == (N, NC, 32, 32), out.shape
    assert bool(jnp.all(jnp.isfinite(out)))
    print("KERNEL_OK")
</pallas_src>

<mosaic_0001>
module attributes {stable_mosaic.version = 11 : i64} {
  func.func @_generator_kernel(%arg0: i32, %arg1: memref<4x32xf32, #tpu.memory_space<vmem>>, %arg2: memref<32x128xbf16, #tpu.memory_space<vmem>>, %arg3: memref<1x128xf32, #tpu.memory_space<vmem>>, %arg4: memref<128x256xbf16, #tpu.memory_space<vmem>>, %arg5: memref<1x256xf32, #tpu.memory_space<vmem>>, %arg6: memref<256x32xbf16, #tpu.memory_space<vmem>>, %arg7: memref<1x32xf32, #tpu.memory_space<vmem>>, %arg8: memref<32x1024xbf16, #tpu.memory_space<vmem>>, %arg9: memref<1x1024xf32, #tpu.memory_space<vmem>>, %arg10: memref<1x64xf32, #tpu.memory_space<vmem>>, %arg11: memref<1x64xf32, #tpu.memory_space<vmem>>, %arg12: memref<512x256xbf16, #tpu.memory_space<vmem>>, %arg13: memref<512x256xbf16, #tpu.memory_space<vmem>>, %arg14: memref<1x256xf32, #tpu.memory_space<vmem>>, %arg15: memref<1x32xf32, #tpu.memory_space<vmem>>, %arg16: memref<1x32xf32, #tpu.memory_space<vmem>>, %arg17: memref<512x256xbf16, #tpu.memory_space<vmem>>, %arg18: memref<512x256xbf16, #tpu.memory_space<vmem>>, %arg19: memref<1x256xf32, #tpu.memory_space<vmem>>, %arg20: memref<512x128xbf16, #tpu.memory_space<vmem>>, %arg21: memref<512x128xbf16, #tpu.memory_space<vmem>>, %arg22: memref<1x128xf32, #tpu.memory_space<vmem>>, %arg23: memref<4x32x128xf32, #tpu.memory_space<vmem>>, %arg24: memref<4x6x256xf32, #tpu.memory_space<vmem>>, %arg25: memref<4x10x256xf32, #tpu.memory_space<vmem>>, %arg26: memref<4x18x256xf32, #tpu.memory_space<vmem>>) attributes {dimension_semantics = [#tpu.dimension_semantics<arbitrary>], iteration_bounds = array<i64: 1>, scalar_prefetch = 0 : i64, scratch_operands = 3 : i64, tpu.core_type = #tpu.core_type<tc>, window_params = [{pipeline_mode = #tpu.pipeline_mode<synchronous>, transform_indices = @transform_0, window_bounds = array<i64: 4, 32>}, {pipeline_mode = #tpu.pipeline_mode<synchronous>, transform_indices = @transform_1, window_bounds = array<i64: 32, 128>}, {pipeline_mode = #tpu.pipeline_mode<synchronous>, transform_indices = @transform_2, window_bounds = array<i64: 1, 128>}, {pipeline_mode = #tpu.pipeline_mode<synchronous>, transform_indices = @transform_3, window_bounds = array<i64: 128, 256>}, {pipeline_mode = #tpu.pipeline_mode<synchronous>, transform_indices = @transform_4, window_bounds = array<i64: 1, 256>}, {pipeline_mode = #tpu.pipeline_mode<synchronous>, transform_indices = @transform_5, window_bounds = array<i64: 256, 32>}, {pipeline_mode = #tpu.pipeline_mode<synchronous>, transform_indices = @transform_6, window_bounds = array<i64: 1, 32>}, {pipeline_mode = #tpu.pipeline_mode<synchronous>, transform_indices = @transform_7, window_bounds = array<i64: 32, 1024>}, {pipeline_mode = #tpu.pipeline_mode<synchronous>, transform_indices = @transform_8, window_bounds = array<i64: 1, 1024>}, {pipeline_mode = #tpu.pipeline_mode<synchronous>, transform_indices = @transform_9, window_bounds = array<i64: 1, 64>}, {pipeline_mode = #tpu.pipeline_mode<synchronous>, transform_indices = @transform_10, window_bounds = array<i64: 1, 64>}, {pipeline_mode = #tpu.pipeline_mode<synchronous>, transform_indices = @transform_11, window_bounds = array<i64: 512, 256>}, {pipeline_mode = #tpu.pipeline_mode<synchronous>, transform_indices = @transform_12, window_bounds = array<i64: 512, 256>}, {pipeline_mode = #tpu.pipeline_mode<synchronous>, transform_indices = @transform_13, window_bounds = array<i64: 1, 256>}, {pipeline_mode = #tpu.pipeline_mode<synchronous>, transform_indices = @transform_14, window_bounds = array<i64: 1, 32>}, {pipeline_mode = #tpu.pipeline_mode<synchronous>, transform_indices = @transform_15, window_bounds = array<i64: 1, 32>}, {pipeline_mode = #tpu.pipeline_mode<synchronous>, transform_indices = @transform_16, window_bounds = array<i64: 512, 256>}, {pipeline_mode = #tpu.pipeline_mode<synchronous>, transform_indices = @transform_17, window_bounds = array<i64: 512, 256>}, {pipeline_mode = #tpu.pipeline_mode<synchronous>, transform_indices = @transform_18, window_bounds = array<i64: 1, 256>}, {pipeline_mode = #tpu.pipeline_mode<synchronous>, transform_indices = @transform_19, window_bounds = array<i64: 512, 128>}, {pipeline_mode = #tpu.pipeline_mode<synchronous>, transform_indices = @transform_20, window_bounds = array<i64: 512, 128>}, {pipeline_mode = #tpu.pipeline_mode<synchronous>, transform_indices = @transform_21, window_bounds = array<i64: 1, 128>}, {pipeline_mode = #tpu.pipeline_mode<synchronous>, transform_indices = @transform_22, window_bounds = array<i64: 4, 32, 128>}]} {
    %c0 = arith.constant 0 : index
    %c0_0 = arith.constant 0 : index
    %0 = vector.load %arg1[%c0, %c0_0] : memref<4x32xf32, #tpu.memory_space<vmem>>, vector<4x32xf32>
    %1 = arith.truncf %0 : vector<4x32xf32> to vector<4x32xbf16>
    %c0_1 = arith.constant 0 : index
    %c0_2 = arith.constant 0 : index
    %2 = vector.load %arg2[%c0_1, %c0_2] : memref<32x128xbf16, #tpu.memory_space<vmem>>, vector<32x128xbf16>
    %cst = arith.constant dense<0.000000e+00> : vector<4x128xf32>
    %3 = tpu.matmul %1, %2, %cst {dimension_numbers = #tpu.dot_dimension_numbers<[1], [0], [0], [1], [0, 0, 1, 1], [], []>} : vector<4x32xbf16>, vector<32x128xbf16>, vector<4x128xf32> -> vector<4x128xf32>
    %c0_3 = arith.constant 0 : index
    %c0_4 = arith.constant 0 : index
    %4 = vector.load %arg3[%c0_3, %c0_4] : memref<1x128xf32, #tpu.memory_space<vmem>>, vector<1x128xf32>
    %5 = vector.broadcast %4 : vector<1x128xf32> to vector<4x128xf32>
    %6 = arith.addf %3, %5 : vector<4x128xf32>
    %7 = arith.truncf %6 : vector<4x128xf32> to vector<4x128xbf16>
    %c0_5 = arith.constant 0 : index
    %c0_6 = arith.constant 0 : index
    %8 = vector.load %arg4[%c0_5, %c0_6] : memref<128x256xbf16, #tpu.memory_space<vmem>>, vector<128x256xbf16>
    %cst_7 = arith.constant dense<0.000000e+00> : vector<4x256xf32>
    %9 = tpu.matmul %7, %8, %cst_7 {dimension_numbers = #tpu.dot_dimension_numbers<[1], [0], [0], [1], [0, 0, 1, 1], [], []>} : vector<4x128xbf16>, vector<128x256xbf16>, vector<4x256xf32> -> vector<4x256xf32>
    %c0_8 = arith.constant 0 : index
    %c0_9 = arith.constant 0 : index
    %10 = vector.load %arg5[%c0_8, %c0_9] : memref<1x256xf32, #tpu.memory_space<vmem>>, vector<1x256xf32>
    %11 = vector.broadcast %10 : vector<1x256xf32> to vector<4x256xf32>
    %12 = arith.addf %9, %11 : vector<4x256xf32>
    %13 = arith.truncf %12 : vector<4x256xf32> to vector<4x256xbf16>
    %c0_10 = arith.constant 0 : index
    %c0_11 = arith.constant 0 : index
    %14 = vector.load %arg6[%c0_10, %c0_11] : memref<256x32xbf16, #tpu.memory_space<vmem>>, vector<256x32xbf16>
    %cst_12 = arith.constant dense<0.000000e+00> : vector<4x32xf32>
    %15 = tpu.matmul %13, %14, %cst_12 {dimension_numbers = #tpu.dot_dimension_numbers<[1], [0], [0], [1], [0, 0, 1, 1], [], []>} : vector<4x256xbf16>, vector<256x32xbf16>, vector<4x32xf32> -> vector<4x32xf32>
    %c0_13 = arith.constant 0 : index
    %c0_14 = arith.constant 0 : index
    %16 = vector.load %arg7[%c0_13, %c0_14] : memref<1x32xf32, #tpu.memory_space<vmem>>, vector<1x32xf32>
    %17 = vector.broadcast %16 : vector<1x32xf32> to vector<4x32xf32>
    %18 = arith.addf %15, %17 : vector<4x32xf32>
    %19 = arith.truncf %18 : vector<4x32xf32> to vector<4x32xbf16>
    %c0_15 = arith.constant 0 : index
    %c0_16 = arith.constant 0 : index
    %20 = vector.load %arg8[%c0_15, %c0_16] : memref<32x1024xbf16, #tpu.memory_space<vmem>>, vector<32x1024xbf16>
    %cst_17 = arith.constant dense<0.000000e+00> : vector<4x1024xf32>
    %21 = tpu.matmul %19, %20, %cst_17 {dimension_numbers = #tpu.dot_dimension_numbers<[1], [0], [0], [1], [0, 0, 1, 1], [], []>} : vector<4x32xbf16>, vector<32x1024xbf16>, vector<4x1024xf32> -> vector<4x1024xf32>
    %c0_18 = arith.constant 0 : index
    %c0_19 = arith.constant 0 : index
    %22 = vector.load %arg9[%c0_18, %c0_19] : memref<1x1024xf32, #tpu.memory_space<vmem>>, vector<1x1024xf32>
    %23 = vector.broadcast %22 : vector<1x1024xf32> to vector<4x1024xf32>
    %24 = arith.addf %21, %23 : vector<4x1024xf32>
    %cst_20 = arith.constant dense<0.000000e+00> : vector<1024xf32>
    %25 = vector.multi_reduction <add>, %24, %cst_20 [0] : vector<4x1024xf32> to vector<1024xf32>
    %26 = vector.shape_cast %25 : vector<1024xf32> to vector<1x1024xf32>
    %27 = vector.extract_strided_slice %26 {offsets = [0, 0], sizes = [1, 64], strides = [1, 1]} : vector<1x1024xf32> to vector<1x64xf32>
    %28 = vector.extract_strided_slice %26 {offsets = [0, 64], sizes = [1, 64], strides = [1, 1]} : vector<1x1024xf32> to vector<1x64xf32>
    %29 = arith.addf %27, %28 : vector<1x64xf32>
    %30 = vector.extract_strided_slice %26 {offsets = [0, 128], sizes = [1, 64], strides = [1, 1]} : vector<1x1024xf32> to vector<1x64xf32>
    %31 = arith.addf %29, %30 : vector<1x64xf32>
    %32 = vector.extract_strided_slice %26 {offsets = [0, 192], sizes = [1, 64], strides = [1, 1]} : vector<1x1024xf32> to vector<1x64xf32>
    %33 = arith.addf %31, %32 : vector<1x64xf32>
    %34 = vector.extract_strided_slice %26 {offsets = [0, 256], sizes = [1, 64], strides = [1, 1]} : vector<1x1024xf32> to vector<1x64xf32>
    %35 = arith.addf %33, %34 : vector<1x64xf32>
    %36 = vector.extract_strided_slice %26 {offsets = [0, 320], sizes = [1, 64], strides = [1, 1]} : vector<1x1024xf32> to vector<1x64xf32>
    %37 = arith.addf %35, %36 : vector<1x64xf32>
    %38 = vector.extract_strided_slice %26 {offsets = [0, 384], sizes = [1, 64], strides = [1, 1]} : vector<1x1024xf32> to vector<1x64xf32>
    %39 = arith.addf %37, %38 : vector<1x64xf32>
    %40 = vector.extract_strided_slice %26 {offsets = [0, 448], sizes = [1, 64], strides = [1, 1]} : vector<1x1024xf32> to vector<1x64xf32>
    %41 = arith.addf %39, %40 : vector<1x64xf32>
    %42 = vector.extract_strided_slice %26 {offsets = [0, 512], sizes = [1, 64], strides = [1, 1]} : vector<1x1024xf32> to vector<1x64xf32>
    %43 = arith.addf %41, %42 : vector<1x64xf32>
    %44 = vector.extract_strided_slice %26 {offsets = [0, 576], sizes = [1, 64], strides = [1, 1]} : vector<1x1024xf32> to vector<1x64xf32>
    %45 = arith.addf %43, %44 : vector<1x64xf32>
    %46 = vector.extract_strided_slice %26 {offsets = [0, 640], sizes = [1, 64], strides = [1, 1]} : vector<1x1024xf32> to vector<1x64xf32>
    %47 = arith.addf %45, %46 : vector<1x64xf32>
    %48 = vector.extract_strided_slice %26 {offsets = [0, 704], sizes = [1, 64], strides = [1, 1]} : vector<1x1024xf32> to vector<1x64xf32>
    %49 = arith.addf %47, %48 : vector<1x64xf32>
    %50 = vector.extract_strided_slice %26 {offsets = [0, 768], sizes = [1, 64], strides = [1, 1]} : vector<1x1024xf32> to vector<1x64xf32>
    %51 = arith.addf %49, %50 : vector<1x64xf32>
    %52 = vector.extract_strided_slice %26 {offsets = [0, 832], sizes = [1, 64], strides = [1, 1]} : vector<1x1024xf32> to vector<1x64xf32>
    %53 = arith.addf %51, %52 : vector<1x64xf32>
    %54 = vector.extract_strided_slice %26 {offsets = [0, 896], sizes = [1, 64], strides = [1, 1]} : vector<1x1024xf32> to vector<1x64xf32>
    %55 = arith.addf %53, %54 : vector<1x64xf32>
    %56 = vector.extract_strided_slice %26 {offsets = [0, 960], sizes = [1, 64], strides = [1, 1]} : vector<1x1024xf32> to vector<1x64xf32>
    %57 = arith.addf %55, %56 : vector<1x64xf32>
    %cst_21 = arith.constant 6.400000e+01 : f32
    %58 = vector.broadcast %cst_21 : f32 to vector<1x64xf32>
    %59 = arith.divf %57, %58 : vector<1x64xf32>
    %60 = tpu.concatenate %59, %59, %59, %59, %59, %59, %59, %59, %59, %59, %59, %59, %59, %59, %59, %59 in 1 : vector<1x64xf32>, vector<1x64xf32>, vector<1x64xf32>, vector<1x64xf32>, vector<1x64xf32>, vector<1x64xf32>, vector<1x64xf32>, vector<1x64xf32>, vector<1x64xf32>, vector<1x64xf32>, vector<1x64xf32>, vector<1x64xf32>, vector<1x64xf32>, vector<1x64xf32>, vector<1x64xf32>, vector<1x64xf32> -> vector<1x1024xf32>
    %61 = vector.broadcast %60 : vector<1x1024xf32> to vector<4x1024xf32>
    %62 = arith.subf %24, %61 : vector<4x1024xf32>
    %63 = arith.mulf %62, %62 : vector<4x1024xf32>
    %cst_22 = arith.constant dense<0.000000e+00> : vector<1024xf32>
    %64 = vector.multi_reduction <add>, %63, %cst_22 [0] : vector<4x1024xf32> to vector<1024xf32>
    %65 = vector.shape_cast %64 : vector<1024xf32> to vector<1x1024xf32>
    %66 = vector.extract_strided_slice %65 {offsets = [0, 0], sizes = [1, 64], strides = [1, 1]} : vector<1x1024xf32> to vector<1x64xf32>
    %67 = vector.extract_strided_slice %65 {offsets = [0, 64], sizes = [1, 64], strides = [1, 1]} : vector<1x1024xf32> to vector<1x64xf32>
    %68 = arith.addf %66, %67 : vector<1x64xf32>
    %69 = vector.extract_strided_slice %65 {offsets = [0, 128], sizes = [1, 64], strides = [1, 1]} : vector<1x1024xf32> to vector<1x64xf32>
    %70 = arith.addf %68, %69 : vector<1x64xf32>
    %71 = vector.extract_strided_slice %65 {offsets = [0, 192], sizes = [1, 64], strides = [1, 1]} : vector<1x1024xf32> to vector<1x64xf32>
    %72 = arith.addf %70, %71 : vector<1x64xf32>
    %73 = vector.extract_strided_slice %65 {offsets = [0, 256], sizes = [1, 64], strides = [1, 1]} : vector<1x1024xf32> to vector<1x64xf32>
    %74 = arith.addf %72, %73 : vector<1x64xf32>
    %75 = vector.extract_strided_slice %65 {offsets = [0, 320], sizes = [1, 64], strides = [1, 1]} : vector<1x1024xf32> to vector<1x64xf32>
    %76 = arith.addf %74, %75 : vector<1x64xf32>
    %77 = vector.extract_strided_slice %65 {offsets = [0, 384], sizes = [1, 64], strides = [1, 1]} : vector<1x1024xf32> to vector<1x64xf32>
    %78 = arith.addf %76, %77 : vector<1x64xf32>
    %79 = vector.extract_strided_slice %65 {offsets = [0, 448], sizes = [1, 64], strides = [1, 1]} : vector<1x1024xf32> to vector<1x64xf32>
    %80 = arith.addf %78, %79 : vector<1x64xf32>
    %81 = vector.extract_strided_slice %65 {offsets = [0, 512], sizes = [1, 64], strides = [1, 1]} : vector<1x1024xf32> to vector<1x64xf32>
    %82 = arith.addf %80, %81 : vector<1x64xf32>
    %83 = vector.extract_strided_slice %65 {offsets = [0, 576], sizes = [1, 64], strides = [1, 1]} : vector<1x1024xf32> to vector<1x64xf32>
    %84 = arith.addf %82, %83 : vector<1x64xf32>
    %85 = vector.extract_strided_slice %65 {offsets = [0, 640], sizes = [1, 64], strides = [1, 1]} : vector<1x1024xf32> to vector<1x64xf32>
    %86 = arith.addf %84, %85 : vector<1x64xf32>
    %87 = vector.extract_strided_slice %65 {offsets = [0, 704], sizes = [1, 64], strides = [1, 1]} : vector<1x1024xf32> to vector<1x64xf32>
    %88 = arith.addf %86, %87 : vector<1x64xf32>
    %89 = vector.extract_strided_slice %65 {offsets = [0, 768], sizes = [1, 64], strides = [1, 1]} : vector<1x1024xf32> to vector<1x64xf32>
    %90 = arith.addf %88, %89 : vector<1x64xf32>
    %91 = vector.extract_strided_slice %65 {offsets = [0, 832], sizes = [1, 64], strides = [1, 1]} : vector<1x1024xf32> to vector<1x64xf32>
    %92 = arith.addf %90, %91 : vector<1x64xf32>
    %93 = vector.extract_strided_slice %65 {offsets = [0, 896], sizes = [1, 64], strides = [1, 1]} : vector<1x1024xf32> to vector<1x64xf32>
    %94 = arith.addf %92, %93 : vector<1x64xf32>
    %95 = vector.extract_strided_slice %65 {offsets = [0, 960], sizes = [1, 64], strides = [1, 1]} : vector<1x1024xf32> to vector<1x64xf32>
    %96 = arith.addf %94, %95 : vector<1x64xf32>
    %cst_23 = arith.constant 6.400000e+01 : f32
    %97 = vector.broadcast %cst_23 : f32 to vector<1x64xf32>
    %98 = arith.divf %96, %97 : vector<1x64xf32>
    %c0_24 = arith.constant 0 : index
    %c0_25 = arith.constant 0 : index
    %99 = vector.load %arg10[%c0_24, %c0_25] : memref<1x64xf32, #tpu.memory_space<vmem>>, vector<1x64xf32>
    %cst_26 = arith.constant 9.99999974E-6 : f32
    %100 = vector.broadcast %cst_26 : f32 to vector<1x64xf32>
    %101 = arith.addf %98, %100 : vector<1x64xf32>
    %102 = math.rsqrt %101 : vector<1x64xf32>
    %103 = arith.mulf %99, %102 : vector<1x64xf32>
    %104 = tpu.concatenate %103, %103, %103, %103, %103, %103, %103, %103, %103, %103, %103, %103, %103, %103, %103, %103 in 1 : vector<1x64xf32>, vector<1x64xf32>, vector<1x64xf32>, vector<1x64xf32>, vector<1x64xf32>, vector<1x64xf32>, vector<1x64xf32>, vector<1x64xf32>, vector<1x64xf32>, vector<1x64xf32>, vector<1x64xf32>, vector<1x64xf32>, vector<1x64xf32>, vector<1x64xf32>, vector<1x64xf32>, vector<1x64xf32> -> vector<1x1024xf32>
    %105 = vector.broadcast %104 : vector<1x1024xf32> to vector<4x1024xf32>
    %106 = arith.mulf %62, %105 : vector<4x1024xf32>
    %c0_27 = arith.constant 0 : index
    %c0_28 = arith.constant 0 : index
    %107 = vector.load %arg11[%c0_27, %c0_28] : memref<1x64xf32, #tpu.memory_space<vmem>>, vector<1x64xf32>
    %108 = tpu.concatenate %107, %107, %107, %107, %107, %107, %107, %107, %107, %107, %107, %107, %107, %107, %107, %107 in 1 : vector<1x64xf32>, vector<1x64xf32>, vector<1x64xf32>, vector<1x64xf32>, vector<1x64xf32>, vector<1x64xf32>, vector<1x64xf32>, vector<1x64xf32>, vector<1x64xf32>, vector<1x64xf32>, vector<1x64xf32>, vector<1x64xf32>, vector<1x64xf32>, vector<1x64xf32>, vector<1x64xf32>, vector<1x64xf32> -> vector<1x1024xf32>
    %109 = vector.broadcast %108 : vector<1x1024xf32> to vector<4x1024xf32>
    %110 = arith.addf %106, %109 : vector<4x1024xf32>
    %cst_29 = arith.constant 0.000000e+00 : f32
    %111 = vector.broadcast %cst_29 : f32 to vector<4x1024xf32>
    %112 = arith.maximumf %110, %111 : vector<4x1024xf32>
    %cst_30 = arith.constant 0.000000e+00 : f32
    %113 = vector.broadcast %cst_30 : f32 to vector<4x1x256xf32>
    %c0_31 = arith.constant 0 : index
    %c0_32 = arith.constant 0 : index
    %c0_33 = arith.constant 0 : index
    %114 = vector.load %arg24[%c0_31, %c0_32, %c0_33] : memref<4x6x256xf32, #tpu.memory_space<vmem>>, vector<4x1x256xf32>
    tpu.vector_store %arg24[%c0_31, %c0_32, %c0_33], %113 {strides = array<i32>} : memref<4x6x256xf32, #tpu.memory_space<vmem>>, vector<4x1x256xf32>,
    %c0_34 = arith.constant 0 : index
    %c5 = arith.constant 5 : index
    %c0_35 = arith.constant 0 : index
    %115 = vector.load %arg24[%c0_34, %c5, %c0_35] : memref<4x6x256xf32, #tpu.memory_space<vmem>>, vector<4x1x256xf32>
    tpu.vector_store %arg24[%c0_34, %c5, %c0_35], %113 {strides = array<i32>} : memref<4x6x256xf32, #tpu.memory_space<vmem>>, vector<4x1x256xf32>,
    %116 = vector.shape_cast %112 : vector<4x1024xf32> to vector<4x4x256xf32>
    %c0_36 = arith.constant 0 : index
    %c1 = arith.constant 1 : index
    %c0_37 = arith.constant 0 : index
    %117 = vector.load %arg24[%c0_36, %c1, %c0_37] : memref<4x6x256xf32, #tpu.memory_space<vmem>>, vector<4x4x256xf32>
    tpu.vector_store %arg24[%c0_36, %c1, %c0_37], %116 {strides = array<i32>} : memref<4x6x256xf32, #tpu.memory_space<vmem>>, vector<4x4x256xf32>,
    %c0_38 = arith.constant 0 : index
    %c0_39 = arith.constant 0 : index
    %118 = vector.load %arg14[%c0_38, %c0_39] : memref<1x256xf32, #tpu.memory_space<vmem>>, vector<1x256xf32>
    %c0_40 = arith.constant 0 : index
    %c0_41 = arith.constant 0 : index
    %c0_42 = arith.constant 0 : index
    %119 = vector.load %arg24[%c0_40, %c0_41, %c0_42] : memref<4x6x256xf32, #tpu.memory_space<vmem>>, vector<4x6x256xf32>
    %c0_43 = arith.constant 0 : index
    %c0_44 = arith.constant 0 : index
    %120 = vector.load %arg12[%c0_43, %c0_44] : memref<512x256xbf16, #tpu.memory_space<vmem>>, vector<512x256xbf16>
    %c0_45 = arith.constant 0 : index
    %c0_46 = arith.constant 0 : index
    %121 = vector.load %arg13[%c0_45, %c0_46] : memref<512x256xbf16, #tpu.memory_space<vmem>>, vector<512x256xbf16>
    %122 = vector.extract_strided_slice %119 {offsets = [0, 1, 0], sizes = [4, 4, 256], strides = [1, 1, 1]} : vector<4x6x256xf32> to vector<4x4x256xf32>
    %123 = vector.extract_strided_slice %119 {offsets = [0, 0, 0], sizes = [4, 4, 256], strides = [1, 1, 1]} : vector<4x6x256xf32> to vector<4x4x256xf32>
    %124 = tpu.concatenate %122, %123 in 2 : vector<4x4x256xf32>, vector<4x4x256xf32> -> vector<4x4x512xf32>
    %125 = vector.shape_cast %124 : vector<4x4x512xf32> to vector<16x512xf32>
    %126 = arith.truncf %125 : vector<16x512xf32> to vector<16x512xbf16>
    %cst_47 = arith.constant dense<0.000000e+00> : vector<16x256xf32>
    %127 = tpu.matmul %126, %120, %cst_47 {dimension_numbers = #tpu.dot_dimension_numbers<[1], [0], [0], [1], [0, 0, 1, 1], [], []>} : vector<16x512xbf16>, vector<512x256xbf16>, vector<16x256xf32> -> vector<16x256xf32>
    %128 = vector.broadcast %118 : vector<1x256xf32> to vector<16x256xf32>
    %129 = arith.addf %127, %128 : vector<16x256xf32>
    %130 = vector.extract_strided_slice %119 {offsets = [0, 1, 0], sizes = [4, 4, 256], strides = [1, 1, 1]} : vector<4x6x256xf32> to vector<4x4x256xf32>
    %131 = vector.extract_strided_slice %119 {offsets = [0, 2, 0], sizes = [4, 4, 256], strides = [1, 1, 1]} : vector<4x6x256xf32> to vector<4x4x256xf32>
    %132 = tpu.concatenate %130, %131 in 2 : vector<4x4x256xf32>, vector<4x4x256xf32> -> vector<4x4x512xf32>
    %133 = vector.shape_cast %132 : vector<4x4x512xf32> to vector<16x512xf32>
    %134 = arith.truncf %133 : vector<16x512xf32> to vector<16x512xbf16>
    %cst_48 = arith.constant dense<0.000000e+00> : vector<16x256xf32>
    %135 = tpu.matmul %134, %121, %cst_48 {dimension_numbers = #tpu.dot_dimension_numbers<[1], [0], [0], [1], [0, 0, 1, 1], [], []>} : vector<16x512xbf16>, vector<512x256xbf16>, vector<16x256xf32> -> vector<16x256xf32>
    %136 = vector.broadcast %118 : vector<1x256xf32> to vector<16x256xf32>
    %137 = arith.addf %135, %136 : vector<16x256xf32>
    %cst_49 = arith.constant dense<0.000000e+00> : vector<256xf32>
    %138 = vector.multi_reduction <add>, %129, %cst_49 [0] : vector<16x256xf32> to vector<256xf32>
    %139 = vector.shape_cast %138 : vector<256xf32> to vector<1x256xf32>
    %cst_50 = arith.constant dense<0.000000e+00> : vector<256xf32>
    %140 = vector.multi_reduction <add>, %137, %cst_50 [0] : vector<16x256xf32> to vector<256xf32>
    %141 = vector.shape_cast %140 : vector<256xf32> to vector<1x256xf32>
    %142 = arith.addf %139, %141 : vector<1x256xf32>
    %143 = vector.extract_strided_slice %142 {offsets = [0, 0], sizes = [1, 32], strides = [1, 1]} : vector<1x256xf32> to vector<1x32xf32>
    %144 = vector.extract_strided_slice %142 {offsets = [0, 32], sizes = [1, 32], strides = [1, 1]} : vector<1x256xf32> to vector<1x32xf32>
    %145 = arith.addf %143, %144 : vector<1x32xf32>
    %146 = vector.extract_strided_slice %142 {offsets = [0, 64], sizes = [1, 32], strides = [1, 1]} : vector<1x256xf32> to vector<1x32xf32>
    %147 = arith.addf %145, %146 : vector<1x32xf32>
    %148 = vector.extract_strided_slice %142 {offsets = [0, 96], sizes = [1, 32], strides = [1, 1]} : vector<1x256xf32> to vector<1x32xf32>
    %149 = arith.addf %147, %148 : vector<1x32xf32>
    %150 = vector.extract_strided_slice %142 {offsets = [0, 128], sizes = [1, 32], strides = [1, 1]} : vector<1x256xf32> to vector<1x32xf32>
    %151 = arith.addf %149, %150 : vector<1x32xf32>
    %152 = vector.extract_strided_slice %142 {offsets = [0, 160], sizes = [1, 32], strides = [1, 1]} : vector<1x256xf32> to vector<1x32xf32>
    %153 = arith.addf %151, %152 : vector<1x32xf32>
    %154 = vector.extract_strided_slice %142 {offsets = [0, 192], sizes = [1, 32], strides = [1, 1]} : vector<1x256xf32> to vector<1x32xf32>
    %155 = arith.addf %153, %154 : vector<1x32xf32>
    %156 = vector.extract_strided_slice %142 {offsets = [0, 224], sizes = [1, 32], strides = [1, 1]} : vector<1x256xf32> to vector<1x32xf32>
    %157 = arith.addf %155, %156 : vector<1x32xf32>
    %cst_51 = arith.constant 2.560000e+02 : f32
    %158 = vector.broadcast %cst_51 : f32 to vector<1x32xf32>
    %159 = arith.divf %157, %158 : vector<1x32xf32>
    %160 = tpu.concatenate %159, %159, %159, %159, %159, %159, %159, %159 in 1 : vector<1x32xf32>, vector<1x32xf32>, vector<1x32xf32>, vector<1x32xf32>, vector<1x32xf32>, vector<1x32xf32>, vector<1x32xf32>, vector<1x32xf32> -> vector<1x256xf32>
    %161 = vector.broadcast %160 : vector<1x256xf32> to vector<16x256xf32>
    %162 = arith.subf %129, %161 : vector<16x256xf32>
    %163 = vector.broadcast %160 : vector<1x256xf32> to vector<16x256xf32>
    %164 = arith.subf %137, %163 : vector<16x256xf32>
    %165 = arith.mulf %162, %162 : vector<16x256xf32>
    %cst_52 = arith.constant dense<0.000000e+00> : vector<256xf32>
    %166 = vector.multi_reduction <add>, %165, %cst_52 [0] : vector<16x256xf32> to vector<256xf32>
    %167 = vector.shape_cast %166 : vector<256xf32> to vector<1x256xf32>
    %168 = arith.mulf %164, %164 : vector<16x256xf32>
    %cst_53 = arith.constant dense<0.000000e+00> : vector<256xf32>
    %169 = vector.multi_reduction <add>, %168, %cst_53 [0] : vector<16x256xf32> to vector<256xf32>
    %170 = vector.shape_cast %169 : vector<256xf32> to vector<1x256xf32>
    %171 = arith.addf %167, %170 : vector<1x256xf32>
    %172 = vector.extract_strided_slice %171 {offsets = [0, 0], sizes = [1, 32], strides = [1, 1]} : vector<1x256xf32> to vector<1x32xf32>
    %173 = vector.extract_strided_slice %171 {offsets = [0, 32], sizes = [1, 32], strides = [1, 1]} : vector<1x256xf32> to vector<1x32xf32>
    %174 = arith.addf %172, %173 : vector<1x32xf32>
    %175 = vector.extract_strided_slice %171 {offsets = [0, 64], sizes = [1, 32], strides = [1, 1]} : vector<1x256xf32> to vector<1x32xf32>
    %176 = arith.addf %174, %175 : vector<1x32xf32>
    %177 = vector.extract_strided_slice %171 {offsets = [0, 96], sizes = [1, 32], strides = [1, 1]} : vector<1x256xf32> to vector<1x32xf32>
    %178 = arith.addf %176, %177 : vector<1x32xf32>
    %179 = vector.extract_strided_slice %171 {offsets = [0, 128], sizes = [1, 32], strides = [1, 1]} : vector<1x256xf32> to vector<1x32xf32>
    %180 = arith.addf %178, %179 : vector<1x32xf32>
    %181 = vector.extract_strided_slice %171 {offsets = [0, 160], sizes = [1, 32], strides = [1, 1]} : vector<1x256xf32> to vector<1x32xf32>
    %182 = arith.addf %180, %181 : vector<1x32xf32>
    %183 = vector.extract_strided_slice %171 {offsets = [0, 192], sizes = [1, 32], strides = [1, 1]} : vector<1x256xf32> to vector<1x32xf32>
    %184 = arith.addf %182, %183 : vector<1x32xf32>
    %185 = vector.extract_strided_slice %171 {offsets = [0, 224], sizes = [1, 32], strides = [1, 1]} : vector<1x256xf32> to vector<1x32xf32>
    %186 = arith.addf %184, %185 : vector<1x32xf32>
    %cst_54 = arith.constant 2.560000e+02 : f32
    %187 = vector.broadcast %cst_54 : f32 to vector<1x32xf32>
    %188 = arith.divf %186, %187 : vector<1x32xf32>
    %c0_55 = arith.constant 0 : index
    %c0_56 = arith.constant 0 : index
    %189 = vector.load %arg15[%c0_55, %c0_56] : memref<1x32xf32, #tpu.memory_space<vmem>>, vector<1x32xf32>
    %cst_57 = arith.constant 9.99999974E-6 : f32
    %190 = vector.broadcast %cst_57 : f32 to vector<1x32xf32>
    %191 = arith.addf %188, %190 : vector<1x32xf32>
    %192 = math.rsqrt %191 : vector<1x32xf32>
    %193 = arith.mulf %189, %192 : vector<1x32xf32>
    %194 = tpu.concatenate %193, %193, %193, %193, %193, %193, %193, %193 in 1 : vector<1x32xf32>, vector<1x32xf32>, vector<1x32xf32>, vector<1x32xf32>, vector<1x32xf32>, vector<1x32xf32>, vector<1x32xf32>, vector<1x32xf32> -> vector<1x256xf32>
    %c0_58 = arith.constant 0 : index
    %c0_59 = arith.constant 0 : index
    %195 = vector.load %arg16[%c0_58, %c0_59] : memref<1x32xf32, #tpu.memory_space<vmem>>, vector<1x32xf32>
    %196 = tpu.concatenate %195, %195, %195, %195, %195, %195, %195, %195 in 1 : vector<1x32xf32>, vector<1x32xf32>, vector<1x32xf32>, vector<1x32xf32>, vector<1x32xf32>, vector<1x32xf32>, vector<1x32xf32>, vector<1x32xf32> -> vector<1x256xf32>
    %197 = vector.broadcast %194 : vector<1x256xf32> to vector<16x256xf32>
    %198 = arith.mulf %162, %197 : vector<16x256xf32>
    %199 = vector.broadcast %196 : vector<1x256xf32> to vector<16x256xf32>
    %200 = arith.addf %198, %199 : vector<16x256xf32>
    %201 = vector.broadcast %194 : vector<1x256xf32> to vector<16x256xf32>
    %202 = arith.mulf %164, %201 : vector<16x256xf32>
    %203 = vector.broadcast %196 : vector<1x256xf32> to vector<16x256xf32>
    %204 = arith.addf %202, %203 : vector<16x256xf32>
    %cst_60 = arith.constant 0.000000e+00 : f32
    %205 = vector.broadcast %cst_60 : f32 to vector<16x256xf32>
    %206 = arith.maximumf %200, %205 : vector<16x256xf32>
    %cst_61 = arith.constant 0.000000e+00 : f32
    %207 = vector.broadcast %cst_61 : f32 to vector<16x256xf32>
    %208 = arith.maximumf %204, %207 : vector<16x256xf32>
    %209 = tpu.concatenate %206, %208 in 1 : vector<16x256xf32>, vector<16x256xf32> -> vector<16x512xf32>
    %210 = vector.shape_cast %209 : vector<16x512xf32> to vector<4x8x256xf32>
    %cst_62 = arith.constant 0.000000e+00 : f32
    %211 = vector.broadcast %cst_62 : f32 to vector<4x1x256xf32>
    %c0_63 = arith.constant 0 : index
    %c0_64 = arith.constant 0 : index
    %c0_65 = arith.constant 0 : index
    %212 = vector.load %arg25[%c0_63, %c0_64, %c0_65] : memref<4x10x256xf32, #tpu.memory_space<vmem>>, vector<4x1x256xf32>
    tpu.vector_store %arg25[%c0_63, %c0_64, %c0_65], %211 {strides = array<i32>} : memref<4x10x256xf32, #tpu.memory_space<vmem>>, vector<4x1x256xf32>,
    %c0_66 = arith.constant 0 : index
    %c9 = arith.constant 9 : index
    %c0_67 = arith.constant 0 : index
    %213 = vector.load %arg25[%c0_66, %c9, %c0_67] : memref<4x10x256xf32, #tpu.memory_space<vmem>>, vector<4x1x256xf32>
    tpu.vector_store %arg25[%c0_66, %c9, %c0_67], %211 {strides = array<i32>} : memref<4x10x256xf32, #tpu.memory_space<vmem>>, vector<4x1x256xf32>,
    %c0_68 = arith.constant 0 : index
    %c1_69 = arith.constant 1 : index
    %c0_70 = arith.constant 0 : index
    %214 = vector.load %arg25[%c0_68, %c1_69, %c0_70] : memref<4x10x256xf32, #tpu.memory_space<vmem>>, vector<4x8x256xf32>
    tpu.vector_store %arg25[%c0_68, %c1_69, %c0_70], %210 {strides = array<i32>} : memref<4x10x256xf32, #tpu.memory_space<vmem>>, vector<4x8x256xf32>,
    %c0_71 = arith.constant 0 : index
    %c0_72 = arith.constant 0 : index
    %215 = vector.load %arg19[%c0_71, %c0_72] : memref<1x256xf32, #tpu.memory_space<vmem>>, vector<1x256xf32>
    %c0_73 = arith.constant 0 : index
    %c0_74 = arith.constant 0 : index
    %c0_75 = arith.constant 0 : index
    %216 = vector.load %arg25[%c0_73, %c0_74, %c0_75] : memref<4x10x256xf32, #tpu.memory_space<vmem>>, vector<4x10x256xf32>
    %c0_76 = arith.constant 0 : index
    %c0_77 = arith.constant 0 : index
    %217 = vector.load %arg17[%c0_76, %c0_77] : memref<512x256xbf16, #tpu.memory_space<vmem>>, vector<512x256xbf16>
    %c0_78 = arith.constant 0 : index
    %c0_79 = arith.constant 0 : index
    %218 = vector.load %arg18[%c0_78, %c0_79] : memref<512x256xbf16, #tpu.memory_space<vmem>>, vector<512x256xbf16>
    %219 = vector.extract_strided_slice %216 {offsets = [0, 1, 0], sizes = [4, 8, 256], strides = [1, 1, 1]} : vector<4x10x256xf32> to vector<4x8x256xf32>
    %220 = vector.extract_strided_slice %216 {offsets = [0, 0, 0], sizes = [4, 8, 256], strides = [1, 1, 1]} : vector<4x10x256xf32> to vector<4x8x256xf32>
    %221 = tpu.concatenate %219, %220 in 2 : vector<4x8x256xf32>, vector<4x8x256xf32> -> vector<4x8x512xf32>
    %222 = vector.shape_cast %221 : vector<4x8x512xf32> to vector<32x512xf32>
    %223 = arith.truncf %222 : vector<32x512xf32> to vector<32x512xbf16>
    %cst_80 = arith.constant dense<0.000000e+00> : vector<32x256xf32>
    %224 = tpu.matmul %223, %217, %cst_80 {dimension_numbers = #tpu.dot_dimension_numbers<[1], [0], [0], [1], [0, 0, 1, 1], [], []>} : vector<32x512xbf16>, vector<512x256xbf16>, vector<32x256xf32> -> vector<32x256xf32>
    %225 = vector.broadcast %215 : vector<1x256xf32> to vector<32x256xf32>
    %226 = arith.addf %224, %225 : vector<32x256xf32>
    %227 = vector.extract_strided_slice %216 {offsets = [0, 1, 0], sizes = [4, 8, 256], strides = [1, 1, 1]} : vector<4x10x256xf32> to vector<4x8x256xf32>
    %228 = vector.extract_strided_slice %216 {offsets = [0, 2, 0], sizes = [4, 8, 256], strides = [1, 1, 1]} : vector<4x10x256xf32> to vector<4x8x256xf32>
    %229 = tpu.concatenate %227, %228 in 2 : vector<4x8x256xf32>, vector<4x8x256xf32> -> vector<4x8x512xf32>
    %230 = vector.shape_cast %229 : vector<4x8x512xf32> to vector<32x512xf32>
    %231 = arith.truncf %230 : vector<32x512xf32> to vector<32x512xbf16>
    %cst_81 = arith.constant dense<0.000000e+00> : vector<32x256xf32>
    %232 = tpu.matmul %231, %218, %cst_81 {dimension_numbers = #tpu.dot_dimension_numbers<[1], [0], [0], [1], [0, 0, 1, 1], [], []>} : vector<32x512xbf16>, vector<512x256xbf16>, vector<32x256xf32> -> vector<32x256xf32>
    %233 = vector.broadcast %215 : vector<1x256xf32> to vector<32x256xf32>
    %234 = arith.addf %232, %233 : vector<32x256xf32>
    %cst_82 = arith.constant 0.000000e+00 : f32
    %235 = vector.broadcast %cst_82 : f32 to vector<32x256xf32>
    %236 = arith.maximumf %226, %235 : vector<32x256xf32>
    %cst_83 = arith.constant 0.000000e+00 : f32
    %237 = vector.broadcast %cst_83 : f32 to vector<32x256xf32>
    %238 = arith.maximumf %234, %237 : vector<32x256xf32>
    %239 = tpu.concatenate %236, %238 in 1 : vector<32x256xf32>, vector<32x256xf32> -> vector<32x512xf32>
    %240 = vector.shape_cast %239 : vector<32x512xf32> to vector<4x16x256xf32>
    %cst_84 = arith.constant 0.000000e+00 : f32
    %241 = vector.broadcast %cst_84 : f32 to vector<4x1x256xf32>
    %c0_85 = arith.constant 0 : index
    %c0_86 = arith.constant 0 : index
    %c0_87 = arith.constant 0 : index
    %242 = vector.load %arg26[%c0_85, %c0_86, %c0_87] : memref<4x18x256xf32, #tpu.memory_space<vmem>>, vector<4x1x256xf32>
    tpu.vector_store %arg26[%c0_85, %c0_86, %c0_87], %241 {strides = array<i32>} : memref<4x18x256xf32, #tpu.memory_space<vmem>>, vector<4x1x256xf32>,
    %c0_88 = arith.constant 0 : index
    %c17 = arith.constant 17 : index
    %c0_89 = arith.constant 0 : index
    %243 = vector.load %arg26[%c0_88, %c17, %c0_89] : memref<4x18x256xf32, #tpu.memory_space<vmem>>, vector<4x1x256xf32>
    tpu.vector_store %arg26[%c0_88, %c17, %c0_89], %241 {strides = array<i32>} : memref<4x18x256xf32, #tpu.memory_space<vmem>>, vector<4x1x256xf32>,
    %c0_90 = arith.constant 0 : index
    %c1_91 = arith.constant 1 : index
    %c0_92 = arith.constant 0 : index
    %244 = vector.load %arg26[%c0_90, %c1_91, %c0_92] : memref<4x18x256xf32, #tpu.memory_space<vmem>>, vector<4x16x256xf32>
    tpu.vector_store %arg26[%c0_90, %c1_91, %c0_92], %240 {strides = array<i32>} : memref<4x18x256xf32, #tpu.memory_space<vmem>>, vector<4x16x256xf32>,
    %c0_93 = arith.constant 0 : index
    %c0_94 = arith.constant 0 : index
    %245 = vector.load %arg22[%c0_93, %c0_94] : memref<1x128xf32, #tpu.memory_space<vmem>>, vector<1x128xf32>
    %c0_95 = arith.constant 0 : index
    %c0_96 = arith.constant 0 : index
    %c0_97 = arith.constant 0 : index
    %246 = vector.load %arg26[%c0_95, %c0_96, %c0_97] : memref<4x18x256xf32, #tpu.memory_space<vmem>>, vector<4x18x256xf32>
    %c0_98 = arith.constant 0 : index
    %c0_99 = arith.constant 0 : index
    %247 = vector.load %arg20[%c0_98, %c0_99] : memref<512x128xbf16, #tpu.memory_space<vmem>>, vector<512x128xbf16>
    %c0_100 = arith.constant 0 : index
    %c0_101 = arith.constant 0 : index
    %248 = vector.load %arg21[%c0_100, %c0_101] : memref<512x128xbf16, #tpu.memory_space<vmem>>, vector<512x128xbf16>
    %249 = vector.extract_strided_slice %246 {offsets = [0, 1, 0], sizes = [4, 16, 256], strides = [1, 1, 1]} : vector<4x18x256xf32> to vector<4x16x256xf32>
    %250 = vector.extract_strided_slice %246 {offsets = [0, 0, 0], sizes = [4, 16, 256], strides = [1, 1, 1]} : vector<4x18x256xf32> to vector<4x16x256xf32>
    %251 = tpu.concatenate %249, %250 in 2 : vector<4x16x256xf32>, vector<4x16x256xf32> -> vector<4x16x512xf32>
    %252 = vector.shape_cast %251 : vector<4x16x512xf32> to vector<64x512xf32>
    %253 = arith.truncf %252 : vector<64x512xf32> to vector<64x512xbf16>
    %cst_102 = arith.constant dense<0.000000e+00> : vector<64x128xf32>
    %254 = tpu.matmul %253, %247, %cst_102 {dimension_numbers = #tpu.dot_dimension_numbers<[1], [0], [0], [1], [0, 0, 1, 1], [], []>} : vector<64x512xbf16>, vector<512x128xbf16>, vector<64x128xf32> -> vector<64x128xf32>
    %255 = vector.broadcast %245 : vector<1x128xf32> to vector<64x128xf32>
    %256 = arith.addf %254, %255 : vector<64x128xf32>
    %257 = vector.extract_strided_slice %246 {offsets = [0, 1, 0], sizes = [4, 16, 256], strides = [1, 1, 1]} : vector<4x18x256xf32> to vector<4x16x256xf32>
    %258 = vector.extract_strided_slice %246 {offsets = [0, 2, 0], sizes = [4, 16, 256], strides = [1, 1, 1]} : vector<4x18x256xf32> to vector<4x16x256xf32>
    %259 = tpu.concatenate %257, %258 in 2 : vector<4x16x256xf32>, vector<4x16x256xf32> -> vector<4x16x512xf32>
    %260 = vector.shape_cast %259 : vector<4x16x512xf32> to vector<64x512xf32>
    %261 = arith.truncf %260 : vector<64x512xf32> to vector<64x512xbf16>
    %cst_103 = arith.constant dense<0.000000e+00> : vector<64x128xf32>
    %262 = tpu.matmul %261, %248, %cst_103 {dimension_numbers = #tpu.dot_dimension_numbers<[1], [0], [0], [1], [0, 0, 1, 1], [], []>} : vector<64x512xbf16>, vector<512x128xbf16>, vector<64x128xf32> -> vector<64x128xf32>
    %263 = vector.broadcast %245 : vector<1x128xf32> to vector<64x128xf32>
    %264 = arith.addf %262, %263 : vector<64x128xf32>
    %265 = tpu.concatenate %256, %264 in 1 : vector<64x128xf32>, vector<64x128xf32> -> vector<64x256xf32>
    %266 = vector.shape_cast %265 : vector<64x256xf32> to vector<4x32x128xf32>
    %c0_104 = arith.constant 0 : index
    %c0_105 = arith.constant 0 : index
    %c0_106 = arith.constant 0 : index
    %267 = vector.load %arg23[%c0_104, %c0_105, %c0_106] : memref<4x32x128xf32, #tpu.memory_space<vmem>>, vector<4x32x128xf32>
    tpu.vector_store %arg23[%c0_104, %c0_105, %c0_106], %266 {strides = array<i32>} : memref<4x32x128xf32, #tpu.memory_space<vmem>>, vector<4x32x128xf32>,
    return
  }
  func.func @transform_0(%arg0: i32) -> (i32, i32) {
    %c0_i32 = arith.constant 0 : i32
    %c0_i32_0 = arith.constant 0 : i32
    %c0_i32_1 = arith.constant 0 : i32
    return %c0_i32, %c0_i32_0 : i32, i32
  }
  func.func @transform_1(%arg0: i32) -> (i32, i32) {
    %c0_i32 = arith.constant 0 : i32
    %c0_i32_0 = arith.constant 0 : i32
    %c0_i32_1 = arith.constant 0 : i32
    return %c0_i32, %c0_i32_0 : i32, i32
  }
  func.func @transform_2(%arg0: i32) -> (i32, i32) {
    %c0_i32 = arith.constant 0 : i32
    %c0_i32_0 = arith.constant 0 : i32
    %c0_i32_1 = arith.constant 0 : i32
    return %c0_i32, %c0_i32_0 : i32, i32
  }
  func.func @transform_3(%arg0: i32) -> (i32, i32) {
    %c0_i32 = arith.constant 0 : i32
    %c0_i32_0 = arith.constant 0 : i32
    %c0_i32_1 = arith.constant 0 : i32
    return %c0_i32, %c0_i32_0 : i32, i32
  }
  func.func @transform_4(%arg0: i32) -> (i32, i32) {
    %c0_i32 = arith.constant 0 : i32
    %c0_i32_0 = arith.constant 0 : i32
    %c0_i32_1 = arith.constant 0 : i32
    return %c0_i32, %c0_i32_0 : i32, i32
  }
  func.func @transform_5(%arg0: i32) -> (i32, i32) {
    %c0_i32 = arith.constant 0 : i32
    %c0_i32_0 = arith.constant 0 : i32
    %c0_i32_1 = arith.constant 0 : i32
    return %c0_i32, %c0_i32_0 : i32, i32
  }
  func.func @transform_6(%arg0: i32) -> (i32, i32) {
    %c0_i32 = arith.constant 0 : i32
    %c0_i32_0 = arith.constant 0 : i32
    %c0_i32_1 = arith.constant 0 : i32
    return %c0_i32, %c0_i32_0 : i32, i32
  }
  func.func @transform_7(%arg0: i32) -> (i32, i32) {
    %c0_i32 = arith.constant 0 : i32
    %c0_i32_0 = arith.constant 0 : i32
    %c0_i32_1 = arith.constant 0 : i32
    return %c0_i32, %c0_i32_0 : i32, i32
  }
  func.func @transform_8(%arg0: i32) -> (i32, i32) {
    %c0_i32 = arith.constant 0 : i32
    %c0_i32_0 = arith.constant 0 : i32
    %c0_i32_1 = arith.constant 0 : i32
    return %c0_i32, %c0_i32_0 : i32, i32
  }
  func.func @transform_9(%arg0: i32) -> (i32, i32) {
    %c0_i32 = arith.constant 0 : i32
    %c0_i32_0 = arith.constant 0 : i32
    %c0_i32_1 = arith.constant 0 : i32
    return %c0_i32, %c0_i32_0 : i32, i32
  }
  func.func @transform_10(%arg0: i32) -> (i32, i32) {
    %c0_i32 = arith.constant 0 : i32
    %c0_i32_0 = arith.constant 0 : i32
    %c0_i32_1 = arith.constant 0 : i32
    return %c0_i32, %c0_i32_0 : i32, i32
  }
  func.func @transform_11(%arg0: i32) -> (i32, i32) {
    %c0_i32 = arith.constant 0 : i32
    %c0_i32_0 = arith.constant 0 : i32
    %c0_i32_1 = arith.constant 0 : i32
    return %c0_i32, %c0_i32_0 : i32, i32
  }
  func.func @transform_12(%arg0: i32) -> (i32, i32) {
    %c0_i32 = arith.constant 0 : i32
    %c0_i32_0 = arith.constant 0 : i32
    %c0_i32_1 = arith.constant 0 : i32
    return %c0_i32, %c0_i32_0 : i32, i32
  }
  func.func @transform_13(%arg0: i32) -> (i32, i32) {
    %c0_i32 = arith.constant 0 : i32
    %c0_i32_0 = arith.constant 0 : i32
    %c0_i32_1 = arith.constant 0 : i32
    return %c0_i32, %c0_i32_0 : i32, i32
  }
  func.func @transform_14(%arg0: i32) -> (i32, i32) {
    %c0_i32 = arith.constant 0 : i32
    %c0_i32_0 = arith.constant 0 : i32
    %c0_i32_1 = arith.constant 0 : i32
    return %c0_i32, %c0_i32_0 : i32, i32
  }
  func.func @transform_15(%arg0: i32) -> (i32, i32) {
    %c0_i32 = arith.constant 0 : i32
    %c0_i32_0 = arith.constant 0 : i32
    %c0_i32_1 = arith.constant 0 : i32
    return %c0_i32, %c0_i32_0 : i32, i32
  }
  func.func @transform_16(%arg0: i32) -> (i32, i32) {
    %c0_i32 = arith.constant 0 : i32
    %c0_i32_0 = arith.constant 0 : i32
    %c0_i32_1 = arith.constant 0 : i32
    return %c0_i32, %c0_i32_0 : i32, i32
  }
  func.func @transform_17(%arg0: i32) -> (i32, i32) {
    %c0_i32 = arith.constant 0 : i32
    %c0_i32_0 = arith.constant 0 : i32
    %c0_i32_1 = arith.constant 0 : i32
    return %c0_i32, %c0_i32_0 : i32, i32
  }
  func.func @transform_18(%arg0: i32) -> (i32, i32) {
    %c0_i32 = arith.constant 0 : i32
    %c0_i32_0 = arith.constant 0 : i32
    %c0_i32_1 = arith.constant 0 : i32
    return %c0_i32, %c0_i32_0 : i32, i32
  }
  func.func @transform_19(%arg0: i32) -> (i32, i32) {
    %c0_i32 = arith.constant 0 : i32
    %c0_i32_0 = arith.constant 0 : i32
    %c0_i32_1 = arith.constant 0 : i32
    return %c0_i32, %c0_i32_0 : i32, i32
  }
  func.func @transform_20(%arg0: i32) -> (i32, i32) {
    %c0_i32 = arith.constant 0 : i32
    %c0_i32_0 = arith.constant 0 : i32
    %c0_i32_1 = arith.constant 0 : i32
    return %c0_i32, %c0_i32_0 : i32, i32
  }
  func.func @transform_21(%arg0: i32) -> (i32, i32) {
    %c0_i32 = arith.constant 0 : i32
    %c0_i32_0 = arith.constant 0 : i32
    %c0_i32_1 = arith.constant 0 : i32
    return %c0_i32, %c0_i32_0 : i32, i32
  }
  func.func @transform_22(%arg0: i32) -> (i32, i32, i32) {
    %c0_i32 = arith.constant 0 : i32
    %c0_i32_0 = arith.constant 0 : i32
    %c0_i32_1 = arith.constant 0 : i32
    %c0_i32_2 = arith.constant 0 : i32
    return %c0_i32, %c0_i32_0, %c0_i32_1 : i32, i32, i32
  }
}

</mosaic_0001>

<llo_original>
// kernel: _lambda_.1
$region0: #{_lambda_.1}
  #allocation0 [shape = 'u32[]', space=smem, size = 0x4, offset = 0x4, fixed_abs, tag = 'smem constant byte address 0x4 - core index']
  #allocation1 [shape = 'u32[144,128]{1,0:T(1,128)}', space=vmem, size = 0x12000, scoped, tag = 'internal scratch']
  #allocation2 [shape = 'f32[4,6,256]{2,1,0:T(8,128)}', space=vmem, size = 0x8000, scoped, tag = 'scratch operand']
  #allocation3 [shape = 'f32[4,10,256]{2,1,0:T(8,128)}', space=vmem, size = 0x10000, scoped, tag = 'scratch operand']
  #allocation4 [shape = 'f32[4,18,256]{2,1,0:T(8,128)}', space=vmem, size = 0x18000, scoped, tag = 'scratch operand']
  %s0 = inlined_call_operand.vmem [shape: f32[4,32], index: 0, kind: input, shape index: {}]
  %s1 = inlined_call_operand.hbm [shape: bf16[32,128], index: 1, kind: input, shape index: {}]
  %s2 = inlined_call_operand.hbm [shape: f32[1,128], index: 2, kind: input, shape index: {}]
  %s3 = inlined_call_operand.hbm [shape: bf16[128,256], index: 3, kind: input, shape index: {}]
  %s4 = inlined_call_operand.vmem [shape: f32[1,256], index: 4, kind: input, shape index: {}]
  %s5 = inlined_call_operand.hbm [shape: bf16[256,32], index: 5, kind: input, shape index: {}]
  %s6 = inlined_call_operand.vmem [shape: f32[1,32], index: 6, kind: input, shape index: {}]
  %s7 = inlined_call_operand.hbm [shape: bf16[32,1024], index: 7, kind: input, shape index: {}]
  %s8 = inlined_call_operand.vmem [shape: f32[1,1024], index: 8, kind: input, shape index: {}]
  %s9 = inlined_call_operand.vmem [shape: f32[1,64], index: 9, kind: input, shape index: {}]
  %s10 = inlined_call_operand.vmem [shape: f32[1,64], index: 10, kind: input, shape index: {}]
  %s11 = inlined_call_operand.hbm [shape: bf16[512,256], index: 11, kind: input, shape index: {}]
  %s12 = inlined_call_operand.hbm [shape: bf16[512,256], index: 12, kind: input, shape index: {}]
  %s13 = inlined_call_operand.vmem [shape: f32[1,256], index: 13, kind: input, shape index: {}]
  %s14 = inlined_call_operand.vmem [shape: f32[1,32], index: 14, kind: input, shape index: {}]
  %s15 = inlined_call_operand.vmem [shape: f32[1,32], index: 15, kind: input, shape index: {}]
  %s16 = inlined_call_operand.hbm [shape: bf16[512,256], index: 16, kind: input, shape index: {}]
  %s17 = inlined_call_operand.hbm [shape: bf16[512,256], index: 17, kind: input, shape index: {}]
  %s18 = inlined_call_operand.vmem [shape: f32[1,256], index: 18, kind: input, shape index: {}]
  %s19 = inlined_call_operand.hbm [shape: bf16[512,128], index: 19, kind: input, shape index: {}]
  %s20 = inlined_call_operand.hbm [shape: bf16[512,128], index: 20, kind: input, shape index: {}]
  %s21 = inlined_call_operand.vmem [shape: f32[1,128], index: 21, kind: input, shape index: {}]
  %s22 = inlined_call_operand.vmem [shape: f32[4,32,128], index: 22, kind: output, shape index: {}]
  %s23 = sld [smem:[#allocation0]]
  $region142: #{_lambda_.1} parent=0
    _
  %s25 = ssub.s32 1, %s23
  %s26 = scalar_select 0, %s25, %s23
  $region1: #{_lambda_.1} parent=0
    #allocation5 [shape = 'u8[8192]{0}', space=vmem, size = 0x2000, scoped, tag = 'input window, operand 1, single buffered']
    #allocation6 [shape = 's32[1]{0}', space=sflag, size = 0x4, scoped, tag = 'scoped memory for _lambda_.1']
    #allocation7 [shape = 'u8[512]{0}', space=vmem, size = 0x400, scoped, tag = 'input window, operand 2, single buffered']
    #allocation8 [shape = 's32[1]{0}', space=sflag, size = 0x4, scoped, tag = 'scoped memory for _lambda_.1']
    #allocation9 [shape = 'u8[65536]{0}', space=vmem, size = 0x10000, scoped, tag = 'input window, operand 3, single buffered']
    #allocation10 [shape = 'u8[65536]{0}', space=vmem, size = 0x10000, scoped, tag = 'input window, operand 5, single buffered']
    #allocation11 [shape = 's32[1]{0}', space=sflag, size = 0x4, scoped, tag = 'scoped memory for _lambda_.1']
    #allocation12 [shape = 'u8[65536]{0}', space=vmem, size = 0x10000, scoped, tag = 'input window, operand 7, single buffered']
    #allocation13 [shape = 'u8[262144]{0}', space=vmem, size = 0x40000, scoped, tag = 'input window, operand 11, single buffered']
    #allocation14 [shape = 's32[1]{0}', space=sflag, size = 0x4, scoped, tag = 'scoped memory for _lambda_.1']
    #allocation15 [shape = 'u8[262144]{0}', space=vmem, size = 0x40000, scoped, tag = 'input window, operand 12, single buffered']
    #allocation16 [shape = 'u8[262144]{0}', space=vmem, size = 0x40000, scoped, tag = 'input window, operand 16, single buffered']
    #allocation17 [shape = 's32[1]{0}', space=sflag, size = 0x4, scoped, tag = 'scoped memory for _lambda_.1']
    #allocation18 [shape = 'u8[262144]{0}', space=vmem, size = 0x40000, scoped, tag = 'input window, operand 17, single buffered']
    #allocation19 [shape = 'u8[131072]{0}', space=vmem, size = 0x20000, scoped, tag = 'input window, operand 19, single buffered']
    #allocation20 [shape = 's32[1]{0}', space=sflag, size = 0x4, scoped, tag = 'scoped memory for _lambda_.1']
    #allocation21 [shape = 'u8[131072]{0}', space=vmem, size = 0x20000, scoped, tag = 'input window, operand 20, single buffered']
    %27 = vsyncpa [#allocation6], 0
    %28 = vsyncpa [#allocation8], 0
    %29 = vsyncpa [#allocation11], 0
    %30 = vsyncpa [#allocation14], 0
    %31 = vsyncpa [#allocation17], 0
    %32 = vsyncpa [#allocation20], 0
    // Predicated region
    $region2: #{_lambda_.1} parent=1 // pred_check
      _
    $region3: #{_lambda_.1} parent=1 // pred_check_branch
      %34 = sbr.rel (0) target = $region5
    $region4: #{_lambda_.1} parent=1 // pred_region
      _
    $region5: #{_lambda_.1} parent=1 // pred_fallthru
      _
    // Predicated region
    $region6: #{_lambda_.1} parent=1 // pred_check
      _
    $region7: #{_lambda_.1} parent=1 // pred_check_branch
      %36 = sbr.rel (0) target = $region9
    $region8: #{_lambda_.1} parent=1 // pred_region
      %s38 = ssub.s32 256, 256
      %39 = vsyncadd [#allocation6], %s38
      %s40 = sshll.u32 [#allocation5], 4
      %s41 = int_to_ptr.vmem [resolvable:$true] %s40
      %46 = dma.hbm_to_vmem [thread:$0]  %s1, 256, %s41, [#allocation6], 64, 64, 4
    $region9: #{_lambda_.1} parent=1 // pred_fallthru
      _
    // Predicated region
    $region10: #{_lambda_.1} parent=1 // pred_check
      _
    $region11: #{_lambda_.1} parent=1 // pred_check_branch
      %48 = sbr.rel (0) target = $region13
    $region12: #{_lambda_.1} parent=1 // pred_region
      %s50 = ssub.s32 16, 16
      %51 = vsyncadd [#allocation8], %s50
      %s53 = sshll.u32 [#allocation7], 4
      %s54 = int_to_ptr.vmem [resolvable:$true] %s53
      %56 = dma.hbm_to_vmem [thread:$0]  %s2, 16, %s54, [#allocation8]
    $region13: #{_lambda_.1} parent=1 // pred_fallthru
      _
    // Predicated region
    $region14: #{_lambda_.1} parent=1 // pred_check
      _
    $region15: #{_lambda_.1} parent=1 // pred_check_branch
      %58 = sbr.rel (0) target = $region17
    $region16: #{_lambda_.1} parent=1 // pred_region
      %s60 = ssub.s32 2048, 2048
      %61 = vsyncadd [#allocation8], %s60
      %s62 = sshll.u32 [#allocation9], 4
      %s63 = int_to_ptr.vmem [resolvable:$true] %s62
      %68 = dma.hbm_to_vmem [thread:$0]  %s3, 2048, %s63, [#allocation8], 128, 128, 8
    $region17: #{_lambda_.1} parent=1 // pred_fallthru
      _
    // Predicated region
    $region18: #{_lambda_.1} parent=1 // pred_check
      _
    $region19: #{_lambda_.1} parent=1 // pred_check_branch
      %70 = sbr.rel (0) target = $region21
    $region20: #{_lambda_.1} parent=1 // pred_region
      _
    $region21: #{_lambda_.1} parent=1 // pred_fallthru
      _
    // Predicated region
    $region22: #{_lambda_.1} parent=1 // pred_check
      _
    $region23: #{_lambda_.1} parent=1 // pred_check_branch
      %72 = sbr.rel (0) target = $region25
    $region24: #{_lambda_.1} parent=1 // pred_region
      %s74 = ssub.s32 2048, 2048
      %75 = vsyncadd [#allocation11], %s74
      %s76 = sshll.u32 [#allocation10], 4
      %s77 = int_to_ptr.vmem [resolvable:$true] %s76
      %82 = dma.hbm_to_vmem [thread:$0]  %s5, 2048, %s77, [#allocation11], 64, 64, 4
    $region25: #{_lambda_.1} parent=1 // pred_fallthru
      _
    // Predicated region
    $region26: #{_lambda_.1} parent=1 // pred_check
      _
    $region27: #{_lambda_.1} parent=1 // pred_check_branch
      %84 = sbr.rel (0) target = $region29
    $region28: #{_lambda_.1} parent=1 // pred_region
      _
    $region29: #{_lambda_.1} parent=1 // pred_fallthru
      _
    // Predicated region
    $region30: #{_lambda_.1} parent=1 // pred_check
      _
    $region31: #{_lambda_.1} parent=1 // pred_check_branch
      %86 = sbr.rel (0) target = $region33
    $region32: #{_lambda_.1} parent=1 // pred_region
      %s88 = ssub.s32 2048, 2048
      %89 = vsyncadd [#allocation11], %s88
      %s90 = sshll.u32 [#allocation12], 4
      %s91 = int_to_ptr.vmem [resolvable:$true] %s90
      %96 = dma.hbm_to_vmem [thread:$0]  %s7, 2048, %s91, [#allocation11], 512, 512, 32
    $region33: #{_lambda_.1} parent=1 // pred_fallthru
      _
    // Predicated region
    $region34: #{_lambda_.1} parent=1 // pred_check
      _
    $region35: #{_lambda_.1} parent=1 // pred_check_branch
      %98 = sbr.rel (0) target = $region37
    $region36: #{_lambda_.1} parent=1 // pred_region
      _
    $region37: #{_lambda_.1} parent=1 // pred_fallthru
      _
    // Predicated region
    $region38: #{_lambda_.1} parent=1 // pred_check
      _
    $region39: #{_lambda_.1} parent=1 // pred_check_branch
      %100 = sbr.rel (0) target = $region41
    $region40: #{_lambda_.1} parent=1 // pred_region
      _
    $region41: #{_lambda_.1} parent=1 // pred_fallthru
      _
    // Predicated region
    $region42: #{_lambda_.1} parent=1 // pred_check
      _
    $region43: #{_lambda_.1} parent=1 // pred_check_branch
      %102 = sbr.rel (0) target = $region45
    $region44: #{_lambda_.1} parent=1 // pred_region
      _
    $region45: #{_lambda_.1} parent=1 // pred_fallthru
      _
    // Predicated region
    $region46: #{_lambda_.1} parent=1 // pred_check
      _
    $region47: #{_lambda_.1} parent=1 // pred_check_branch
      %104 = sbr.rel (0) target = $region49
    $region48: #{_lambda_.1} parent=1 // pred_region
      %s106 = ssub.s32 8192, 8192
      %107 = vsyncadd [#allocation14], %s106
      %s108 = sshll.u32 [#allocation13], 4
      %s109 = int_to_ptr.vmem [resolvable:$true] %s108
      %114 = dma.hbm_to_vmem [thread:$0]  %s11, 8192, %s109, [#allocation14], 128, 128, 8
    $region49: #{_lambda_.1} parent=1 // pred_fallthru
      _
    // Predicated region
    $region50: #{_lambda_.1} parent=1 // pred_check
      _
    $region51: #{_lambda_.1} parent=1 // pred_check_branch
      %116 = sbr.rel (0) target = $region53
    $region52: #{_lambda_.1} parent=1 // pred_region
      %s118 = ssub.s32 8192, 8192
      %119 = vsyncadd [#allocation14], %s118
      %s120 = sshll.u32 [#allocation15], 4
      %s121 = int_to_ptr.vmem [resolvable:$true] %s120
      %126 = dma.hbm_to_vmem [thread:$0]  %s12, 8192, %s121, [#allocation14], 128, 128, 8
    $region53: #{_lambda_.1} parent=1 // pred_fallthru
      _
    // Predicated region
    $region54: #{_lambda_.1} parent=1 // pred_check
      _
    $region55: #{_lambda_.1} parent=1 // pred_check_branch
      %128 = sbr.rel (0) target = $region57
    $region56: #{_lambda_.1} parent=1 // pred_region
      _
    $region57: #{_lambda_.1} parent=1 // pred_fallthru
      _
    // Predicated region
    $region58: #{_lambda_.1} parent=1 // pred_check
      _
    $region59: #{_lambda_.1} parent=1 // pred_check_branch
      %130 = sbr.rel (0) target = $region61
    $region60: #{_lambda_.1} parent=1 // pred_region
      _
    $region61: #{_lambda_.1} parent=1 // pred_fallthru
      _
    // Predicated region
    $region62: #{_lambda_.1} parent=1 // pred_check
      _
    $region63: #{_lambda_.1} parent=1 // pred_check_branch
      %132 = sbr.rel (0) target = $region65
    $region64: #{_lambda_.1} parent=1 // pred_region
      _
    $region65: #{_lambda_.1} parent=1 // pred_fallthru
      _
    // Predicated region
    $region66: #{_lambda_.1} parent=1 // pred_check
      _
    $region67: #{_lambda_.1} parent=1 // pred_check_branch
      %134 = sbr.rel (0) target = $region69
    $region68: #{_lambda_.1} parent=1 // pred_region
      %s136 = ssub.s32 8192, 8192
      %137 = vsyncadd [#allocation17], %s136
      %s138 = sshll.u32 [#allocation16], 4
      %s139 = int_to_ptr.vmem [resolvable:$true] %s138
      %144 = dma.hbm_to_vmem [thread:$0]  %s16, 8192, %s139, [#allocation17], 128, 128, 8
    $region69: #{_lambda_.1} parent=1 // pred_fallthru
      _
    // Predicated region
    $region70: #{_lambda_.1} parent=1 // pred_check
      _
    $region71: #{_lambda_.1} parent=1 // pred_check_branch
      %146 = sbr.rel (0) target = $region73
    $region72: #{_lambda_.1} parent=1 // pred_region
      %s148 = ssub.s32 8192, 8192
      %149 = vsyncadd [#allocation17], %s148
      %s150 = sshll.u32 [#allocation18], 4
      %s151 = int_to_ptr.vmem [resolvable:$true] %s150
      %156 = dma.hbm_to_vmem [thread:$0]  %s17, 8192, %s151, [#allocation17], 128, 128, 8
    $region73: #{_lambda_.1} parent=1 // pred_fallthru
      _
    // Predicated region
    $region74: #{_lambda_.1} parent=1 // pred_check
      _
    $region75: #{_lambda_.1} parent=1 // pred_check_branch
      %158 = sbr.rel (0) target = $region77
    $region76: #{_lambda_.1} parent=1 // pred_region
      _
    $region77: #{_lambda_.1} parent=1 // pred_fallthru
      _
    // Predicated region
    $region78: #{_lambda_.1} parent=1 // pred_check
      _
    $region79: #{_lambda_.1} parent=1 // pred_check_branch
      %160 = sbr.rel (0) target = $region81
    $region80: #{_lambda_.1} parent=1 // pred_region
      %s162 = ssub.s32 4096, 4096
      %163 = vsyncadd [#allocation20], %s162
      %s164 = sshll.u32 [#allocation19], 4
      %s165 = int_to_ptr.vmem [resolvable:$true] %s164
      %170 = dma.hbm_to_vmem [thread:$0]  %s19, 4096, %s165, [#allocation20], 64, 64, 4
    $region81: #{_lambda_.1} parent=1 // pred_fallthru
      _
    // Predicated region
    $region82: #{_lambda_.1} parent=1 // pred_check
      _
    $region83: #{_lambda_.1} parent=1 // pred_check_branch
      %172 = sbr.rel (0) target = $region85
    $region84: #{_lambda_.1} parent=1 // pred_region
      %s174 = ssub.s32 4096, 4096
      %175 = vsyncadd [#allocation20], %s174
      %s176 = sshll.u32 [#allocation21], 4
      %s177 = int_to_ptr.vmem [resolvable:$true] %s176
      %182 = dma.hbm_to_vmem [thread:$0]  %s20, 4096, %s177, [#allocation20], 64, 64, 4
    $region85: #{_lambda_.1} parent=1 // pred_fallthru
      _
    // Predicated region
    $region86: #{_lambda_.1} parent=1 // pred_check
      _
    $region87: #{_lambda_.1} parent=1 // pred_check_branch
      %184 = sbr.rel (0) target = $region89
    $region88: #{_lambda_.1} parent=1 // pred_region
      _
    $region89: #{_lambda_.1} parent=1 // pred_fallthru
      _
    // Predicated region
    $region90: #{_lambda_.1} parent=1 // pred_check
      _
    $region91: #{_lambda_.1} parent=1 // pred_check_branch
      %186 = sbr.rel (0) target = $region93
    $region92: #{_lambda_.1} parent=1 // pred_region
      %187 = dma.done [#allocation6], 256
    $region93: #{_lambda_.1} parent=1 // pred_fallthru
      _
    // Predicated region
    $region94: #{_lambda_.1} parent=1 // pred_check
      _
    $region95: #{_lambda_.1} parent=1 // pred_check_branch
      %189 = sbr.rel (0) target = $region97
    $region96: #{_lambda_.1} parent=1 // pred_region
      %190 = dma.done [#allocation8], 16
    $region97: #{_lambda_.1} parent=1 // pred_fallthru
      _
    // Predicated region
    $region98: #{_lambda_.1} parent=1 // pred_check
      _
    $region99: #{_lambda_.1} parent=1 // pred_check_branch
      %192 = sbr.rel (0) target = $region101
    $region100: #{_lambda_.1} parent=1 // pred_region
      %193 = dma.done [#allocation8], 2048
    $region101: #{_lambda_.1} parent=1 // pred_fallthru
      _
    // Predicated region
    $region102: #{_lambda_.1} parent=1 // pred_check
      _
    $region103: #{_lambda_.1} parent=1 // pred_check_branch
      %195 = sbr.rel (0) target = $region105
    $region104: #{_lambda_.1} parent=1 // pred_region
      %196 = dma.done [#allocation11], 2048
    $region105: #{_lambda_.1} parent=1 // pred_fallthru
      _
    // Predicated region
    $region106: #{_lambda_.1} parent=1 // pred_check
      _
    $region107: #{_lambda_.1} parent=1 // pred_check_branch
      %198 = sbr.rel (0) target = $region109
    $region108: #{_lambda_.1} parent=1 // pred_region
      %199 = dma.done [#allocation11], 2048
    $region109: #{_lambda_.1} parent=1 // pred_fallthru
      _
    // Predicated region
    $region110: #{_lambda_.1} parent=1 // pred_check
      _
    $region111: #{_lambda_.1} parent=1 // pred_check_branch
      %201 = sbr.rel (0) target = $region113
    $region112: #{_lambda_.1} parent=1 // pred_region
      %202 = dma.done [#allocation14], 8192
    $region113: #{_lambda_.1} parent=1 // pred_fallthru
      _
    // Predicated region
    $region114: #{_lambda_.1} parent=1 // pred_check
      _
    $region115: #{_lambda_.1} parent=1 // pred_check_branch
      %204 = sbr.rel (0) target = $region117
    $region116: #{_lambda_.1} parent=1 // pred_region
      %205 = dma.done [#allocation14], 8192
    $region117: #{_lambda_.1} parent=1 // pred_fallthru
      _
    // Predicated region
    $region118: #{_lambda_.1} parent=1 // pred_check
      _
    $region119: #{_lambda_.1} parent=1 // pred_check_branch
      %207 = sbr.rel (0) target = $region121
    $region120: #{_lambda_.1} parent=1 // pred_region
      %208 = dma.done [#allocation17], 8192
    $region121: #{_lambda_.1} parent=1 // pred_fallthru
      _
    // Predicated region
    $region122: #{_lambda_.1} parent=1 // pred_check
      _
    $region123: #{_lambda_.1} parent=1 // pred_check_branch
      %210 = sbr.rel (0) target = $region125
    $region124: #{_lambda_.1} parent=1 // pred_region
      %211 = dma.done [#allocation17], 8192
    $region125: #{_lambda_.1} parent=1 // pred_fallthru
      _
    // Predicated region
    $region126: #{_lambda_.1} parent=1 // pred_check
      _
    $region127: #{_lambda_.1} parent=1 // pred_check_branch
      %213 = sbr.rel (0) target = $region129
    $region128: #{_lambda_.1} parent=1 // pred_region
      %214 = dma.done [#allocation20], 4096
    $region129: #{_lambda_.1} parent=1 // pred_fallthru
      _
    // Predicated region
    $region130: #{_lambda_.1} parent=1 // pred_check
      _
    $region131: #{_lambda_.1} parent=1 // pred_check_branch
      %216 = sbr.rel (0) target = $region133
    $region132: #{_lambda_.1} parent=1 // pred_region
      %217 = dma.done [#allocation20], 4096
    $region133: #{_lambda_.1} parent=1 // pred_fallthru
      _
    %v219 = vld [vmem:[%s0] sm:$0xf]
    %v220 = vpack.c.bf16 %v219, %v219
    %v221 = vld [vmem:[#allocation5] sm:$0xf]
    %v222 = vld [vmem:[#allocation5 + $0x4] sm:$0xf]
    %v223 = vld [vmem:[#allocation5 + $0x8] sm:$0xf]
    %v224 = vld [vmem:[#allocation5 + $0xc] sm:$0xf]
    %v225 = vld [vmem:[#allocation7] sm:$0x1]
    %v227 = vlaneseq
    %v228 = vshrl.u32 %v227, 7
    %v229 = vsub.s32 0, %v228
    %v230 = vrot.slane %v225, %v229
    %v236 = vunpack.c.l.b16 %v221
    %v237 = vunpack.c.l.b16 %v222
    %v238 = vunpack.c.l.b16 %v223
    %v239 = vunpack.c.l.b16 %v224
    %v240 = vpack.c.b16 %v237, %v236
    %v241 = vpack.c.b16 %v239, %v238
    %vm244 = vcmask 261120
    %v246 = vsel %vm244, %v220, 0
    %248 = vmatprep.subr.bf16.mxu0 0
    %249 = vmatpush1.bf16.msra.mxu0 0
    %250 = vmatprep.subr.bf16.mxu0 0
    %251 = vmatpush1.bf16.msra.mxu0 0
    %252 = vmatprep.subr.bf16.mxu0 0
    %253 = vmatpush1.bf16.msra.mxu0 0
    %254 = vmatprep.subr.bf16.mxu0 0
    %255 = vmatpush1.bf16.msra.mxu0 0
    %256 = vmatprep.subr.bf16.mxu0 0
    %257 = vmatpush1.bf16.msra.mxu0 0
    %258 = vmatprep.subr.bf16.mxu0 0
    %259 = vmatpush1.bf16.msra.mxu0 0
    %260 = vmatprep.subr.bf16.mxu0 0
    %261 = vmatpush1.bf16.msra.mxu0 %v241
    %262 = vmatprep.subr.bf16.mxu0 0
    %263 = vmatpush1.bf16.msra.mxu0 %v240
    %264 = vmatprep.subr.bf16.mxu0 0
    %265 = vmatpush2.bf16.msra.mxu0 0
    %266 = vmatprep.subr.bf16.mxu0 0
    %267 = vmatpush2.bf16.msra.mxu0 0
    %268 = vmatprep.subr.bf16.mxu0 0
    %269 = vmatpush2.bf16.msra.mxu0 0
    %270 = vmatprep.subr.bf16.mxu0 0
    %271 = vmatpush2.bf16.msra.mxu0 0
    %272 = vmatprep.subr.bf16.mxu0 0
    %273 = vmatpush2.bf16.msra.mxu0 0
    %274 = vmatprep.subr.bf16.mxu0 0
    %275 = vmatpush2.bf16.msra.mxu0 0
    %276 = vmatprep.subr.bf16.mxu0 0
    %277 = vmatpush2.bf16.msra.mxu0 0
    %278 = vmatprep.subr.bf16.mxu0 0
    %279 = vmatpush2.bf16.msra.mxu0 0
    %280 = vmatprep.mubr.bf16.mxu0 0
    %281 = vmatmul.mubr.bf16.gmra.mxu0 %v246
    %v282 = vpop.f32.mrf.mxu0
    %v283 = vadd.f32 %v230, %v282
    %v284 = vpop.f32.mrf.mxu0
    %v285 = vpop.f32.mrf.mxu0
    %v286 = vpop.f32.mrf.mxu0
    %287 = vdwg.mxu0
    %v288 = vpack.c.bf16 %v283, %v283
    %v289 = vld [vmem:[#allocation9] sm:$0xff]
    %v290 = vld [vmem:[#allocation9 + $0x8] sm:$0xff]
    %v291 = vld [vmem:[#allocation9 + $0x10] sm:$0xff]
    %v292 = vld [vmem:[#allocation9 + $0x18] sm:$0xff]
    %v293 = vld [vmem:[#allocation9 + $0x20] sm:$0xff]
    %v294 = vld [vmem:[#allocation9 + $0x28] sm:$0xff]
    %v295 = vld [vmem:[#allocation9 + $0x30] sm:$0xff]
    %v296 = vld [vmem:[#allocation9 + $0x38] sm:$0xff]
    %v297 = vld [vmem:[#allocation9 + $0x40] sm:$0xff]
    %v298 = vld [vmem:[#allocation9 + $0x48] sm:$0xff]
    %v299 = vld [vmem:[#allocation9 + $0x50] sm:$0xff]
    %v300 = vld [vmem:[#allocation9 + $0x58] sm:$0xff]
    %v301 = vld [vmem:[#allocation9 + $0x60] sm:$0xff]
    %v302 = vld [vmem:[#allocation9 + $0x68] sm:$0xff]
    %v303 = vld [vmem:[#allocation9 + $0x70] sm:$0xff]
    %v304 = vld [vmem:[#allocation9 + $0x78] sm:$0xff]
    %v305 = vld [vmem:[%s4] sm:$0x3]
    %v307 = vlaneseq
    %v308 = vshrl.u32 %v307, 7
    %v309 = vsub.s32 0, %v308
    %v310 = vrot.slane %v305, %v309
    %v311 = vlaneseq
    %v312 = vshrl.u32 %v311, 7
    %v313 = vsub.s32 1, %v312
    %v314 = vrot.slane %v305, %v313
    %v333 = vunpack.c.l.b16 %v289
    %v334 = vunpack.c.h.b16 %v289
    %v335 = vunpack.c.l.b16 %v290
    %v336 = vunpack.c.h.b16 %v290
    %v337 = vunpack.c.l.b16 %v291
    %v338 = vunpack.c.h.b16 %v291
    %v339 = vunpack.c.l.b16 %v292
    %v340 = vunpack.c.h.b16 %v292
    %v341 = vunpack.c.l.b16 %v293
    %v342 = vunpack.c.h.b16 %v293
    %v343 = vunpack.c.l.b16 %v294
    %v344 = vunpack.c.h.b16 %v294
    %v345 = vunpack.c.l.b16 %v295
    %v346 = vunpack.c.h.b16 %v295
    %v347 = vunpack.c.l.b16 %v296
    %v348 = vunpack.c.h.b16 %v296
    %v349 = vunpack.c.l.b16 %v297
    %v350 = vunpack.c.h.b16 %v297
    %v351 = vunpack.c.l.b16 %v298
    %v352 = vunpack.c.h.b16 %v298
    %v353 = vunpack.c.l.b16 %v299
    %v354 = vunpack.c.h.b16 %v299
    %v355 = vunpack.c.l.b16 %v300
    %v356 = vunpack.c.h.b16 %v300
    %v357 = vunpack.c.l.b16 %v301
    %v358 = vunpack.c.h.b16 %v301
    %v359 = vunpack.c.l.b16 %v302
    %v360 = vunpack.c.h.b16 %v302
    %v361 = vunpack.c.l.b16 %v303
    %v362 = vunpack.c.h.b16 %v303
    %v363 = vunpack.c.l.b16 %v304
    %v364 = vunpack.c.h.b16 %v304
    %v365 = vpack.c.b16 %v335, %v333
    %v366 = vpack.c.b16 %v336, %v334
    %v367 = vpack.c.b16 %v339, %v337
    %v368 = vpack.c.b16 %v340, %v338
    %v369 = vpack.c.b16 %v343, %v341
    %v370 = vpack.c.b16 %v344, %v342
    %v371 = vpack.c.b16 %v347, %v345
    %v372 = vpack.c.b16 %v348, %v346
    %v373 = vpack.c.b16 %v351, %v349
    %v374 = vpack.c.b16 %v352, %v350
    %v375 = vpack.c.b16 %v355, %v353
    %v376 = vpack.c.b16 %v356, %v354
    %v377 = vpack.c.b16 %v359, %v357
    %v378 = vpack.c.b16 %v360, %v358
    %v379 = vpack.c.b16 %v363, %v361
    %v380 = vpack.c.b16 %v364, %v362
    %397 = vmatprep.subr.bf16.mxu0 %v380
    %398 = vmatpush1.bf16.msra.mxu0 %v379
    %399 = vmatprep.subr.bf16.mxu0 %v378
    %400 = vmatpush1.bf16.msra.mxu0 %v377
    %401 = vmatprep.subr.bf16.mxu0 %v376
    %402 = vmatpush1.bf16.msra.mxu0 %v375
    %403 = vmatprep.subr.bf16.mxu0 %v374
    %404 = vmatpush1.bf16.msra.mxu0 %v373
    %405 = vmatprep.subr.bf16.mxu0 %v372
    %406 = vmatpush1.bf16.msra.mxu0 %v371
    %407 = vmatprep.subr.bf16.mxu0 %v370
    %408 = vmatpush1.bf16.msra.mxu0 %v369
    %409 = vmatprep.subr.bf16.mxu0 %v368
    %410 = vmatpush1.bf16.msra.mxu0 %v367
    %411 = vmatprep.subr.bf16.mxu0 %v366
    %412 = vmatpush1.bf16.msra.mxu0 %v365
    %413 = vmatprep.subr.bf16.mxu0 0
    %414 = vmatpush2.bf16.msra.mxu0 0
    %415 = vmatprep.subr.bf16.mxu0 0
    %416 = vmatpush2.bf16.msra.mxu0 0
    %417 = vmatprep.subr.bf16.mxu0 0
    %418 = vmatpush2.bf16.msra.mxu0 0
    %419 = vmatprep.subr.bf16.mxu0 0
    %420 = vmatpush2.bf16.msra.mxu0 0
    %421 = vmatprep.subr.bf16.mxu0 0
    %422 = vmatpush2.bf16.msra.mxu0 0
    %423 = vmatprep.subr.bf16.mxu0 0
    %424 = vmatpush2.bf16.msra.mxu0 0
    %425 = vmatprep.subr.bf16.mxu0 0
    %426 = vmatpush2.bf16.msra.mxu0 0
    %427 = vmatprep.subr.bf16.mxu0 0
    %428 = vmatpush2.bf16.msra.mxu0 0
    %429 = vmatprep.mubr.bf16.mxu0 0
    %430 = vmatmul.mubr.bf16.gmra.mxu0 %v288
    %v431 = vpop.f32.mrf.mxu0
    %v432 = vadd.f32 %v310, %v431
    %v433 = vpop.f32.mrf.mxu0
    %v434 = vadd.f32 %v314, %v433
    %v435 = vpop.f32.mrf.mxu0
    %v436 = vpop.f32.mrf.mxu0
    %437 = vdwg.mxu0
    %v438 = vpack.c.bf16 %v432, %v432
    %v439 = vpack.c.bf16 %v434, %v434
    %v440 = vld [vmem:[#allocation10] sm:$0xf]
    %v441 = vld [vmem:[#allocation10 + $0x4] sm:$0xf]
    %v442 = vld [vmem:[#allocation10 + $0x8] sm:$0xf]
    %v443 = vld [vmem:[#allocation10 + $0xc] sm:$0xf]
    %v444 = vld [vmem:[#allocation10 + $0x10] sm:$0xf]
    %v445 = vld [vmem:[#allocation10 + $0x14] sm:$0xf]
    %v446 = vld [vmem:[#allocation10 + $0x18] sm:$0xf]
    %v447 = vld [vmem:[#allocation10 + $0x1c] sm:$0xf]
    %v448 = vld [vmem:[#allocation10 + $0x20] sm:$0xf]
    %v449 = vld [vmem:[#allocation10 + $0x24] sm:$0xf]
    %v450 = vld [vmem:[#allocation10 + $0x28] sm:$0xf]
    %v451 = vld [vmem:[#allocation10 + $0x2c] sm:$0xf]
    %v452 = vld [vmem:[#allocation10 + $0x30] sm:$0xf]
    %v453 = vld [vmem:[#allocation10 + $0x34] sm:$0xf]
    %v454 = vld [vmem:[#allocation10 + $0x38] sm:$0xf]
    %v455 = vld [vmem:[#allocation10 + $0x3c] sm:$0xf]
    %v456 = vld [vmem:[#allocation10 + $0x40] sm:$0xf]
    %v457 = vld [vmem:[#allocation10 + $0x44] sm:$0xf]
    %v458 = vld [vmem:[#allocation10 + $0x48] sm:$0xf]
    %v459 = vld [vmem:[#allocation10 + $0x4c] sm:$0xf]
    %v460 = vld [vmem:[#allocation10 + $0x50] sm:$0xf]
    %v461 = vld [vmem:[#allocation10 + $0x54] sm:$0xf]
    %v462 = vld [vmem:[#allocation10 + $0x58] sm:$0xf]
    %v463 = vld [vmem:[#allocation10 + $0x5c] sm:$0xf]
    %v464 = vld [vmem:[#allocation10 + $0x60] sm:$0xf]
    %v465 = vld [vmem:[#allocation10 + $0x64] sm:$0xf]
    %v466 = vld [vmem:[#allocation10 + $0x68] sm:$0xf]
    %v467 = vld [vmem:[#allocation10 + $0x6c] sm:$0xf]
    %v468 = vld [vmem:[#allocation10 + $0x70] sm:$0xf]
    %v469 = vld [vmem:[#allocation10 + $0x74] sm:$0xf]
    %v470 = vld [vmem:[#allocation10 + $0x78] sm:$0xf]
    %v471 = vld [vmem:[#allocation10 + $0x7c] sm:$0xf]
    %v472 = vld [vmem:[%s6] sm:$0x1]
    %v474 = vlaneseq
    %v475 = vshrl.u32 %v474, 7
    %v476 = vsub.s32 0, %v475
    %v477 = vrot.slane %v472, %v476
    %v511 = vunpack.c.l.b16 %v440
    %v512 = vunpack.c.l.b16 %v441
    %v513 = vunpack.c.l.b16 %v442
    %v514 = vunpack.c.l.b16 %v443
    %v515 = vunpack.c.l.b16 %v444
    %v516 = vunpack.c.l.b16 %v445
    %v517 = vunpack.c.l.b16 %v446
    %v518 = vunpack.c.l.b16 %v447
    %v519 = vunpack.c.l.b16 %v448
    %v520 = vunpack.c.l.b16 %v449
    %v521 = vunpack.c.l.b16 %v450
    %v522 = vunpack.c.l.b16 %v451
    %v523 = vunpack.c.l.b16 %v452
    %v524 = vunpack.c.l.b16 %v453
    %v525 = vunpack.c.l.b16 %v454
    %v526 = vunpack.c.l.b16 %v455
    %v527 = vunpack.c.l.b16 %v456
    %v528 = vunpack.c.l.b16 %v457
    %v529 = vunpack.c.l.b16 %v458
    %v530 = vunpack.c.l.b16 %v459
    %v531 = vunpack.c.l.b16 %v460
    %v532 = vunpack.c.l.b16 %v461
    %v533 = vunpack.c.l.b16 %v462
    %v534 = vunpack.c.l.b16 %v463
    %v535 = vunpack.c.l.b16 %v464
    %v536 = vunpack.c.l.b16 %v465
    %v537 = vunpack.c.l.b16 %v466
    %v538 = vunpack.c.l.b16 %v467
    %v539 = vunpack.c.l.b16 %v468
    %v540 = vunpack.c.l.b16 %v469
    %v541 = vunpack.c.l.b16 %v470
    %v542 = vunpack.c.l.b16 %v471
    %v543 = vpack.c.b16 %v512, %v511
    %v544 = vpack.c.b16 %v514, %v513
    %v545 = vpack.c.b16 %v516, %v515
    %v546 = vpack.c.b16 %v518, %v517
    %v547 = vpack.c.b16 %v520, %v519
    %v548 = vpack.c.b16 %v522, %v521
    %v549 = vpack.c.b16 %v524, %v523
    %v550 = vpack.c.b16 %v526, %v525
    %v551 = vpack.c.b16 %v528, %v527
    %v552 = vpack.c.b16 %v530, %v529
    %v553 = vpack.c.b16 %v532, %v531
    %v554 = vpack.c.b16 %v534, %v533
    %v555 = vpack.c.b16 %v536, %v535
    %v556 = vpack.c.b16 %v538, %v537
    %v557 = vpack.c.b16 %v540, %v539
    %v558 = vpack.c.b16 %v542, %v541
    %575 = vmatprep.subr.bf16.mxu0 0
    %576 = vmatpush1.bf16.msra.mxu0 %v550
    %577 = vmatprep.subr.bf16.mxu0 0
    %578 = vmatpush1.bf16.msra.mxu0 %v549
    %579 = vmatprep.subr.bf16.mxu0 0
    %580 = vmatpush1.bf16.msra.mxu0 %v548
    %581 = vmatprep.subr.bf16.mxu0 0
    %582 = vmatpush1.bf16.msra.mxu0 %v547
    %583 = vmatprep.subr.bf16.mxu0 0
    %584 = vmatpush1.bf16.msra.mxu0 %v546
    %585 = vmatprep.subr.bf16.mxu0 0
    %586 = vmatpush1.bf16.msra.mxu0 %v545
    %587 = vmatprep.subr.bf16.mxu0 0
    %588 = vmatpush1.bf16.msra.mxu0 %v544
    %589 = vmatprep.subr.bf16.mxu0 0
    %590 = vmatpush1.bf16.msra.mxu0 %v543
    %591 = vmatprep.subr.bf16.mxu0 0
    %592 = vmatpush2.bf16.msra.mxu0 %v558
    %593 = vmatprep.subr.bf16.mxu0 0
    %594 = vmatpush2.bf16.msra.mxu0 %v557
    %595 = vmatprep.subr.bf16.mxu0 0
    %596 = vmatpush2.bf16.msra.mxu0 %v556
    %597 = vmatprep.subr.bf16.mxu0 0
    %598 = vmatpush2.bf16.msra.mxu0 %v555
    %599 = vmatprep.subr.bf16.mxu0 0
    %600 = vmatpush2.bf16.msra.mxu0 %v554
    %601 = vmatprep.subr.bf16.mxu0 0
    %602 = vmatpush2.bf16.msra.mxu0 %v553
    %603 = vmatprep.subr.bf16.mxu0 0
    %604 = vmatpush2.bf16.msra.mxu0 %v552
    %605 = vmatprep.subr.bf16.mxu0 0
    %606 = vmatpush2.bf16.msra.mxu0 %v551
    %607 = vmatprep.mubr.bf16.mxu0 %v439
    %608 = vmatmul.mubr.bf16.gmra.mxu0 %v438
    %v609 = vpop.f32.mrf.mxu0
    %v610 = vadd.f32 %v477, %v609
    %v611 = vpop.f32.mrf.mxu0
    %v612 = vpop.f32.mrf.mxu0
    %v613 = vpop.f32.mrf.mxu0
    %614 = vdwg.mxu0
    %v615 = vpack.c.bf16 %v610, %v610
    %v616 = vld [vmem:[#allocation12] sm:$0xff]
    %v617 = vld [vmem:[#allocation12 + $0x8] sm:$0xff]
    %v618 = vld [vmem:[#allocation12 + $0x10] sm:$0xff]
    %v619 = vld [vmem:[#allocation12 + $0x18] sm:$0xff]
    %v620 = vld [vmem:[#allocation12 + $0x20] sm:$0xff]
    %v621 = vld [vmem:[#allocation12 + $0x28] sm:$0xff]
    %v622 = vld [vmem:[#allocation12 + $0x30] sm:$0xff]
    %v623 = vld [vmem:[#allocation12 + $0x38] sm:$0xff]
    %v624 = vld [vmem:[#allocation12 + $0x40] sm:$0xff]
    %v625 = vld [vmem:[#allocation12 + $0x48] sm:$0xff]
    %v626 = vld [vmem:[#allocation12 + $0x50] sm:$0xff]
    %v627 = vld [vmem:[#allocation12 + $0x58] sm:$0xff]
    %v628 = vld [vmem:[#allocation12 + $0x60] sm:$0xff]
    %v629 = vld [vmem:[#allocation12 + $0x68] sm:$0xff]
    %v630 = vld [vmem:[#allocation12 + $0x70] sm:$0xff]
    %v631 = vld [vmem:[#allocation12 + $0x78] sm:$0xff]
    %v632 = vld [vmem:[%s8] sm:$0xff]
    %v634 = vlaneseq
    %v635 = vshrl.u32 %v634, 7
    %v636 = vsub.s32 0, %v635
    %v637 = vrot.slane %v632, %v636
    %v638 = vlaneseq
    %v639 = vshrl.u32 %v638, 7
    %v640 = vsub.s32 1, %v639
    %v641 = vrot.slane %v632, %v640
    %v642 = vlaneseq
    %v643 = vshrl.u32 %v642, 7
    %v644 = vsub.s32 2, %v643
    %v645 = vrot.slane %v632, %v644
    %v646 = vlaneseq
    %v647 = vshrl.u32 %v646, 7
    %v648 = vsub.s32 3, %v647
    %v649 = vrot.slane %v632, %v648
    %v650 = vlaneseq
    %v651 = vshrl.u32 %v650, 7
    %v652 = vsub.s32 4, %v651
    %v653 = vrot.slane %v632, %v652
    %v654 = vlaneseq
    %v655 = vshrl.u32 %v654, 7
    %v656 = vsub.s32 5, %v655
    %v657 = vrot.slane %v632, %v656
    %v658 = vlaneseq
    %v659 = vshrl.u32 %v658, 7
    %v660 = vsub.s32 6, %v659
    %v661 = vrot.slane %v632, %v660
    %v662 = vlaneseq
    %v663 = vshrl.u32 %v662, 7
    %v664 = vsub.s32 7, %v663
    %v665 = vrot.slane %v632, %v664
    %v690 = vunpack.c.l.b16 %v616
    %v691 = vunpack.c.h.b16 %v616
    %v692 = vunpack.c.l.b16 %v617
    %v693 = vunpack.c.h.b16 %v617
    %v694 = vunpack.c.l.b16 %v618
    %v695 = vunpack.c.h.b16 %v618
    %v696 = vunpack.c.l.b16 %v619
    %v697 = vunpack.c.h.b16 %v619
    %v698 = vunpack.c.l.b16 %v620
    %v699 = vunpack.c.h.b16 %v620
    %v700 = vunpack.c.l.b16 %v621
    %v701 = vunpack.c.h.b16 %v621
    %v702 = vunpack.c.l.b16 %v622
    %v703 = vunpack.c.h.b16 %v622
    %v704 = vunpack.c.l.b16 %v623
    %v705 = vunpack.c.h.b16 %v623
    %v706 = vunpack.c.l.b16 %v624
    %v707 = vunpack.c.h.b16 %v624
    %v708 = vunpack.c.l.b16 %v625
    %v709 = vunpack.c.h.b16 %v625
    %v710 = vunpack.c.l.b16 %v626
    %v711 = vunpack.c.h.b16 %v626
    %v712 = vunpack.c.l.b16 %v627
    %v713 = vunpack.c.h.b16 %v627
    %v714 = vunpack.c.l.b16 %v628
    %v715 = vunpack.c.h.b16 %v628
    %v716 = vunpack.c.l.b16 %v629
    %v717 = vunpack.c.h.b16 %v629
    %v718 = vunpack.c.l.b16 %v630
    %v719 = vunpack.c.h.b16 %v630
    %v720 = vunpack.c.l.b16 %v631
    %v721 = vunpack.c.h.b16 %v631
    %v722 = vpack.c.b16 %v698, %v690
    %v723 = vpack.c.b16 %v699, %v691
    %v724 = vpack.c.b16 %v700, %v692
    %v725 = vpack.c.b16 %v701, %v693
    %v726 = vpack.c.b16 %v702, %v694
    %v727 = vpack.c.b16 %v703, %v695
    %v728 = vpack.c.b16 %v704, %v696
    %v729 = vpack.c.b16 %v705, %v697
    %v730 = vpack.c.b16 %v714, %v706
    %v731 = vpack.c.b16 %v715, %v707
    %v732 = vpack.c.b16 %v716, %v708
    %v733 = vpack.c.b16 %v717, %v709
    %v734 = vpack.c.b16 %v718, %v710
    %v735 = vpack.c.b16 %v719, %v711
    %v736 = vpack.c.b16 %v720, %v712
    %v737 = vpack.c.b16 %v721, %v713
    %v755 = vsel %vm244, %v615, 0
    %757 = vmatprep.subr.bf16.mxu0 0
    %758 = vmatpush1.bf16.msra.mxu0 0
    %759 = vmatprep.subr.bf16.mxu0 0
    %760 = vmatpush1.bf16.msra.mxu0 0
    %761 = vmatprep.subr.bf16.mxu0 0
    %762 = vmatpush1.bf16.msra.mxu0 0
    %763 = vmatprep.subr.bf16.mxu0 0
    %764 = vmatpush1.bf16.msra.mxu0 0
    %765 = vmatprep.subr.bf16.mxu0 0
    %766 = vmatpush1.bf16.msra.mxu0 0
    %767 = vmatprep.subr.bf16.mxu0 0
    %768 = vmatpush1.bf16.msra.mxu0 0
    %769 = vmatprep.subr.bf16.mxu0 %v731
    %770 = vmatpush1.bf16.msra.mxu0 %v730
    %771 = vmatprep.subr.bf16.mxu0 %v723
    %772 = vmatpush1.bf16.msra.mxu0 %v722
    %773 = vmatprep.subr.bf16.mxu0 0
    %774 = vmatpush2.bf16.msra.mxu0 0
    %775 = vmatprep.subr.bf16.mxu0 0
    %776 = vmatpush2.bf16.msra.mxu0 0
    %777 = vmatprep.subr.bf16.mxu0 0
    %778 = vmatpush2.bf16.msra.mxu0 0
    %779 = vmatprep.subr.bf16.mxu0 0
    %780 = vmatpush2.bf16.msra.mxu0 0
    %781 = vmatprep.subr.bf16.mxu0 0
    %782 = vmatpush2.bf16.msra.mxu0 0
    %783 = vmatprep.subr.bf16.mxu0 0
    %784 = vmatpush2.bf16.msra.mxu0 0
    %785 = vmatprep.subr.bf16.mxu0 0
    %786 = vmatpush2.bf16.msra.mxu0 0
    %787 = vmatprep.subr.bf16.mxu0 0
    %788 = vmatpush2.bf16.msra.mxu0 0
    %789 = vmatprep.mubr.bf16.mxu0 0
    %790 = vmatmul.mubr.bf16.gmra.mxu0 %v755
    %v791 = vpop.f32.mrf.mxu0
    %v792 = vadd.f32 %v637, %v791
    %v793 = vpop.f32.mrf.mxu0
    %v794 = vadd.f32 %v641, %v793
    %v795 = vpop.f32.mrf.mxu0
    %v796 = vpop.f32.mrf.mxu0
    %797 = vdwg.mxu0
    %798 = vmatprep.subr.bf16.mxu0 0
    %799 = vmatpush1.bf16.msra.mxu0 0
    %800 = vmatprep.subr.bf16.mxu0 0
    %801 = vmatpush1.bf16.msra.mxu0 0
    %802 = vmatprep.subr.bf16.mxu0 0
    %803 = vmatpush1.bf16.msra.mxu0 0
    %804 = vmatprep.subr.bf16.mxu0 0
    %805 = vmatpush1.bf16.msra.mxu0 0
    %806 = vmatprep.subr.bf16.mxu0 0
    %807 = vmatpush1.bf16.msra.mxu0 0
    %808 = vmatprep.subr.bf16.mxu0 0
    %809 = vmatpush1.bf16.msra.mxu0 0
    %810 = vmatprep.subr.bf16.mxu0 %v733
    %811 = vmatpush1.bf16.msra.mxu0 %v732
    %812 = vmatprep.subr.bf16.mxu0 %v725
    %813 = vmatpush1.bf16.msra.mxu0 %v724
    %814 = vmatprep.subr.bf16.mxu0 0
    %815 = vmatpush2.bf16.msra.mxu0 0
    %816 = vmatprep.subr.bf16.mxu0 0
    %817 = vmatpush2.bf16.msra.mxu0 0
    %818 = vmatprep.subr.bf16.mxu0 0
    %819 = vmatpush2.bf16.msra.mxu0 0
    %820 = vmatprep.subr.bf16.mxu0 0
    %821 = vmatpush2.bf16.msra.mxu0 0
    %822 = vmatprep.subr.bf16.mxu0 0
    %823 = vmatpush2.bf16.msra.mxu0 0
    %824 = vmatprep.subr.bf16.mxu0 0
    %825 = vmatpush2.bf16.msra.mxu0 0
    %826 = vmatprep.subr.bf16.mxu0 0
    %827 = vmatpush2.bf16.msra.mxu0 0
    %828 = vmatprep.subr.bf16.mxu0 0
    %829 = vmatpush2.bf16.msra.mxu0 0
    %830 = vmatprep.mubr.bf16.mxu0 0
    %831 = vmatmul.mubr.bf16.gmra.mxu0 %v755
    %v832 = vpop.f32.mrf.mxu0
    %v833 = vadd.f32 %v645, %v832
    %v834 = vpop.f32.mrf.mxu0
    %v835 = vadd.f32 %v649, %v834
    %v836 = vpop.f32.mrf.mxu0
    %v837 = vpop.f32.mrf.mxu0
    %838 = vdwg.mxu0
    %839 = vmatprep.subr.bf16.mxu0 0
    %840 = vmatpush1.bf16.msra.mxu0 0
    %841 = vmatprep.subr.bf16.mxu0 0
    %842 = vmatpush1.bf16.msra.mxu0 0
    %843 = vmatprep.subr.bf16.mxu0 0
    %844 = vmatpush1.bf16.msra.mxu0 0
    %845 = vmatprep.subr.bf16.mxu0 0
    %846 = vmatpush1.bf16.msra.mxu0 0
    %847 = vmatprep.subr.bf16.mxu0 0
    %848 = vmatpush1.bf16.msra.mxu0 0
    %849 = vmatprep.subr.bf16.mxu0 0
    %850 = vmatpush1.bf16.msra.mxu0 0
    %851 = vmatprep.subr.bf16.mxu0 %v735
    %852 = vmatpush1.bf16.msra.mxu0 %v734
    %853 = vmatprep.subr.bf16.mxu0 %v727
    %854 = vmatpush1.bf16.msra.mxu0 %v726
    %855 = vmatprep.subr.bf16.mxu0 0
    %856 = vmatpush2.bf16.msra.mxu0 0
    %857 = vmatprep.subr.bf16.mxu0 0
    %858 = vmatpush2.bf16.msra.mxu0 0
    %859 = vmatprep.subr.bf16.mxu0 0
    %860 = vmatpush2.bf16.msra.mxu0 0
    %861 = vmatprep.subr.bf16.mxu0 0
    %862 = vmatpush2.bf16.msra.mxu0 0
    %863 = vmatprep.subr.bf16.mxu0 0
    %864 = vmatpush2.bf16.msra.mxu0 0
    %865 = vmatprep.subr.bf16.mxu0 0
    %866 = vmatpush2.bf16.msra.mxu0 0
    %867 = vmatprep.subr.bf16.mxu0 0
    %868 = vmatpush2.bf16.msra.mxu0 0
    %869 = vmatprep.subr.bf16.mxu0 0
    %870 = vmatpush2.bf16.msra.mxu0 0
    %871 = vmatprep.mubr.bf16.mxu0 0
    %872 = vmatmul.mubr.bf16.gmra.mxu0 %v755
    %v873 = vpop.f32.mrf.mxu0
    %v874 = vadd.f32 %v653, %v873
    %v875 = vpop.f32.mrf.mxu0
    %v876 = vadd.f32 %v657, %v875
    %v877 = vpop.f32.mrf.mxu0
    %v878 = vpop.f32.mrf.mxu0
    %879 = vdwg.mxu0
    %880 = vmatprep.subr.bf16.mxu0 0
    %881 = vmatpush1.bf16.msra.mxu0 0
    %882 = vmatprep.subr.bf16.mxu0 0
    %883 = vmatpush1.bf16.msra.mxu0 0
    %884 = vmatprep.subr.bf16.mxu0 0
    %885 = vmatpush1.bf16.msra.mxu0 0
    %886 = vmatprep.subr.bf16.mxu0 0
    %887 = vmatpush1.bf16.msra.mxu0 0
    %888 = vmatprep.subr.bf16.mxu0 0
    %889 = vmatpush1.bf16.msra.mxu0 0
    %890 = vmatprep.subr.bf16.mxu0 0
    %891 = vmatpush1.bf16.msra.mxu0 0
    %892 = vmatprep.subr.bf16.mxu0 %v737
    %893 = vmatpush1.bf16.msra.mxu0 %v736
    %894 = vmatprep.subr.bf16.mxu0 %v729
    %895 = vmatpush1.bf16.msra.mxu0 %v728
    %896 = vmatprep.subr.bf16.mxu0 0
    %897 = vmatpush2.bf16.msra.mxu0 0
    %898 = vmatprep.subr.bf16.mxu0 0
    %899 = vmatpush2.bf16.msra.mxu0 0
    %900 = vmatprep.subr.bf16.mxu0 0
    %901 = vmatpush2.bf16.msra.mxu0 0
    %902 = vmatprep.subr.bf16.mxu0 0
    %903 = vmatpush2.bf16.msra.mxu0 0
    %904 = vmatprep.subr.bf16.mxu0 0
    %905 = vmatpush2.bf16.msra.mxu0 0
    %906 = vmatprep.subr.bf16.mxu0 0
    %907 = vmatpush2.bf16.msra.mxu0 0
    %908 = vmatprep.subr.bf16.mxu0 0
    %909 = vmatpush2.bf16.msra.mxu0 0
    %910 = vmatprep.subr.bf16.mxu0 0
    %911 = vmatpush2.bf16.msra.mxu0 0
    %912 = vmatprep.mubr.bf16.mxu0 0
    %913 = vmatmul.mubr.bf16.gmra.mxu0 %v755
    %v914 = vpop.f32.mrf.mxu0
    %v915 = vadd.f32 %v661, %v914
    %v916 = vpop.f32.mrf.mxu0
    %v917 = vadd.f32 %v665, %v916
    %v918 = vpop.f32.mrf.mxu0
    %v919 = vpop.f32.mrf.mxu0
    %920 = vdwg.mxu0
    %vm921 = vcmask 1043456
    %v922 = vsel %vm921, %v792, 0.0
    %v923 = vrot.slane %v922, 4
    %v924 = vadd.f32 %v922, %v923
    %v925 = vrot.slane %v924, 2
    %v926 = vadd.f32 %v924, %v925
    %v927 = vrot.slane %v926, 1
    %v928 = vadd.f32 %v926, %v927
    %v929 = vsel %vm921, %v794, 0.0
    %v930 = vrot.slane %v929, 4
    %v931 = vadd.f32 %v929, %v930
    %v932 = vrot.slane %v931, 2
    %v933 = vadd.f32 %v931, %v932
    %v934 = vrot.slane %v933, 1
    %v935 = vadd.f32 %v933, %v934
    %v936 = vsel %vm921, %v833, 0.0
    %v937 = vrot.slane %v936, 4
    %v938 = vadd.f32 %v936, %v937
    %v939 = vrot.slane %v938, 2
    %v940 = vadd.f32 %v938, %v939
    %v941 = vrot.slane %v940, 1
    %v942 = vadd.f32 %v940, %v941
    %v943 = vsel %vm921, %v835, 0.0
    %v944 = vrot.slane %v943, 4
    %v945 = vadd.f32 %v943, %v944
    %v946 = vrot.slane %v945, 2
    %v947 = vadd.f32 %v945, %v946
    %v948 = vrot.slane %v947, 1
    %v949 = vadd.f32 %v947, %v948
    %v950 = vsel %vm921, %v874, 0.0
    %v951 = vrot.slane %v950, 4
    %v952 = vadd.f32 %v950, %v951
    %v953 = vrot.slane %v952, 2
    %v954 = vadd.f32 %v952, %v953
    %v955 = vrot.slane %v954, 1
    %v956 = vadd.f32 %v954, %v955
    %v957 = vsel %vm921, %v876, 0.0
    %v958 = vrot.slane %v957, 4
    %v959 = vadd.f32 %v957, %v958
    %v960 = vrot.slane %v959, 2
    %v961 = vadd.f32 %v959, %v960
    %v962 = vrot.slane %v961, 1
    %v963 = vadd.f32 %v961, %v962
    %v964 = vsel %vm921, %v915, 0.0
    %v965 = vrot.slane %v964, 4
    %v966 = vadd.f32 %v964, %v965
    %v967 = vrot.slane %v966, 2
    %v968 = vadd.f32 %v966, %v967
    %v969 = vrot.slane %v968, 1
    %v970 = vadd.f32 %v968, %v969
    %v971 = vsel %vm921, %v917, 0.0
    %v972 = vrot.slane %v971, 4
    %v973 = vadd.f32 %v971, %v972
    %v974 = vrot.slane %v973, 2
    %v975 = vadd.f32 %v973, %v974
    %v976 = vrot.slane %v975, 1
    %v977 = vadd.f32 %v975, %v976
    %979 = vrot.lane.b32.xlu0 %v928, 64
    %v980 = vpop.permute.xlu0 %979
    %v982 = vadd.f32 %v928, %v980
    %v983 = vadd.f32 %v982, %v935
    %985 = vrot.lane.b32.xlu0 %v935, 64
    %v986 = vpop.permute.xlu0 %985
    %v988 = vadd.f32 %v983, %v986
    %v989 = vadd.f32 %v988, %v942
    %991 = vrot.lane.b32.xlu0 %v942, 64
    %v992 = vpop.permute.xlu0 %991
    %v994 = vadd.f32 %v989, %v992
    %v995 = vadd.f32 %v994, %v949
    %997 = vrot.lane.b32.xlu0 %v949, 64
    %v998 = vpop.permute.xlu0 %997
    %v1000 = vadd.f32 %v995, %v998
    %v1001 = vadd.f32 %v1000, %v956
    %1003 = vrot.lane.b32.xlu0 %v956, 64
    %v1004 = vpop.permute.xlu0 %1003
    %v1006 = vadd.f32 %v1001, %v1004
    %v1007 = vadd.f32 %v1006, %v963
    %1009 = vrot.lane.b32.xlu0 %v963, 64
    %v1010 = vpop.permute.xlu0 %1009
    %v1012 = vadd.f32 %v1007, %v1010
    %v1013 = vadd.f32 %v1012, %v970
    %1015 = vrot.lane.b32.xlu0 %v970, 64
    %v1016 = vpop.permute.xlu0 %1015
    %v1018 = vadd.f32 %v1013, %v1016
    %v1019 = vadd.f32 %v1018, %v977
    %1021 = vrot.lane.b32.xlu0 %v977, 64
    %v1022 = vpop.permute.xlu0 %1021
    %v1024 = vadd.f32 %v1019, %v1022
    %v1025 = vrcp.pop 64.0
    %v1026 = vmul.f32 %v1024, %v1025
    %1028 = vrot.lane.b32.xlu0 %v1026, 64
    %v1029 = vpop.permute.xlu0 %1028
    %vm1031 = vcmask 523264
    %v1032 = vsel %vm1031, %v1026, %v1029
    %v1033 = vlaneseq
    %v1034 = vshrl.u32 %v1033, 7
    %v1035 = vsub.s32 0, %v1034
    %v1036 = vrot.slane %v1032, %v1035
    %v1037 = vsub.f32 %v792, %v1036
    %v1038 = vsub.f32 %v794, %v1036
    %v1039 = vsub.f32 %v833, %v1036
    %v1040 = vsub.f32 %v835, %v1036
    %v1041 = vsub.f32 %v874, %v1036
    %v1042 = vsub.f32 %v876, %v1036
    %v1043 = vsub.f32 %v915, %v1036
    %v1044 = vsub.f32 %v917, %v1036
    %v1045 = vmul.f32 %v1037, %v1037
    %v1046 = vmul.f32 %v1038, %v1038
    %v1047 = vmul.f32 %v1039, %v1039
    %v1048 = vmul.f32 %v1040, %v1040
    %v1049 = vmul.f32 %v1041, %v1041
    %v1050 = vmul.f32 %v1042, %v1042
    %v1051 = vmul.f32 %v1043, %v1043
    %v1052 = vmul.f32 %v1044, %v1044
    %v1053 = vsel %vm921, %v1045, 0.0
    %v1054 = vrot.slane %v1053, 4
    %v1055 = vadd.f32 %v1053, %v1054
    %v1056 = vrot.slane %v1055, 2
    %v1057 = vadd.f32 %v1055, %v1056
    %v1058 = vrot.slane %v1057, 1
    %v1059 = vadd.f32 %v1057, %v1058
    %v1060 = vsel %vm921, %v1046, 0.0
    %v1061 = vrot.slane %v1060, 4
    %v1062 = vadd.f32 %v1060, %v1061
    %v1063 = vrot.slane %v1062, 2
    %v1064 = vadd.f32 %v1062, %v1063
    %v1065 = vrot.slane %v1064, 1
    %v1066 = vadd.f32 %v1064, %v1065
    %v1067 = vsel %vm921, %v1047, 0.0
    %v1068 = vrot.slane %v1067, 4
    %v1069 = vadd.f32 %v1067, %v1068
    %v1070 = vrot.slane %v1069, 2
    %v1071 = vadd.f32 %v1069, %v1070
    %v1072 = vrot.slane %v1071, 1
    %v1073 = vadd.f32 %v1071, %v1072
    %v1074 = vsel %vm921, %v1048, 0.0
    %v1075 = vrot.slane %v1074, 4
    %v1076 = vadd.f32 %v1074, %v1075
    %v1077 = vrot.slane %v1076, 2
    %v1078 = vadd.f32 %v1076, %v1077
    %v1079 = vrot.slane %v1078, 1
    %v1080 = vadd.f32 %v1078, %v1079
    %v1081 = vsel %vm921, %v1049, 0.0
    %v1082 = vrot.slane %v1081, 4
    %v1083 = vadd.f32 %v1081, %v1082
    %v1084 = vrot.slane %v1083, 2
    %v1085 = vadd.f32 %v1083, %v1084
    %v1086 = vrot.slane %v1085, 1
    %v1087 = vadd.f32 %v1085, %v1086
    %v1088 = vsel %vm921, %v1050, 0.0
    %v1089 = vrot.slane %v1088, 4
    %v1090 = vadd.f32 %v1088, %v1089
    %v1091 = vrot.slane %v1090, 2
    %v1092 = vadd.f32 %v1090, %v1091
    %v1093 = vrot.slane %v1092, 1
    %v1094 = vadd.f32 %v1092, %v1093
    %v1095 = vsel %vm921, %v1051, 0.0
    %v1096 = vrot.slane %v1095, 4
    %v1097 = vadd.f32 %v1095, %v1096
    %v1098 = vrot.slane %v1097, 2
    %v1099 = vadd.f32 %v1097, %v1098
    %v1100 = vrot.slane %v1099, 1
    %v1101 = vadd.f32 %v1099, %v1100
    %v1102 = vsel %vm921, %v1052, 0.0
    %v1103 = vrot.slane %v1102, 4
    %v1104 = vadd.f32 %v1102, %v1103
    %v1105 = vrot.slane %v1104, 2
    %v1106 = vadd.f32 %v1104, %v1105
    %v1107 = vrot.slane %v1106, 1
    %v1108 = vadd.f32 %v1106, %v1107
    %1110 = vrot.lane.b32.xlu0 %v1059, 64
    %v1111 = vpop.permute.xlu0 %1110
    %v1113 = vadd.f32 %v1059, %v1111
    %v1114 = vadd.f32 %v1113, %v1066
    %1116 = vrot.lane.b32.xlu0 %v1066, 64
    %v1117 = vpop.permute.xlu0 %1116
    %v1119 = vadd.f32 %v1114, %v1117
    %v1120 = vadd.f32 %v1119, %v1073
    %1122 = vrot.lane.b32.xlu0 %v1073, 64
    %v1123 = vpop.permute.xlu0 %1122
    %v1125 = vadd.f32 %v1120, %v1123
    %v1126 = vadd.f32 %v1125, %v1080
    %1128 = vrot.lane.b32.xlu0 %v1080, 64
    %v1129 = vpop.permute.xlu0 %1128
    %v1131 = vadd.f32 %v1126, %v1129
    %v1132 = vadd.f32 %v1131, %v1087
    %1134 = vrot.lane.b32.xlu0 %v1087, 64
    %v1135 = vpop.permute.xlu0 %1134
    %v1137 = vadd.f32 %v1132, %v1135
    %v1138 = vadd.f32 %v1137, %v1094
    %1140 = vrot.lane.b32.xlu0 %v1094, 64
    %v1141 = vpop.permute.xlu0 %1140
    %v1143 = vadd.f32 %v1138, %v1141
    %v1144 = vadd.f32 %v1143, %v1101
    %1146 = vrot.lane.b32.xlu0 %v1101, 64
    %v1147 = vpop.permute.xlu0 %1146
    %v1149 = vadd.f32 %v1144, %v1147
    %v1150 = vadd.f32 %v1149, %v1108
    %1152 = vrot.lane.b32.xlu0 %v1108, 64
    %v1153 = vpop.permute.xlu0 %1152
    %v1155 = vadd.f32 %v1150, %v1153
    %v1156 = vmul.f32 %v1155, %v1025
    %v1157 = vld [vmem:[%s9] sm:$0x1]
    %v1158 = vadd.f32 %v1156, 1e-05
    %v1159 = vrsqrt.pop %v1158
    %v1160 = vmul.f32 %v1157, %v1159
    %v1162 = vlaneseq
    %v1163 = vshrl.u32 %v1162, 7
    %v1164 = vsub.s32 0, %v1163
    %v1165 = vrot.slane %v1160, %v1164
    %1166 = vrot.lane.b32.xlu0 %v1165, 64
    %v1167 = vpop.permute.xlu0 %1166
    %v1169 = vsel %vm1031, %v1160, %v1167
    %v1170 = vlaneseq
    %v1171 = vshrl.u32 %v1170, 7
    %v1172 = vsub.s32 0, %v1171
    %v1173 = vrot.slane %v1169, %v1172
    %v1174 = vmul.f32 %v1037, %v1173
    %v1175 = vmul.f32 %v1038, %v1173
    %v1176 = vmul.f32 %v1039, %v1173
    %v1177 = vmul.f32 %v1040, %v1173
    %v1178 = vmul.f32 %v1041, %v1173
    %v1179 = vmul.f32 %v1042, %v1173
    %v1180 = vmul.f32 %v1043, %v1173
    %v1181 = vmul.f32 %v1044, %v1173
    %v1182 = vld [vmem:[%s10] sm:$0x1]
    %v1184 = vlaneseq
    %v1185 = vshrl.u32 %v1184, 7
    %v1186 = vsub.s32 0, %v1185
    %v1187 = vrot.slane %v1182, %v1186
    %1188 = vrot.lane.b32.xlu0 %v1187, 64
    %v1189 = vpop.permute.xlu0 %1188
    %v1191 = vsel %vm1031, %v1182, %v1189
    %v1192 = vlaneseq
    %v1193 = vshrl.u32 %v1192, 7
    %v1194 = vsub.s32 0, %v1193
    %v1195 = vrot.slane %v1191, %v1194
    %v1196 = vadd.f32 %v1174, %v1195
    %v1197 = vadd.f32 %v1175, %v1195
    %v1198 = vadd.f32 %v1176, %v1195
    %v1199 = vadd.f32 %v1177, %v1195
    %v1200 = vadd.f32 %v1178, %v1195
    %v1201 = vadd.f32 %v1179, %v1195
    %v1202 = vadd.f32 %v1180, %v1195
    %v1203 = vadd.f32 %v1181, %v1195
    %v1204 = vmax.f32 %v1196, 0.0
    %v1205 = vmax.f32 %v1197, 0.0
    %v1206 = vmax.f32 %v1198, 0.0
    %v1207 = vmax.f32 %v1199, 0.0
    %v1208 = vmax.f32 %v1200, 0.0
    %v1209 = vmax.f32 %v1201, 0.0
    %v1210 = vmax.f32 %v1202, 0.0
    %v1211 = vmax.f32 %v1203, 0.0
    %v1212 = vlaneseq
    %vm1213 = vcmp.ge.s32.totalorder %v1212, 0
    %vm1214 = vcmp.lt.s32.totalorder %v1212, 256
    %vm1215 = vmand %vm1213, %vm1214
    %1216 = vst.msk [vmem:[#allocation2] ss:$8 sm:$0x3] %vm1215, 0.0
    %1217 = vst.msk [vmem:[#allocation2] ss:$8 sm:$0x0] %vm1215, 0.0
    %s1218 = scalar_lea.vmem [#allocation2], 16
    %1219 = vst.msk [vmem:[%s1218] ss:$8 sm:$0x3] %vm1215, 0.0
    %1220 = vst.msk [vmem:[%s1218] ss:$8 sm:$0x0] %vm1215, 0.0
    %s1221 = scalar_lea.vmem [#allocation2], 32
    %1222 = vst.msk [vmem:[%s1221] ss:$8 sm:$0x3] %vm1215, 0.0
    %1223 = vst.msk [vmem:[%s1221] ss:$8 sm:$0x0] %vm1215, 0.0
    %s1224 = scalar_lea.vmem [#allocation2], 48
    %1225 = vst.msk [vmem:[%s1224] ss:$8 sm:$0x3] %vm1215, 0.0
    %1226 = vst.msk [vmem:[%s1224] ss:$8 sm:$0x0] %vm1215, 0.0
    %s1227 = scalar_lea.vmem [#allocation2], 5
    %1228 = vst.msk [vmem:[%s1227] ss:$8 sm:$0x3] %vm1215, 0.0
    %1229 = vst.msk [vmem:[%s1227] ss:$8 sm:$0x0] %vm1215, 0.0
    %s1230 = scalar_lea.vmem [#allocation2], 21
    %1231 = vst.msk [vmem:[%s1230] ss:$8 sm:$0x3] %vm1215, 0.0
    %1232 = vst.msk [vmem:[%s1230] ss:$8 sm:$0x0] %vm1215, 0.0
    %s1233 = scalar_lea.vmem [#allocation2], 37
    %1234 = vst.msk [vmem:[%s1233] ss:$8 sm:$0x3] %vm1215, 0.0
    %1235 = vst.msk [vmem:[%s1233] ss:$8 sm:$0x0] %vm1215, 0.0
    %s1236 = scalar_lea.vmem [#allocation2], 53
    %1237 = vst.msk [vmem:[%s1236] ss:$8 sm:$0x3] %vm1215, 0.0
    %1238 = vst.msk [vmem:[%s1236] ss:$8 sm:$0x0] %vm1215, 0.0
    %v1247 = vcombine.low %v1204, %v1205
    %v1248 = vcombine.low %v1206, %v1207
    %v1249 = vcombine.low %v1208, %v1209
    %v1250 = vcombine.low %v1210, %v1211
    %v1255 = vcombine.low %v1247, %v1249
    %v1256 = vcombine.high %v1247, %v1249
    %v1258 = vunpack.c.l.s4 1983009808
    %v1259 = vunpack.c.0.s8 %v1258
    %v1260 = vlaneseq
    %v1261 = vshrl.u32 %v1260, 7
    %v1262 = vsub.s32 %v1259, %v1261
    %v1263 = vrot.slane %v1255, %v1262
    %v1265 = vunpack.c.l.s4 1983009808
    %v1266 = vunpack.c.0.s8 %v1265
    %v1267 = vlaneseq
    %v1268 = vshrl.u32 %v1267, 7
    %v1269 = vsub.s32 %v1266, %v1268
    %v1270 = vrot.slane %v1256, %v1269
    %v1271 = vcombine.low %v1248, %v1250
    %v1272 = vcombine.high %v1248, %v1250
    %v1274 = vunpack.c.l.s4 1983009808
    %v1275 = vunpack.c.0.s8 %v1274
    %v1276 = vlaneseq
    %v1277 = vshrl.u32 %v1276, 7
    %v1278 = vsub.s32 %v1275, %v1277
    %v1279 = vrot.slane %v1271, %v1278
    %v1281 = vunpack.c.l.s4 1983009808
    %v1282 = vunpack.c.0.s8 %v1281
    %v1283 = vlaneseq
    %v1284 = vshrl.u32 %v1283, 7
    %v1285 = vsub.s32 %v1282, %v1284
    %v1286 = vrot.slane %v1272, %v1285
    %v1287 = vcombine.low %v1263, %v1279
    %v1288 = vcombine.high %v1263, %v1279
    %v1290 = vunpack.c.l.s4 1934713408
    %v1291 = vunpack.c.0.s8 %v1290
    %v1292 = vlaneseq
    %v1293 = vshrl.u32 %v1292, 7
    %v1294 = vsub.s32 %v1291, %v1293
    %v1295 = vrot.slane %v1287, %v1294
    %v1297 = vunpack.c.l.s4 1934713408
    %v1298 = vunpack.c.0.s8 %v1297
    %v1299 = vlaneseq
    %v1300 = vshrl.u32 %v1299, 7
    %v1301 = vsub.s32 %v1298, %v1300
    %v1302 = vrot.slane %v1288, %v1301
    %v1303 = vcombine.low %v1270, %v1286
    %v1304 = vcombine.high %v1270, %v1286
    %v1306 = vunpack.c.l.s4 1934713408
    %v1307 = vunpack.c.0.s8 %v1306
    %v1308 = vlaneseq
    %v1309 = vshrl.u32 %v1308, 7
    %v1310 = vsub.s32 %v1307, %v1309
    %v1311 = vrot.slane %v1303, %v1310
    %v1313 = vunpack.c.l.s4 1934713408
    %v1314 = vunpack.c.0.s8 %v1313
    %v1315 = vlaneseq
    %v1316 = vshrl.u32 %v1315, 7
    %v1317 = vsub.s32 %v1314, %v1316
    %v1318 = vrot.slane %v1304, %v1317
    %v1319 = vcombine.low %v1295, %v1311
    %v1320 = vcombine.high %v1295, %v1311
    %v1321 = vcombine.low %v1302, %v1318
    %v1322 = vcombine.high %v1302, %v1318
    %v1327 = vcombine.high %v1319, %v1319
    %v1328 = vcombine.high %v1320, %v1320
    %v1329 = vcombine.high %v1321, %v1321
    %v1330 = vcombine.high %v1322, %v1322
    %v1331 = vrot.slane %v1319, 7
    %v1332 = vrot.slane %v1327, 7
    %v1333 = vrot.slane %v1320, 7
    %v1334 = vrot.slane %v1328, 7
    %v1335 = vrot.slane %v1321, 7
    %v1336 = vrot.slane %v1329, 7
    %v1337 = vrot.slane %v1322, 7
    %v1338 = vrot.slane %v1330, 7
    %1347 = vst [vmem:[#allocation2] sm:$0x1e] %v1331
    %1348 = vst [vmem:[#allocation2 + $0x8] sm:$0x1e] %v1332
    %1349 = vst [vmem:[#allocation2 + $0x10] sm:$0x1e] %v1333
    %1350 = vst [vmem:[#allocation2 + $0x18] sm:$0x1e] %v1334
    %1351 = vst [vmem:[#allocation2 + $0x20] sm:$0x1e] %v1335
    %1352 = vst [vmem:[#allocation2 + $0x28] sm:$0x1e] %v1336
    %1353 = vst [vmem:[#allocation2 + $0x30] sm:$0x1e] %v1337
    %1354 = vst [vmem:[#allocation2 + $0x38] sm:$0x1e] %v1338
    %v1355 = vld [vmem:[%s13] sm:$0x3]
    %v1356 = vld [vmem:[#allocation2] sm:$0x3f]
    %v1357 = vld [vmem:[#allocation2 + $0x8] sm:$0x3f]
    %v1358 = vld [vmem:[#allocation2 + $0x10] sm:$0x3f]
    %v1359 = vld [vmem:[#allocation2 + $0x18] sm:$0x3f]
    %v1360 = vld [vmem:[#allocation2 + $0x20] sm:$0x3f]
    %v1361 = vld [vmem:[#allocation2 + $0x28] sm:$0x3f]
    %v1362 = vld [vmem:[#allocation2 + $0x30] sm:$0x3f]
    %v1363 = vld [vmem:[#allocation2 + $0x38] sm:$0x3f]
    %v1364 = vld [vmem:[#allocation13] sm:$0xff]
    %v1365 = vld [vmem:[#allocation13 + $0x8] sm:$0xff]
    %v1366 = vld [vmem:[#allocation13 + $0x10] sm:$0xff]
    %v1367 = vld [vmem:[#allocation13 + $0x18] sm:$0xff]
    %v1368 = vld [vmem:[#allocation13 + $0x20] sm:$0xff]
    %v1369 = vld [vmem:[#allocation13 + $0x28] sm:$0xff]
    %v1370 = vld [vmem:[#allocation13 + $0x30] sm:$0xff]
    %v1371 = vld [vmem:[#allocation13 + $0x38] sm:$0xff]
    %v1372 = vld [vmem:[#allocation13 + $0x40] sm:$0xff]
    %v1373 = vld [vmem:[#allocation13 + $0x48] sm:$0xff]
    %v1374 = vld [vmem:[#allocation13 + $0x50] sm:$0xff]
    %v1375 = vld [vmem:[#allocation13 + $0x58] sm:$0xff]
    %v1376 = vld [vmem:[#allocation13 + $0x60] sm:$0xff]
    %v1377 = vld [vmem:[#allocation13 + $0x68] sm:$0xff]
    %v1378 = vld [vmem:[#allocation13 + $0x70] sm:$0xff]
    %v1379 = vld [vmem:[#allocation13 + $0x78] sm:$0xff]
    %v1380 = vld [vmem:[#allocation13 + $0x80] sm:$0xff]
    %v1381 = vld [vmem:[#allocation13 + $0x88] sm:$0xff]
    %v1382 = vld [vmem:[#allocation13 + $0x90] sm:$0xff]
    %v1383 = vld [vmem:[#allocation13 + $0x98] sm:$0xff]
    %v1384 = vld [vmem:[#allocation13 + $0xa0] sm:$0xff]
    %v1385 = vld [vmem:[#allocation13 + $0xa8] sm:$0xff]
    %v1386 = vld [vmem:[#allocation13 + $0xb0] sm:$0xff]
    %v1387 = vld [vmem:[#allocation13 + $0xb8] sm:$0xff]
    %v1388 = vld [vmem:[#allocation13 + $0xc0] sm:$0xff]
    %v1389 = vld [vmem:[#allocation13 + $0xc8] sm:$0xff]
    %v1390 = vld [vmem:[#allocation13 + $0xd0] sm:$0xff]
    %v1391 = vld [vmem:[#allocation13 + $0xd8] sm:$0xff]
    %v1392 = vld [vmem:[#allocation13 + $0xe0] sm:$0xff]
    %v1393 = vld [vmem:[#allocation13 + $0xe8] sm:$0xff]
    %v1394 = vld [vmem:[#allocation13 + $0xf0] sm:$0xff]
    %v1395 = vld [vmem:[#allocation13 + $0xf8] sm:$0xff]
    %v1396 = vld [vmem:[#allocation13 + $0x100] sm:$0xff]
    %v1397 = vld [vmem:[#allocation13 + $0x108] sm:$0xff]
    %v1398 = vld [vmem:[#allocation13 + $0x110] sm:$0xff]
    %v1399 = vld [vmem:[#allocation13 + $0x118] sm:$0xff]
    %v1400 = vld [vmem:[#allocation13 + $0x120] sm:$0xff]
    %v1401 = vld [vmem:[#allocation13 + $0x128] sm:$0xff]
    %v1402 = vld [vmem:[#allocation13 + $0x130] sm:$0xff]
    %v1403 = vld [vmem:[#allocation13 + $0x138] sm:$0xff]
    %v1404 = vld [vmem:[#allocation13 + $0x140] sm:$0xff]
    %v1405 = vld [vmem:[#allocation13 + $0x148] sm:$0xff]
    %v1406 = vld [vmem:[#allocation13 + $0x150] sm:$0xff]
    %v1407 = vld [vmem:[#allocation13 + $0x158] sm:$0xff]
    %v1408 = vld [vmem:[#allocation13 + $0x160] sm:$0xff]
    %v1409 = vld [vmem:[#allocation13 + $0x168] sm:$0xff]
    %v1410 = vld [vmem:[#allocation13 + $0x170] sm:$0xff]
    %v1411 = vld [vmem:[#allocation13 + $0x178] sm:$0xff]
    %v1412 = vld [vmem:[#allocation13 + $0x180] sm:$0xff]
    %v1413 = vld [vmem:[#allocation13 + $0x188] sm:$0xff]
    %v1414 = vld [vmem:[#allocation13 + $0x190] sm:$0xff]
    %v1415 = vld [vmem:[#allocation13 + $0x198] sm:$0xff]
    %v1416 = vld [vmem:[#allocation13 + $0x1a0] sm:$0xff]
    %v1417 = vld [vmem:[#allocation13 + $0x1a8] sm:$0xff]
    %v1418 = vld [vmem:[#allocation13 + $0x1b0] sm:$0xff]
    %v1419 = vld [vmem:[#allocation13 + $0x1b8] sm:$0xff]
    %v1420 = vld [vmem:[#allocation13 + $0x1c0] sm:$0xff]
    %v1421 = vld [vmem:[#allocation13 + $0x1c8] sm:$0xff]
    %v1422 = vld [vmem:[#allocation13 + $0x1d0] sm:$0xff]
    %v1423 = vld [vmem:[#allocation13 + $0x1d8] sm:$0xff]
    %v1424 = vld [vmem:[#allocation13 + $0x1e0] sm:$0xff]
    %v1425 = vld [vmem:[#allocation13 + $0x1e8] sm:$0xff]
    %v1426 = vld [vmem:[#allocation13 + $0x1f0] sm:$0xff]
    %v1427 = vld [vmem:[#allocation13 + $0x1f8] sm:$0xff]
    %v1428 = vld [vmem:[#allocation15] sm:$0xff]
    %v1429 = vld [vmem:[#allocation15 + $0x8] sm:$0xff]
    %v1430 = vld [vmem:[#allocation15 + $0x10] sm:$0xff]
    %v1431 = vld [vmem:[#allocation15 + $0x18] sm:$0xff]
    %v1432 = vld [vmem:[#allocation15 + $0x20] sm:$0xff]
    %v1433 = vld [vmem:[#allocation15 + $0x28] sm:$0xff]
    %v1434 = vld [vmem:[#allocation15 + $0x30] sm:$0xff]
    %v1435 = vld [vmem:[#allocation15 + $0x38] sm:$0xff]
    %v1436 = vld [vmem:[#allocation15 + $0x40] sm:$0xff]
    %v1437 = vld [vmem:[#allocation15 + $0x48] sm:$0xff]
    %v1438 = vld [vmem:[#allocation15 + $0x50] sm:$0xff]
    %v1439 = vld [vmem:[#allocation15 + $0x58] sm:$0xff]
    %v1440 = vld [vmem:[#allocation15 + $0x60] sm:$0xff]
    %v1441 = vld [vmem:[#allocation15 + $0x68] sm:$0xff]
    %v1442 = vld [vmem:[#allocation15 + $0x70] sm:$0xff]
    %v1443 = vld [vmem:[#allocation15 + $0x78] sm:$0xff]
    %v1444 = vld [vmem:[#allocation15 + $0x80] sm:$0xff]
    %v1445 = vld [vmem:[#allocation15 + $0x88] sm:$0xff]
    %v1446 = vld [vmem:[#allocation15 + $0x90] sm:$0xff]
    %v1447 = vld [vmem:[#allocation15 + $0x98] sm:$0xff]
    %v1448 = vld [vmem:[#allocation15 + $0xa0] sm:$0xff]
    %v1449 = vld [vmem:[#allocation15 + $0xa8] sm:$0xff]
    %v1450 = vld [vmem:[#allocation15 + $0xb0] sm:$0xff]
    %v1451 = vld [vmem:[#allocation15 + $0xb8] sm:$0xff]
    %v1452 = vld [vmem:[#allocation15 + $0xc0] sm:$0xff]
    %v1453 = vld [vmem:[#allocation15 + $0xc8] sm:$0xff]
    %v1454 = vld [vmem:[#allocation15 + $0xd0] sm:$0xff]
    %v1455 = vld [vmem:[#allocation15 + $0xd8] sm:$0xff]
    %v1456 = vld [vmem:[#allocation15 + $0xe0] sm:$0xff]
    %v1457 = vld [vmem:[#allocation15 + $0xe8] sm:$0xff]
    %v1458 = vld [vmem:[#allocation15 + $0xf0] sm:$0xff]
    %v1459 = vld [vmem:[#allocation15 + $0xf8] sm:$0xff]
    %v1460 = vld [vmem:[#allocation15 + $0x100] sm:$0xff]
    %v1461 = vld [vmem:[#allocation15 + $0x108] sm:$0xff]
    %v1462 = vld [vmem:[#allocation15 + $0x110] sm:$0xff]
    %v1463 = vld [vmem:[#allocation15 + $0x118] sm:$0xff]
    %v1464 = vld [vmem:[#allocation15 + $0x120] sm:$0xff]
    %v1465 = vld [vmem:[#allocation15 + $0x128] sm:$0xff]
    %v1466 = vld [vmem:[#allocation15 + $0x130] sm:$0xff]
    %v1467 = vld [vmem:[#allocation15 + $0x138] sm:$0xff]
    %v1468 = vld [vmem:[#allocation15 + $0x140] sm:$0xff]
    %v1469 = vld [vmem:[#allocation15 + $0x148] sm:$0xff]
    %v1470 = vld [vmem:[#allocation15 + $0x150] sm:$0xff]
    %v1471 = vld [vmem:[#allocation15 + $0x158] sm:$0xff]
    %v1472 = vld [vmem:[#allocation15 + $0x160] sm:$0xff]
    %v1473 = vld [vmem:[#allocation15 + $0x168] sm:$0xff]
    %v1474 = vld [vmem:[#allocation15 + $0x170] sm:$0xff]
    %v1475 = vld [vmem:[#allocation15 + $0x178] sm:$0xff]
    %v1476 = vld [vmem:[#allocation15 + $0x180] sm:$0xff]
    %v1477 = vld [vmem:[#allocation15 + $0x188] sm:$0xff]
    %v1478 = vld [vmem:[#allocation15 + $0x190] sm:$0xff]
    %v1479 = vld [vmem:[#allocation15 + $0x198] sm:$0xff]
    %v1480 = vld [vmem:[#allocation15 + $0x1a0] sm:$0xff]
    %v1481 = vld [vmem:[#allocation15 + $0x1a8] sm:$0xff]
    %v1482 = vld [vmem:[#allocation15 + $0x1b0] sm:$0xff]
    %v1483 = vld [vmem:[#allocation15 + $0x1b8] sm:$0xff]
    %v1484 = vld [vmem:[#allocation15 + $0x1c0] sm:$0xff]
    %v1485 = vld [vmem:[#allocation15 + $0x1c8] sm:$0xff]
    %v1486 = vld [vmem:[#allocation15 + $0x1d0] sm:$0xff]
    %v1487 = vld [vmem:[#allocation15 + $0x1d8] sm:$0xff]
    %v1488 = vld [vmem:[#allocation15 + $0x1e0] sm:$0xff]
    %v1489 = vld [vmem:[#allocation15 + $0x1e8] sm:$0xff]
    %v1490 = vld [vmem:[#allocation15 + $0x1f0] sm:$0xff]
    %v1491 = vld [vmem:[#allocation15 + $0x1f8] sm:$0xff]
    %v1500 = vrot.slane %v1356, 7
    %v1501 = vrot.slane %v1357, 7
    %v1502 = vrot.slane %v1358, 7
    %v1503 = vrot.slane %v1359, 7
    %v1504 = vrot.slane %v1360, 7
    %v1505 = vrot.slane %v1361, 7
    %v1506 = vrot.slane %v1362, 7
    %v1507 = vrot.slane %v1363, 7
    %v1508 = vcombine.low %v1356, %v1357
    %v1509 = vcombine.high %v1356, %v1357
    %v1510 = vcombine.low %v1500, %v1501
    %v1511 = vcombine.high %v1500, %v1501
    %v1512 = vcombine.low %v1358, %v1359
    %v1513 = vcombine.high %v1358, %v1359
    %v1514 = vcombine.low %v1502, %v1503
    %v1515 = vcombine.high %v1502, %v1503
    %v1516 = vcombine.low %v1360, %v1361
    %v1517 = vcombine.high %v1360, %v1361
    %v1518 = vcombine.low %v1504, %v1505
    %v1519 = vcombine.high %v1504, %v1505
    %v1520 = vcombine.low %v1362, %v1363
    %v1521 = vcombine.high %v1362, %v1363
    %v1522 = vcombine.low %v1506, %v1507
    %v1523 = vcombine.high %v1506, %v1507
    %vm1524 = vcmask 1042432
    %vm1525 = vcmask 1046532
    %vm1526 = vmor %vm1524, %vm1525
    %v1527 = vrot.slane %v1508, 5
    %v1528 = vrot.slane %v1527, 4
    %v1529 = vrot.slane %v1509, 5
    %v1530 = vsel %vm1526, %v1528, %v1529
    %v1531 = vrot.slane %v1510, 5
    %v1532 = vrot.slane %v1531, 4
    %v1533 = vrot.slane %v1511, 5
    %v1534 = vsel %vm1526, %v1532, %v1533
    %v1535 = vrot.slane %v1512, 5
    %v1536 = vrot.slane %v1535, 4
    %v1537 = vrot.slane %v1513, 5
    %v1538 = vsel %vm1526, %v1536, %v1537
    %v1539 = vrot.slane %v1514, 5
    %v1540 = vrot.slane %v1539, 4
    %v1541 = vrot.slane %v1515, 5
    %v1542 = vsel %vm1526, %v1540, %v1541
    %v1543 = vrot.slane %v1516, 5
    %v1544 = vrot.slane %v1543, 4
    %v1545 = vrot.slane %v1517, 5
    %v1546 = vsel %vm1526, %v1544, %v1545
    %v1547 = vrot.slane %v1518, 5
    %v1548 = vrot.slane %v1547, 4
    %v1549 = vrot.slane %v1519, 5
    %v1550 = vsel %vm1526, %v1548, %v1549
    %v1551 = vrot.slane %v1520, 5
    %v1552 = vrot.slane %v1551, 4
    %v1553 = vrot.slane %v1521, 5
    %v1554 = vsel %vm1526, %v1552, %v1553
    %v1555 = vrot.slane %v1522, 5
    %v1556 = vrot.slane %v1555, 4
    %v1557 = vrot.slane %v1523, 5
    %v1558 = vsel %vm1526, %v1556, %v1557
    %v1559 = vcombine.low %v1530, %v1538
    %v1560 = vcombine.high %v1530, %v1538
    %v1561 = vcombine.low %v1534, %v1542
    %v1562 = vcombine.high %v1534, %v1542
    %v1563 = vcombine.low %v1546, %v1554
    %v1564 = vcombine.high %v1546, %v1554
    %v1565 = vcombine.low %v1550, %v1558
    %v1566 = vcombine.high %v1550, %v1558
    %v1575 = vpack.c.bf16 %v1563, %v1559
    %v1576 = vpack.c.bf16 %v1564, %v1560
    %v1577 = vpack.c.bf16 %v1565, %v1561
    %v1578 = vpack.c.bf16 %v1566, %v1562
    %v1580 = vlaneseq
    %v1581 = vshrl.u32 %v1580, 7
    %v1582 = vsub.s32 0, %v1581
    %v1583 = vrot.slane %v1355, %v1582
    %v1584 = vlaneseq
    %v1585 = vshrl.u32 %v1584, 7
    %v1586 = vsub.s32 1, %v1585
    %v1587 = vrot.slane %v1355, %v1586
    %v1654 = vunpack.c.l.b16 %v1364
    %v1655 = vunpack.c.h.b16 %v1364
    %v1656 = vunpack.c.l.b16 %v1365
    %v1657 = vunpack.c.h.b16 %v1365
    %v1658 = vunpack.c.l.b16 %v1366
    %v1659 = vunpack.c.h.b16 %v1366
    %v1660 = vunpack.c.l.b16 %v1367
    %v1661 = vunpack.c.h.b16 %v1367
    %v1662 = vunpack.c.l.b16 %v1368
    %v1663 = vunpack.c.h.b16 %v1368
    %v1664 = vunpack.c.l.b16 %v1369
    %v1665 = vunpack.c.h.b16 %v1369
    %v1666 = vunpack.c.l.b16 %v1370
    %v1667 = vunpack.c.h.b16 %v1370
    %v1668 = vunpack.c.l.b16 %v1371
    %v1669 = vunpack.c.h.b16 %v1371
    %v1670 = vunpack.c.l.b16 %v1372
    %v1671 = vunpack.c.h.b16 %v1372
    %v1672 = vunpack.c.l.b16 %v1373
    %v1673 = vunpack.c.h.b16 %v1373
    %v1674 = vunpack.c.l.b16 %v1374
    %v1675 = vunpack.c.h.b16 %v1374
    %v1676 = vunpack.c.l.b16 %v1375
    %v1677 = vunpack.c.h.b16 %v1375
    %v1678 = vunpack.c.l.b16 %v1376
    %v1679 = vunpack.c.h.b16 %v1376
    %v1680 = vunpack.c.l.b16 %v1377
    %v1681 = vunpack.c.h.b16 %v1377
    %v1682 = vunpack.c.l.b16 %v1378
    %v1683 = vunpack.c.h.b16 %v1378
    %v1684 = vunpack.c.l.b16 %v1379
    %v1685 = vunpack.c.h.b16 %v1379
    %v1686 = vunpack.c.l.b16 %v1380
    %v1687 = vunpack.c.h.b16 %v1380
    %v1688 = vunpack.c.l.b16 %v1381
    %v1689 = vunpack.c.h.b16 %v1381
    %v1690 = vunpack.c.l.b16 %v1382
    %v1691 = vunpack.c.h.b16 %v1382
    %v1692 = vunpack.c.l.b16 %v1383
    %v1693 = vunpack.c.h.b16 %v1383
    %v1694 = vunpack.c.l.b16 %v1384
    %v1695 = vunpack.c.h.b16 %v1384
    %v1696 = vunpack.c.l.b16 %v1385
    %v1697 = vunpack.c.h.b16 %v1385
    %v1698 = vunpack.c.l.b16 %v1386
    %v1699 = vunpack.c.h.b16 %v1386
    %v1700 = vunpack.c.l.b16 %v1387
    %v1701 = vunpack.c.h.b16 %v1387
    %v1702 = vunpack.c.l.b16 %v1388
    %v1703 = vunpack.c.h.b16 %v1388
    %v1704 = vunpack.c.l.b16 %v1389
    %v1705 = vunpack.c.h.b16 %v1389
    %v1706 = vunpack.c.l.b16 %v1390
    %v1707 = vunpack.c.h.b16 %v1390
    %v1708 = vunpack.c.l.b16 %v1391
    %v1709 = vunpack.c.h.b16 %v1391
    %v1710 = vunpack.c.l.b16 %v1392
    %v1711 = vunpack.c.h.b16 %v1392
    %v1712 = vunpack.c.l.b16 %v1393
    %v1713 = vunpack.c.h.b16 %v1393
    %v1714 = vunpack.c.l.b16 %v1394
    %v1715 = vunpack.c.h.b16 %v1394
    %v1716 = vunpack.c.l.b16 %v1395
    %v1717 = vunpack.c.h.b16 %v1395
    %v1718 = vunpack.c.l.b16 %v1396
    %v1719 = vunpack.c.h.b16 %v1396
    %v1720 = vunpack.c.l.b16 %v1397
    %v1721 = vunpack.c.h.b16 %v1397
    %v1722 = vunpack.c.l.b16 %v1398
    %v1723 = vunpack.c.h.b16 %v1398
    %v1724 = vunpack.c.l.b16 %v1399
    %v1725 = vunpack.c.h.b16 %v1399
    %v1726 = vunpack.c.l.b16 %v1400
    %v1727 = vunpack.c.h.b16 %v1400
    %v1728 = vunpack.c.l.b16 %v1401
    %v1729 = vunpack.c.h.b16 %v1401
    %v1730 = vunpack.c.l.b16 %v1402
    %v1731 = vunpack.c.h.b16 %v1402
    %v1732 = vunpack.c.l.b16 %v1403
    %v1733 = vunpack.c.h.b16 %v1403
    %v1734 = vunpack.c.l.b16 %v1404
    %v1735 = vunpack.c.h.b16 %v1404
    %v1736 = vunpack.c.l.b16 %v1405
    %v1737 = vunpack.c.h.b16 %v1405
    %v1738 = vunpack.c.l.b16 %v1406
    %v1739 = vunpack.c.h.b16 %v1406
    %v1740 = vunpack.c.l.b16 %v1407
    %v1741 = vunpack.c.h.b16 %v1407
    %v1742 = vunpack.c.l.b16 %v1408
    %v1743 = vunpack.c.h.b16 %v1408
    %v1744 = vunpack.c.l.b16 %v1409
    %v1745 = vunpack.c.h.b16 %v1409
    %v1746 = vunpack.c.l.b16 %v1410
    %v1747 = vunpack.c.h.b16 %v1410
    %v1748 = vunpack.c.l.b16 %v1411
    %v1749 = vunpack.c.h.b16 %v1411
    %v1750 = vunpack.c.l.b16 %v1412
    %v1751 = vunpack.c.h.b16 %v1412
    %v1752 = vunpack.c.l.b16 %v1413
    %v1753 = vunpack.c.h.b16 %v1413
    %v1754 = vunpack.c.l.b16 %v1414
    %v1755 = vunpack.c.h.b16 %v1414
    %v1756 = vunpack.c.l.b16 %v1415
    %v1757 = vunpack.c.h.b16 %v1415
    %v1758 = vunpack.c.l.b16 %v1416
    %v1759 = vunpack.c.h.b16 %v1416
    %v1760 = vunpack.c.l.b16 %v1417
    %v1761 = vunpack.c.h.b16 %v1417
    %v1762 = vunpack.c.l.b16 %v1418
    %v1763 = vunpack.c.h.b16 %v1418
    %v1764 = vunpack.c.l.b16 %v1419
    %v1765 = vunpack.c.h.b16 %v1419
    %v1766 = vunpack.c.l.b16 %v1420
    %v1767 = vunpack.c.h.b16 %v1420
    %v1768 = vunpack.c.l.b16 %v1421
    %v1769 = vunpack.c.h.b16 %v1421
    %v1770 = vunpack.c.l.b16 %v1422
    %v1771 = vunpack.c.h.b16 %v1422
    %v1772 = vunpack.c.l.b16 %v1423
    %v1773 = vunpack.c.h.b16 %v1423
    %v1774 = vunpack.c.l.b16 %v1424
    %v1775 = vunpack.c.h.b16 %v1424
    %v1776 = vunpack.c.l.b16 %v1425
    %v1777 = vunpack.c.h.b16 %v1425
    %v1778 = vunpack.c.l.b16 %v1426
    %v1779 = vunpack.c.h.b16 %v1426
    %v1780 = vunpack.c.l.b16 %v1427
    %v1781 = vunpack.c.h.b16 %v1427
    %v1782 = vpack.c.b16 %v1656, %v1654
    %v1783 = vpack.c.b16 %v1657, %v1655
    %v1784 = vpack.c.b16 %v1660, %v1658
    %v1785 = vpack.c.b16 %v1661, %v1659
    %v1786 = vpack.c.b16 %v1664, %v1662
    %v1787 = vpack.c.b16 %v1665, %v1663
    %v1788 = vpack.c.b16 %v1668, %v1666
    %v1789 = vpack.c.b16 %v1669, %v1667
    %v1790 = vpack.c.b16 %v1672, %v1670
    %v1791 = vpack.c.b16 %v1673, %v1671
    %v1792 = vpack.c.b16 %v1676, %v1674
    %v1793 = vpack.c.b16 %v1677, %v1675
    %v1794 = vpack.c.b16 %v1680, %v1678
    %v1795 = vpack.c.b16 %v1681, %v1679
    %v1796 = vpack.c.b16 %v1684, %v1682
    %v1797 = vpack.c.b16 %v1685, %v1683
    %v1798 = vpack.c.b16 %v1688, %v1686
    %v1799 = vpack.c.b16 %v1689, %v1687
    %v1800 = vpack.c.b16 %v1692, %v1690
    %v1801 = vpack.c.b16 %v1693, %v1691
    %v1802 = vpack.c.b16 %v1696, %v1694
    %v1803 = vpack.c.b16 %v1697, %v1695
    %v1804 = vpack.c.b16 %v1700, %v1698
    %v1805 = vpack.c.b16 %v1701, %v1699
    %v1806 = vpack.c.b16 %v1704, %v1702
    %v1807 = vpack.c.b16 %v1705, %v1703
    %v1808 = vpack.c.b16 %v1708, %v1706
    %v1809 = vpack.c.b16 %v1709, %v1707
    %v1810 = vpack.c.b16 %v1712, %v1710
    %v1811 = vpack.c.b16 %v1713, %v1711
    %v1812 = vpack.c.b16 %v1716, %v1714
    %v1813 = vpack.c.b16 %v1717, %v1715
    %v1814 = vpack.c.b16 %v1720, %v1718
    %v1815 = vpack.c.b16 %v1721, %v1719
    %v1816 = vpack.c.b16 %v1724, %v1722
    %v1817 = vpack.c.b16 %v1725, %v1723
    %v1818 = vpack.c.b16 %v1728, %v1726
    %v1819 = vpack.c.b16 %v1729, %v1727
    %v1820 = vpack.c.b16 %v1732, %v1730
    %v1821 = vpack.c.b16 %v1733, %v1731
    %v1822 = vpack.c.b16 %v1736, %v1734
    %v1823 = vpack.c.b16 %v1737, %v1735
    %v1824 = vpack.c.b16 %v1740, %v1738
    %v1825 = vpack.c.b16 %v1741, %v1739
    %v1826 = vpack.c.b16 %v1744, %v1742
    %v1827 = vpack.c.b16 %v1745, %v1743
    %v1828 = vpack.c.b16 %v1748, %v1746
    %v1829 = vpack.c.b16 %v1749, %v1747
    %v1830 = vpack.c.b16 %v1752, %v1750
    %v1831 = vpack.c.b16 %v1753, %v1751
    %v1832 = vpack.c.b16 %v1756, %v1754
    %v1833 = vpack.c.b16 %v1757, %v1755
    %v1834 = vpack.c.b16 %v1760, %v1758
    %v1835 = vpack.c.b16 %v1761, %v1759
    %v1836 = vpack.c.b16 %v1764, %v1762
    %v1837 = vpack.c.b16 %v1765, %v1763
    %v1838 = vpack.c.b16 %v1768, %v1766
    %v1839 = vpack.c.b16 %v1769, %v1767
    %v1840 = vpack.c.b16 %v1772, %v1770
    %v1841 = vpack.c.b16 %v1773, %v1771
    %v1842 = vpack.c.b16 %v1776, %v1774
    %v1843 = vpack.c.b16 %v1777, %v1775
    %v1844 = vpack.c.b16 %v1780, %v1778
    %v1845 = vpack.c.b16 %v1781, %v1779
    %1910 = vmatprep.subr.bf16.mxu0 %v1797
    %1911 = vmatpush1.bf16.msra.mxu0 %v1796
    %1912 = vmatprep.subr.bf16.mxu0 %v1795
    %1913 = vmatpush1.bf16.msra.mxu0 %v1794
    %1914 = vmatprep.subr.bf16.mxu0 %v1793
    %1915 = vmatpush1.bf16.msra.mxu0 %v1792
    %1916 = vmatprep.subr.bf16.mxu0 %v1791
    %1917 = vmatpush1.bf16.msra.mxu0 %v1790
    %1918 = vmatprep.subr.bf16.mxu0 %v1789
    %1919 = vmatpush1.bf16.msra.mxu0 %v1788
    %1920 = vmatprep.subr.bf16.mxu0 %v1787
    %1921 = vmatpush1.bf16.msra.mxu0 %v1786
    %1922 = vmatprep.subr.bf16.mxu0 %v1785
    %1923 = vmatpush1.bf16.msra.mxu0 %v1784
    %1924 = vmatprep.subr.bf16.mxu0 %v1783
    %1925 = vmatpush1.bf16.msra.mxu0 %v1782
    %1926 = vmatprep.subr.bf16.mxu0 %v1813
    %1927 = vmatpush2.bf16.msra.mxu0 %v1812
    %1928 = vmatprep.subr.bf16.mxu0 %v1811
    %1929 = vmatpush2.bf16.msra.mxu0 %v1810
    %1930 = vmatprep.subr.bf16.mxu0 %v1809
    %1931 = vmatpush2.bf16.msra.mxu0 %v1808
    %1932 = vmatprep.subr.bf16.mxu0 %v1807
    %1933 = vmatpush2.bf16.msra.mxu0 %v1806
    %1934 = vmatprep.subr.bf16.mxu0 %v1805
    %1935 = vmatpush2.bf16.msra.mxu0 %v1804
    %1936 = vmatprep.subr.bf16.mxu0 %v1803
    %1937 = vmatpush2.bf16.msra.mxu0 %v1802
    %1938 = vmatprep.subr.bf16.mxu0 %v1801
    %1939 = vmatpush2.bf16.msra.mxu0 %v1800
    %1940 = vmatprep.subr.bf16.mxu0 %v1799
    %1941 = vmatpush2.bf16.msra.mxu0 %v1798
    %1942 = vmatprep.mubr.bf16.mxu0 %v1576
    %1943 = vmatmul.mubr.bf16.gmra.mxu0 %v1575
    %v1944 = vpop.f32.mrf.mxu0
    %v1945 = vadd.f32 %v1583, %v1944
    %v1946 = vpop.f32.mrf.mxu0
    %v1947 = vadd.f32 %v1587, %v1946
    %v1948 = vpop.f32.mrf.mxu0
    %v1949 = vadd.f32 %v1583, %v1948
    %v1950 = vpop.f32.mrf.mxu0
    %v1951 = vadd.f32 %v1587, %v1950
    %1952 = vdwg.mxu0
    %1953 = vmatprep.subr.bf16.mxu0 %v1829
    %1954 = vmatpush1.bf16.msra.mxu0 %v1828
    %1955 = vmatprep.subr.bf16.mxu0 %v1827
    %1956 = vmatpush1.bf16.msra.mxu0 %v1826
    %1957 = vmatprep.subr.bf16.mxu0 %v1825
    %1958 = vmatpush1.bf16.msra.mxu0 %v1824
    %1959 = vmatprep.subr.bf16.mxu0 %v1823
    %1960 = vmatpush1.bf16.msra.mxu0 %v1822
    %1961 = vmatprep.subr.bf16.mxu0 %v1821
    %1962 = vmatpush1.bf16.msra.mxu0 %v1820
    %1963 = vmatprep.subr.bf16.mxu0 %v1819
    %1964 = vmatpush1.bf16.msra.mxu0 %v1818
    %1965 = vmatprep.subr.bf16.mxu0 %v1817
    %1966 = vmatpush1.bf16.msra.mxu0 %v1816
    %1967 = vmatprep.subr.bf16.mxu0 %v1815
    %1968 = vmatpush1.bf16.msra.mxu0 %v1814
    %1969 = vmatprep.subr.bf16.mxu0 %v1845
    %1970 = vmatpush2.bf16.msra.mxu0 %v1844
    %1971 = vmatprep.subr.bf16.mxu0 %v1843
    %1972 = vmatpush2.bf16.msra.mxu0 %v1842
    %1973 = vmatprep.subr.bf16.mxu0 %v1841
    %1974 = vmatpush2.bf16.msra.mxu0 %v1840
    %1975 = vmatprep.subr.bf16.mxu0 %v1839
    %1976 = vmatpush2.bf16.msra.mxu0 %v1838
    %1977 = vmatprep.subr.bf16.mxu0 %v1837
    %1978 = vmatpush2.bf16.msra.mxu0 %v1836
    %1979 = vmatprep.subr.bf16.mxu0 %v1835
    %1980 = vmatpush2.bf16.msra.mxu0 %v1834
    %1981 = vmatprep.subr.bf16.mxu0 %v1833
    %1982 = vmatpush2.bf16.msra.mxu0 %v1832
    %1983 = vmatprep.subr.bf16.mxu0 %v1831
    %1984 = vmatpush2.bf16.msra.mxu0 %v1830
    %1985 = vmatprep.mubr.bf16.mxu0 %v1578
    %1986 = vmatmul.mubr.bf16.gmra.mxu0 %v1577
    %v1987 = vpop.f32.mrf.mxu0
    %v1988 = vadd.f32 %v1945, %v1987
    %v1989 = vpop.f32.mrf.mxu0
    %v1990 = vadd.f32 %v1947, %v1989
    %v1991 = vpop.f32.mrf.mxu0
    %v1992 = vadd.f32 %v1949, %v1991
    %v1993 = vpop.f32.mrf.mxu0
    %v1994 = vadd.f32 %v1951, %v1993
    %1995 = vdwg.mxu0
    %v1996 = vrot.slane %v1356, 1
    %v1997 = vrot.slane %v1357, 1
    %v1998 = vrot.slane %v1358, 1
    %v1999 = vrot.slane %v1359, 1
    %v2000 = vrot.slane %v1360, 1
    %v2001 = vrot.slane %v1361, 1
    %v2002 = vrot.slane %v1362, 1
    %v2003 = vrot.slane %v1363, 1
    %v2004 = vcombine.low %v1996, %v1997
    %v2005 = vcombine.high %v1996, %v1997
    %v2006 = vcombine.low %v1998, %v1999
    %v2007 = vcombine.high %v1998, %v1999
    %v2008 = vcombine.low %v2000, %v2001
    %v2009 = vcombine.high %v2000, %v2001
    %v2010 = vcombine.low %v2002, %v2003
    %v2011 = vcombine.high %v2002, %v2003
    %v2012 = vrot.slane %v2004, 5
    %v2013 = vrot.slane %v2012, 4
    %v2014 = vrot.slane %v2005, 5
    %v2015 = vsel %vm1526, %v2013, %v2014
    %v2016 = vrot.slane %v2006, 5
    %v2017 = vrot.slane %v2016, 4
    %v2018 = vrot.slane %v2007, 5
    %v2019 = vsel %vm1526, %v2017, %v2018
    %v2020 = vrot.slane %v2008, 5
    %v2021 = vrot.slane %v2020, 4
    %v2022 = vrot.slane %v2009, 5
    %v2023 = vsel %vm1526, %v2021, %v2022
    %v2024 = vrot.slane %v2010, 5
    %v2025 = vrot.slane %v2024, 4
    %v2026 = vrot.slane %v2011, 5
    %v2027 = vsel %vm1526, %v2025, %v2026
    %v2028 = vcombine.low %v2015, %v2019
    %v2029 = vcombine.high %v2015, %v2019
    %v2030 = vcombine.low %v2023, %v2027
    %v2031 = vcombine.high %v2023, %v2027
    %v2036 = vpack.c.bf16 %v2030, %v2028
    %v2037 = vpack.c.bf16 %v2031, %v2029
    %v2102 = vunpack.c.l.b16 %v1428
    %v2103 = vunpack.c.h.b16 %v1428
    %v2104 = vunpack.c.l.b16 %v1429
    %v2105 = vunpack.c.h.b16 %v1429
    %v2106 = vunpack.c.l.b16 %v1430
    %v2107 = vunpack.c.h.b16 %v1430
    %v2108 = vunpack.c.l.b16 %v1431
    %v2109 = vunpack.c.h.b16 %v1431
    %v2110 = vunpack.c.l.b16 %v1432
    %v2111 = vunpack.c.h.b16 %v1432
    %v2112 = vunpack.c.l.b16 %v1433
    %v2113 = vunpack.c.h.b16 %v1433
    %v2114 = vunpack.c.l.b16 %v1434
    %v2115 = vunpack.c.h.b16 %v1434
    %v2116 = vunpack.c.l.b16 %v1435
    %v2117 = vunpack.c.h.b16 %v1435
    %v2118 = vunpack.c.l.b16 %v1436
    %v2119 = vunpack.c.h.b16 %v1436
    %v2120 = vunpack.c.l.b16 %v1437
    %v2121 = vunpack.c.h.b16 %v1437
    %v2122 = vunpack.c.l.b16 %v1438
    %v2123 = vunpack.c.h.b16 %v1438
    %v2124 = vunpack.c.l.b16 %v1439
    %v2125 = vunpack.c.h.b16 %v1439
    %v2126 = vunpack.c.l.b16 %v1440
    %v2127 = vunpack.c.h.b16 %v1440
    %v2128 = vunpack.c.l.b16 %v1441
    %v2129 = vunpack.c.h.b16 %v1441
    %v2130 = vunpack.c.l.b16 %v1442
    %v2131 = vunpack.c.h.b16 %v1442
    %v2132 = vunpack.c.l.b16 %v1443
    %v2133 = vunpack.c.h.b16 %v1443
    %v2134 = vunpack.c.l.b16 %v1444
    %v2135 = vunpack.c.h.b16 %v1444
    %v2136 = vunpack.c.l.b16 %v1445
    %v2137 = vunpack.c.h.b16 %v1445
    %v2138 = vunpack.c.l.b16 %v1446
    %v2139 = vunpack.c.h.b16 %v1446
    %v2140 = vunpack.c.l.b16 %v1447
    %v2141 = vunpack.c.h.b16 %v1447
    %v2142 = vunpack.c.l.b16 %v1448
    %v2143 = vunpack.c.h.b16 %v1448
    %v2144 = vunpack.c.l.b16 %v1449
    %v2145 = vunpack.c.h.b16 %v1449
    %v2146 = vunpack.c.l.b16 %v1450
    %v2147 = vunpack.c.h.b16 %v1450
    %v2148 = vunpack.c.l.b16 %v1451
    %v2149 = vunpack.c.h.b16 %v1451
    %v2150 = vunpack.c.l.b16 %v1452
    %v2151 = vunpack.c.h.b16 %v1452
    %v2152 = vunpack.c.l.b16 %v1453
    %v2153 = vunpack.c.h.b16 %v1453
    %v2154 = vunpack.c.l.b16 %v1454
    %v2155 = vunpack.c.h.b16 %v1454
    %v2156 = vunpack.c.l.b16 %v1455
    %v2157 = vunpack.c.h.b16 %v1455
    %v2158 = vunpack.c.l.b16 %v1456
    %v2159 = vunpack.c.h.b16 %v1456
    %v2160 = vunpack.c.l.b16 %v1457
    %v2161 = vunpack.c.h.b16 %v1457
    %v2162 = vunpack.c.l.b16 %v1458
    %v2163 = vunpack.c.h.b16 %v1458
    %v2164 = vunpack.c.l.b16 %v1459
    %v2165 = vunpack.c.h.b16 %v1459
    %v2166 = vunpack.c.l.b16 %v1460
    %v2167 = vunpack.c.h.b16 %v1460
    %v2168 = vunpack.c.l.b16 %v1461
    %v2169 = vunpack.c.h.b16 %v1461
    %v2170 = vunpack.c.l.b16 %v1462
    %v2171 = vunpack.c.h.b16 %v1462
    %v2172 = vunpack.c.l.b16 %v1463
    %v2173 = vunpack.c.h.b16 %v1463
    %v2174 = vunpack.c.l.b16 %v1464
    %v2175 = vunpack.c.h.b16 %v1464
    %v2176 = vunpack.c.l.b16 %v1465
    %v2177 = vunpack.c.h.b16 %v1465
    %v2178 = vunpack.c.l.b16 %v1466
    %v2179 = vunpack.c.h.b16 %v1466
    %v2180 = vunpack.c.l.b16 %v1467
    %v2181 = vunpack.c.h.b16 %v1467
    %v2182 = vunpack.c.l.b16 %v1468
    %v2183 = vunpack.c.h.b16 %v1468
    %v2184 = vunpack.c.l.b16 %v1469
    %v2185 = vunpack.c.h.b16 %v1469
    %v2186 = vunpack.c.l.b16 %v1470
    %v2187 = vunpack.c.h.b16 %v1470
    %v2188 = vunpack.c.l.b16 %v1471
    %v2189 = vunpack.c.h.b16 %v1471
    %v2190 = vunpack.c.l.b16 %v1472
    %v2191 = vunpack.c.h.b16 %v1472
    %v2192 = vunpack.c.l.b16 %v1473
    %v2193 = vunpack.c.h.b16 %v1473
    %v2194 = vunpack.c.l.b16 %v1474
    %v2195 = vunpack.c.h.b16 %v1474
    %v2196 = vunpack.c.l.b16 %v1475
    %v2197 = vunpack.c.h.b16 %v1475
    %v2198 = vunpack.c.l.b16 %v1476
    %v2199 = vunpack.c.h.b16 %v1476
    %v2200 = vunpack.c.l.b16 %v1477
    %v2201 = vunpack.c.h.b16 %v1477
    %v2202 = vunpack.c.l.b16 %v1478
    %v2203 = vunpack.c.h.b16 %v1478
    %v2204 = vunpack.c.l.b16 %v1479
    %v2205 = vunpack.c.h.b16 %v1479
    %v2206 = vunpack.c.l.b16 %v1480
    %v2207 = vunpack.c.h.b16 %v1480
    %v2208 = vunpack.c.l.b16 %v1481
    %v2209 = vunpack.c.h.b16 %v1481
    %v2210 = vunpack.c.l.b16 %v1482
    %v2211 = vunpack.c.h.b16 %v1482
    %v2212 = vunpack.c.l.b16 %v1483
    %v2213 = vunpack.c.h.b16 %v1483
    %v2214 = vunpack.c.l.b16 %v1484
    %v2215 = vunpack.c.h.b16 %v1484
    %v2216 = vunpack.c.l.b16 %v1485
    %v2217 = vunpack.c.h.b16 %v1485
    %v2218 = vunpack.c.l.b16 %v1486
    %v2219 = vunpack.c.h.b16 %v1486
    %v2220 = vunpack.c.l.b16 %v1487
    %v2221 = vunpack.c.h.b16 %v1487
    %v2222 = vunpack.c.l.b16 %v1488
    %v2223 = vunpack.c.h.b16 %v1488
    %v2224 = vunpack.c.l.b16 %v1489
    %v2225 = vunpack.c.h.b16 %v1489
    %v2226 = vunpack.c.l.b16 %v1490
    %v2227 = vunpack.c.h.b16 %v1490
    %v2228 = vunpack.c.l.b16 %v1491
    %v2229 = vunpack.c.h.b16 %v1491
    %v2230 = vpack.c.b16 %v2104, %v2102
    %v2231 = vpack.c.b16 %v2105, %v2103
    %v2232 = vpack.c.b16 %v2108, %v2106
    %v2233 = vpack.c.b16 %v2109, %v2107
    %v2234 = vpack.c.b16 %v2112, %v2110
    %v2235 = vpack.c.b16 %v2113, %v2111
    %v2236 = vpack.c.b16 %v2116, %v2114
    %v2237 = vpack.c.b16 %v2117, %v2115
    %v2238 = vpack.c.b16 %v2120, %v2118
    %v2239 = vpack.c.b16 %v2121, %v2119
    %v2240 = vpack.c.b16 %v2124, %v2122
    %v2241 = vpack.c.b16 %v2125, %v2123
    %v2242 = vpack.c.b16 %v2128, %v2126
    %v2243 = vpack.c.b16 %v2129, %v2127
    %v2244 = vpack.c.b16 %v2132, %v2130
    %v2245 = vpack.c.b16 %v2133, %v2131
    %v2246 = vpack.c.b16 %v2136, %v2134
    %v2247 = vpack.c.b16 %v2137, %v2135
    %v2248 = vpack.c.b16 %v2140, %v2138
    %v2249 = vpack.c.b16 %v2141, %v2139
    %v2250 = vpack.c.b16 %v2144, %v2142
    %v2251 = vpack.c.b16 %v2145, %v2143
    %v2252 = vpack.c.b16 %v2148, %v2146
    %v2253 = vpack.c.b16 %v2149, %v2147
    %v2254 = vpack.c.b16 %v2152, %v2150
    %v2255 = vpack.c.b16 %v2153, %v2151
    %v2256 = vpack.c.b16 %v2156, %v2154
    %v2257 = vpack.c.b16 %v2157, %v2155
    %v2258 = vpack.c.b16 %v2160, %v2158
    %v2259 = vpack.c.b16 %v2161, %v2159
    %v2260 = vpack.c.b16 %v2164, %v2162
    %v2261 = vpack.c.b16 %v2165, %v2163
    %v2262 = vpack.c.b16 %v2168, %v2166
    %v2263 = vpack.c.b16 %v2169, %v2167
    %v2264 = vpack.c.b16 %v2172, %v2170
    %v2265 = vpack.c.b16 %v2173, %v2171
    %v2266 = vpack.c.b16 %v2176, %v2174
    %v2267 = vpack.c.b16 %v2177, %v2175
    %v2268 = vpack.c.b16 %v2180, %v2178
    %v2269 = vpack.c.b16 %v2181, %v2179
    %v2270 = vpack.c.b16 %v2184, %v2182
    %v2271 = vpack.c.b16 %v2185, %v2183
    %v2272 = vpack.c.b16 %v2188, %v2186
    %v2273 = vpack.c.b16 %v2189, %v2187
    %v2274 = vpack.c.b16 %v2192, %v2190
    %v2275 = vpack.c.b16 %v2193, %v2191
    %v2276 = vpack.c.b16 %v2196, %v2194
    %v2277 = vpack.c.b16 %v2197, %v2195
    %v2278 = vpack.c.b16 %v2200, %v2198
    %v2279 = vpack.c.b16 %v2201, %v2199
    %v2280 = vpack.c.b16 %v2204, %v2202
    %v2281 = vpack.c.b16 %v2205, %v2203
    %v2282 = vpack.c.b16 %v2208, %v2206
    %v2283 = vpack.c.b16 %v2209, %v2207
    %v2284 = vpack.c.b16 %v2212, %v2210
    %v2285 = vpack.c.b16 %v2213, %v2211
    %v2286 = vpack.c.b16 %v2216, %v2214
    %v2287 = vpack.c.b16 %v2217, %v2215
    %v2288 = vpack.c.b16 %v2220, %v2218
    %v2289 = vpack.c.b16 %v2221, %v2219
    %v2290 = vpack.c.b16 %v2224, %v2222
    %v2291 = vpack.c.b16 %v2225, %v2223
    %v2292 = vpack.c.b16 %v2228, %v2226
    %v2293 = vpack.c.b16 %v2229, %v2227
    %2358 = vmatprep.subr.bf16.mxu0 %v2245
    %2359 = vmatpush1.bf16.msra.mxu0 %v2244
    %2360 = vmatprep.subr.bf16.mxu0 %v2243
    %2361 = vmatpush1.bf16.msra.mxu0 %v2242
    %2362 = vmatprep.subr.bf16.mxu0 %v2241
    %2363 = vmatpush1.bf16.msra.mxu0 %v2240
    %2364 = vmatprep.subr.bf16.mxu0 %v2239
    %2365 = vmatpush1.bf16.msra.mxu0 %v2238
    %2366 = vmatprep.subr.bf16.mxu0 %v2237
    %2367 = vmatpush1.bf16.msra.mxu0 %v2236
    %2368 = vmatprep.subr.bf16.mxu0 %v2235
    %2369 = vmatpush1.bf16.msra.mxu0 %v2234
    %2370 = vmatprep.subr.bf16.mxu0 %v2233
    %2371 = vmatpush1.bf16.msra.mxu0 %v2232
    %2372 = vmatprep.subr.bf16.mxu0 %v2231
    %2373 = vmatpush1.bf16.msra.mxu0 %v2230
    %2374 = vmatprep.subr.bf16.mxu0 %v2261
    %2375 = vmatpush2.bf16.msra.mxu0 %v2260
    %2376 = vmatprep.subr.bf16.mxu0 %v2259
    %2377 = vmatpush2.bf16.msra.mxu0 %v2258
    %2378 = vmatprep.subr.bf16.mxu0 %v2257
    %2379 = vmatpush2.bf16.msra.mxu0 %v2256
    %2380 = vmatprep.subr.bf16.mxu0 %v2255
    %2381 = vmatpush2.bf16.msra.mxu0 %v2254
    %2382 = vmatprep.subr.bf16.mxu0 %v2253
    %2383 = vmatpush2.bf16.msra.mxu0 %v2252
    %2384 = vmatprep.subr.bf16.mxu0 %v2251
    %2385 = vmatpush2.bf16.msra.mxu0 %v2250
    %2386 = vmatprep.subr.bf16.mxu0 %v2249
    %2387 = vmatpush2.bf16.msra.mxu0 %v2248
    %2388 = vmatprep.subr.bf16.mxu0 %v2247
    %2389 = vmatpush2.bf16.msra.mxu0 %v2246
    %2390 = vmatprep.mubr.bf16.mxu0 %v1576
    %2391 = vmatmul.mubr.bf16.gmra.mxu0 %v1575
    %v2392 = vpop.f32.mrf.mxu0
    %v2393 = vadd.f32 %v1583, %v2392
    %v2394 = vpop.f32.mrf.mxu0
    %v2395 = vadd.f32 %v1587, %v2394
    %v2396 = vpop.f32.mrf.mxu0
    %v2397 = vadd.f32 %v1583, %v2396
    %v2398 = vpop.f32.mrf.mxu0
    %v2399 = vadd.f32 %v1587, %v2398
    %2400 = vdwg.mxu0
    %2401 = vmatprep.subr.bf16.mxu0 %v2277
    %2402 = vmatpush1.bf16.msra.mxu0 %v2276
    %2403 = vmatprep.subr.bf16.mxu0 %v2275
    %2404 = vmatpush1.bf16.msra.mxu0 %v2274
    %2405 = vmatprep.subr.bf16.mxu0 %v2273
    %2406 = vmatpush1.bf16.msra.mxu0 %v2272
    %2407 = vmatprep.subr.bf16.mxu0 %v2271
    %2408 = vmatpush1.bf16.msra.mxu0 %v2270
    %2409 = vmatprep.subr.bf16.mxu0 %v2269
    %2410 = vmatpush1.bf16.msra.mxu0 %v2268
    %2411 = vmatprep.subr.bf16.mxu0 %v2267
    %2412 = vmatpush1.bf16.msra.mxu0 %v2266
    %2413 = vmatprep.subr.bf16.mxu0 %v2265
    %2414 = vmatpush1.bf16.msra.mxu0 %v2264
    %2415 = vmatprep.subr.bf16.mxu0 %v2263
    %2416 = vmatpush1.bf16.msra.mxu0 %v2262
    %2417 = vmatprep.subr.bf16.mxu0 %v2293
    %2418 = vmatpush2.bf16.msra.mxu0 %v2292
    %2419 = vmatprep.subr.bf16.mxu0 %v2291
    %2420 = vmatpush2.bf16.msra.mxu0 %v2290
    %2421 = vmatprep.subr.bf16.mxu0 %v2289
    %2422 = vmatpush2.bf16.msra.mxu0 %v2288
    %2423 = vmatprep.subr.bf16.mxu0 %v2287
    %2424 = vmatpush2.bf16.msra.mxu0 %v2286
    %2425 = vmatprep.subr.bf16.mxu0 %v2285
    %2426 = vmatpush2.bf16.msra.mxu0 %v2284
    %2427 = vmatprep.subr.bf16.mxu0 %v2283
    %2428 = vmatpush2.bf16.msra.mxu0 %v2282
    %2429 = vmatprep.subr.bf16.mxu0 %v2281
    %2430 = vmatpush2.bf16.msra.mxu0 %v2280
    %2431 = vmatprep.subr.bf16.mxu0 %v2279
    %2432 = vmatpush2.bf16.msra.mxu0 %v2278
    %2433 = vmatprep.mubr.bf16.mxu0 %v2037
    %2434 = vmatmul.mubr.bf16.gmra.mxu0 %v2036
    %v2435 = vpop.f32.mrf.mxu0
    %v2436 = vadd.f32 %v2393, %v2435
    %v2437 = vpop.f32.mrf.mxu0
    %v2438 = vadd.f32 %v2395, %v2437
    %v2439 = vpop.f32.mrf.mxu0
    %v2440 = vadd.f32 %v2397, %v2439
    %v2441 = vpop.f32.mrf.mxu0
    %v2442 = vadd.f32 %v2399, %v2441
    %2443 = vdwg.mxu0
    %v2444 = vadd.f32 %v1988, %v1992
    %v2445 = vrot.slane %v2444, 4
    %v2446 = vadd.f32 %v2444, %v2445
    %v2447 = vrot.slane %v2446, 2
    %v2448 = vadd.f32 %v2446, %v2447
    %v2449 = vrot.slane %v2448, 1
    %v2450 = vadd.f32 %v2448, %v2449
    %v2451 = vadd.f32 %v1990, %v1994
    %v2452 = vrot.slane %v2451, 4
    %v2453 = vadd.f32 %v2451, %v2452
    %v2454 = vrot.slane %v2453, 2
    %v2455 = vadd.f32 %v2453, %v2454
    %v2456 = vrot.slane %v2455, 1
    %v2457 = vadd.f32 %v2455, %v2456
    %v2458 = vadd.f32 %v2436, %v2440
    %v2459 = vrot.slane %v2458, 4
    %v2460 = vadd.f32 %v2458, %v2459
    %v2461 = vrot.slane %v2460, 2
    %v2462 = vadd.f32 %v2460, %v2461
    %v2463 = vrot.slane %v2462, 1
    %v2464 = vadd.f32 %v2462, %v2463
    %v2465 = vadd.f32 %v2438, %v2442
    %v2466 = vrot.slane %v2465, 4
    %v2467 = vadd.f32 %v2465, %v2466
    %v2468 = vrot.slane %v2467, 2
    %v2469 = vadd.f32 %v2467, %v2468
    %v2470 = vrot.slane %v2469, 1
    %v2471 = vadd.f32 %v2469, %v2470
    %v2472 = vadd.f32 %v2450, %v2464
    %v2473 = vadd.f32 %v2457, %v2471
    %2475 = vrot.lane.b32.xlu0 %v2472, 96
    %v2476 = vpop.permute.xlu0 %2475
    %v2478 = vadd.f32 %v2472, %v2476
    %2479 = vrot.lane.b32.xlu0 %v2472, 64
    %v2480 = vpop.permute.xlu0 %2479
    %v2482 = vadd.f32 %v2478, %v2480
    %2483 = vrot.lane.b32.xlu0 %v2472, 32
    %v2484 = vpop.permute.xlu0 %2483
    %v2486 = vadd.f32 %v2482, %v2484
    %v2487 = vadd.f32 %v2486, %v2473
    %2489 = vrot.lane.b32.xlu0 %v2473, 96
    %v2490 = vpop.permute.xlu0 %2489
    %v2492 = vadd.f32 %v2487, %v2490
    %2493 = vrot.lane.b32.xlu0 %v2473, 64
    %v2494 = vpop.permute.xlu0 %2493
    %v2496 = vadd.f32 %v2492, %v2494
    %2497 = vrot.lane.b32.xlu0 %v2473, 32
    %v2498 = vpop.permute.xlu0 %2497
    %v2500 = vadd.f32 %v2496, %v2498
    %v2501 = vrcp.pop 256.0
    %v2502 = vmul.f32 %v2500, %v2501
    %2504 = vrot.lane.b32.xlu0 %v2502, 32
    %v2505 = vpop.permute.xlu0 %2504
    %2507 = vrot.lane.b32.xlu0 %v2502, 64
    %v2508 = vpop.permute.xlu0 %2507
    %2510 = vrot.lane.b32.xlu0 %v2502, 96
    %v2511 = vpop.permute.xlu0 %2510
    %v2513 = vsel %vm244, %v2502, %v2505
    %v2514 = vsel %vm1031, %v2513, %v2508
    %vm2515 = vcmask 785408
    %v2516 = vsel %vm2515, %v2514, %v2511
    %v2517 = vlaneseq
    %v2518 = vshrl.u32 %v2517, 7
    %v2519 = vsub.s32 0, %v2518
    %v2520 = vrot.slane %v2516, %v2519
    %v2521 = vsub.f32 %v1988, %v2520
    %v2522 = vsub.f32 %v1990, %v2520
    %v2523 = vsub.f32 %v1992, %v2520
    %v2524 = vsub.f32 %v1994, %v2520
    %v2525 = vsub.f32 %v2436, %v2520
    %v2526 = vsub.f32 %v2438, %v2520
    %v2527 = vsub.f32 %v2440, %v2520
    %v2528 = vsub.f32 %v2442, %v2520
    %v2529 = vmul.f32 %v2521, %v2521
    %v2530 = vmul.f32 %v2522, %v2522
    %v2531 = vmul.f32 %v2523, %v2523
    %v2532 = vmul.f32 %v2524, %v2524
    %v2533 = vadd.f32 %v2529, %v2531
    %v2534 = vrot.slane %v2533, 4
    %v2535 = vadd.f32 %v2533, %v2534
    %v2536 = vrot.slane %v2535, 2
    %v2537 = vadd.f32 %v2535, %v2536
    %v2538 = vrot.slane %v2537, 1
    %v2539 = vadd.f32 %v2537, %v2538
    %v2540 = vadd.f32 %v2530, %v2532
    %v2541 = vrot.slane %v2540, 4
    %v2542 = vadd.f32 %v2540, %v2541
    %v2543 = vrot.slane %v2542, 2
    %v2544 = vadd.f32 %v2542, %v2543
    %v2545 = vrot.slane %v2544, 1
    %v2546 = vadd.f32 %v2544, %v2545
    %v2547 = vmul.f32 %v2525, %v2525
    %v2548 = vmul.f32 %v2526, %v2526
    %v2549 = vmul.f32 %v2527, %v2527
    %v2550 = vmul.f32 %v2528, %v2528
    %v2551 = vadd.f32 %v2547, %v2549
    %v2552 = vrot.slane %v2551, 4
    %v2553 = vadd.f32 %v2551, %v2552
    %v2554 = vrot.slane %v2553, 2
    %v2555 = vadd.f32 %v2553, %v2554
    %v2556 = vrot.slane %v2555, 1
    %v2557 = vadd.f32 %v2555, %v2556
    %v2558 = vadd.f32 %v2548, %v2550
    %v2559 = vrot.slane %v2558, 4
    %v2560 = vadd.f32 %v2558, %v2559
    %v2561 = vrot.slane %v2560, 2
    %v2562 = vadd.f32 %v2560, %v2561
    %v2563 = vrot.slane %v2562, 1
    %v2564 = vadd.f32 %v2562, %v2563
    %v2565 = vadd.f32 %v2539, %v2557
    %v2566 = vadd.f32 %v2546, %v2564
    %2568 = vrot.lane.b32.xlu0 %v2565, 96
    %v2569 = vpop.permute.xlu0 %2568
    %v2571 = vadd.f32 %v2565, %v2569
    %2572 = vrot.lane.b32.xlu0 %v2565, 64
    %v2573 = vpop.permute.xlu0 %2572
    %v2575 = vadd.f32 %v2571, %v2573
    %2576 = vrot.lane.b32.xlu0 %v2565, 32
    %v2577 = vpop.permute.xlu0 %2576
    %v2579 = vadd.f32 %v2575, %v2577
    %v2580 = vadd.f32 %v2579, %v2566
    %2582 = vrot.lane.b32.xlu0 %v2566, 96
    %v2583 = vpop.permute.xlu0 %2582
    %v2585 = vadd.f32 %v2580, %v2583
    %2586 = vrot.lane.b32.xlu0 %v2566, 64
    %v2587 = vpop.permute.xlu0 %2586
    %v2589 = vadd.f32 %v2585, %v2587
    %2590 = vrot.lane.b32.xlu0 %v2566, 32
    %v2591 = vpop.permute.xlu0 %2590
    %v2593 = vadd.f32 %v2589, %v2591
    %v2594 = vmul.f32 %v2593, %v2501
    %v2595 = vld [vmem:[%s14] sm:$0x1]
    %v2596 = vadd.f32 %v2594, 1e-05
    %v2597 = vrsqrt.pop %v2596
    %v2598 = vmul.f32 %v2595, %v2597
    %v2600 = vlaneseq
    %v2601 = vshrl.u32 %v2600, 7
    %v2602 = vsub.s32 0, %v2601
    %v2603 = vrot.slane %v2598, %v2602
    %2604 = vrot.lane.b32.xlu0 %v2603, 32
    %v2605 = vpop.permute.xlu0 %2604
    %2607 = vrot.lane.b32.xlu0 %v2603, 64
    %v2608 = vpop.permute.xlu0 %2607
    %2610 = vrot.lane.b32.xlu0 %v2603, 96
    %v2611 = vpop.permute.xlu0 %2610
    %v2613 = vsel %vm244, %v2598, %v2605
    %v2614 = vsel %vm1031, %v2613, %v2608
    %v2615 = vsel %vm2515, %v2614, %v2611
    %v2616 = vld [vmem:[%s15] sm:$0x1]
    %v2618 = vlaneseq
    %v2619 = vshrl.u32 %v2618, 7
    %v2620 = vsub.s32 0, %v2619
    %v2621 = vrot.slane %v2616, %v2620
    %2622 = vrot.lane.b32.xlu0 %v2621, 32
    %v2623 = vpop.permute.xlu0 %2622
    %2625 = vrot.lane.b32.xlu0 %v2621, 64
    %v2626 = vpop.permute.xlu0 %2625
    %2628 = vrot.lane.b32.xlu0 %v2621, 96
    %v2629 = vpop.permute.xlu0 %2628
    %v2631 = vsel %vm244, %v2616, %v2623
    %v2632 = vsel %vm1031, %v2631, %v2626
    %v2633 = vsel %vm2515, %v2632, %v2629
    %v2634 = vlaneseq
    %v2635 = vshrl.u32 %v2634, 7
    %v2636 = vsub.s32 0, %v2635
    %v2637 = vrot.slane %v2615, %v2636
    %v2638 = vmul.f32 %v2521, %v2637
    %v2639 = vmul.f32 %v2522, %v2637
    %v2640 = vmul.f32 %v2523, %v2637
    %v2641 = vmul.f32 %v2524, %v2637
    %v2642 = vlaneseq
    %v2643 = vshrl.u32 %v2642, 7
    %v2644 = vsub.s32 0, %v2643
    %v2645 = vrot.slane %v2633, %v2644
    %v2646 = vadd.f32 %v2638, %v2645
    %v2647 = vadd.f32 %v2639, %v2645
    %v2648 = vadd.f32 %v2640, %v2645
    %v2649 = vadd.f32 %v2641, %v2645
    %v2650 = vmul.f32 %v2525, %v2637
    %v2651 = vmul.f32 %v2526, %v2637
    %v2652 = vmul.f32 %v2527, %v2637
    %v2653 = vmul.f32 %v2528, %v2637
    %v2654 = vadd.f32 %v2650, %v2645
    %v2655 = vadd.f32 %v2651, %v2645
    %v2656 = vadd.f32 %v2652, %v2645
    %v2657 = vadd.f32 %v2653, %v2645
    %v2658 = vmax.f32 %v2646, 0.0
    %v2659 = vmax.f32 %v2647, 0.0
    %v2660 = vmax.f32 %v2648, 0.0
    %v2661 = vmax.f32 %v2649, 0.0
    %v2662 = vmax.f32 %v2654, 0.0
    %v2663 = vmax.f32 %v2655, 0.0
    %v2664 = vmax.f32 %v2656, 0.0
    %v2665 = vmax.f32 %v2657, 0.0
    %v2674 = vcombine.low %v2658, %v2659
    %v2675 = vcombine.high %v2658, %v2659
    %v2676 = vcombine.low %v2662, %v2663
    %v2677 = vcombine.high %v2662, %v2663
    %v2679 = vunpack.c.l.s4 1983009808
    %v2680 = vunpack.c.0.s8 %v2679
    %v2681 = vlaneseq
    %v2682 = vshrl.u32 %v2681, 7
    %v2683 = vsub.s32 %v2680, %v2682
    %v2684 = vrot.slane %v2674, %v2683
    %v2686 = vunpack.c.l.s4 1983009808
    %v2687 = vunpack.c.0.s8 %v2686
    %v2688 = vlaneseq
    %v2689 = vshrl.u32 %v2688, 7
    %v2690 = vsub.s32 %v2687, %v2689
    %v2691 = vrot.slane %v2675, %v2690
    %v2693 = vunpack.c.l.s4 1983009808
    %v2694 = vunpack.c.0.s8 %v2693
    %v2695 = vlaneseq
    %v2696 = vshrl.u32 %v2695, 7
    %v2697 = vsub.s32 %v2694, %v2696
    %v2698 = vrot.slane %v2676, %v2697
    %v2700 = vunpack.c.l.s4 1983009808
    %v2701 = vunpack.c.0.s8 %v2700
    %v2702 = vlaneseq
    %v2703 = vshrl.u32 %v2702, 7
    %v2704 = vsub.s32 %v2701, %v2703
    %v2705 = vrot.slane %v2677, %v2704
    %v2706 = vcombine.low %v2684, %v2698
    %v2707 = vcombine.high %v2684, %v2698
    %v2708 = vcombine.low %v2691, %v2705
    %v2709 = vcombine.high %v2691, %v2705
    %v2710 = vcombine.low %v2660, %v2661
    %v2711 = vcombine.high %v2660, %v2661
    %v2712 = vcombine.low %v2664, %v2665
    %v2713 = vcombine.high %v2664, %v2665
    %v2715 = vunpack.c.l.s4 1983009808
    %v2716 = vunpack.c.0.s8 %v2715
    %v2717 = vlaneseq
    %v2718 = vshrl.u32 %v2717, 7
    %v2719 = vsub.s32 %v2716, %v2718
    %v2720 = vrot.slane %v2710, %v2719
    %v2722 = vunpack.c.l.s4 1983009808
    %v2723 = vunpack.c.0.s8 %v2722
    %v2724 = vlaneseq
    %v2725 = vshrl.u32 %v2724, 7
    %v2726 = vsub.s32 %v2723, %v2725
    %v2727 = vrot.slane %v2711, %v2726
    %v2729 = vunpack.c.l.s4 1983009808
    %v2730 = vunpack.c.0.s8 %v2729
    %v2731 = vlaneseq
    %v2732 = vshrl.u32 %v2731, 7
    %v2733 = vsub.s32 %v2730, %v2732
    %v2734 = vrot.slane %v2712, %v2733
    %v2736 = vunpack.c.l.s4 1983009808
    %v2737 = vunpack.c.0.s8 %v2736
    %v2738 = vlaneseq
    %v2739 = vshrl.u32 %v2738, 7
    %v2740 = vsub.s32 %v2737, %v2739
    %v2741 = vrot.slane %v2713, %v2740
    %v2742 = vcombine.low %v2720, %v2734
    %v2743 = vcombine.high %v2720, %v2734
    %v2744 = vcombine.low %v2727, %v2741
    %v2745 = vcombine.high %v2727, %v2741
    %v2755 = vunpack.c.l.s4 1935823168
    %v2756 = vunpack.c.0.s8 %v2755
    %v2757 = vlaneseq
    %v2758 = vshrl.u32 %v2757, 7
    %v2759 = vsub.s32 %v2756, %v2758
    %v2760 = vrot.slane %v2706, %v2759
    %v2762 = vunpack.c.l.s4 1935823168
    %v2763 = vunpack.c.0.s8 %v2762
    %v2764 = vlaneseq
    %v2765 = vshrl.u32 %v2764, 7
    %v2766 = vsub.s32 %v2763, %v2765
    %v2767 = vrot.slane %v2707, %v2766
    %v2769 = vunpack.c.l.s4 1935823168
    %v2770 = vunpack.c.0.s8 %v2769
    %v2771 = vlaneseq
    %v2772 = vshrl.u32 %v2771, 7
    %v2773 = vsub.s32 %v2770, %v2772
    %v2774 = vrot.slane %v2708, %v2773
    %v2776 = vunpack.c.l.s4 1935823168
    %v2777 = vunpack.c.0.s8 %v2776
    %v2778 = vlaneseq
    %v2779 = vshrl.u32 %v2778, 7
    %v2780 = vsub.s32 %v2777, %v2779
    %v2781 = vrot.slane %v2709, %v2780
    %v2783 = vunpack.c.l.s4 1935823168
    %v2784 = vunpack.c.0.s8 %v2783
    %v2785 = vlaneseq
    %v2786 = vshrl.u32 %v2785, 7
    %v2787 = vsub.s32 %v2784, %v2786
    %v2788 = vrot.slane %v2742, %v2787
    %v2790 = vunpack.c.l.s4 1935823168
    %v2791 = vunpack.c.0.s8 %v2790
    %v2792 = vlaneseq
    %v2793 = vshrl.u32 %v2792, 7
    %v2794 = vsub.s32 %v2791, %v2793
    %v2795 = vrot.slane %v2743, %v2794
    %v2797 = vunpack.c.l.s4 1935823168
    %v2798 = vunpack.c.0.s8 %v2797
    %v2799 = vlaneseq
    %v2800 = vshrl.u32 %v2799, 7
    %v2801 = vsub.s32 %v2798, %v2800
    %v2802 = vrot.slane %v2744, %v2801
    %v2804 = vunpack.c.l.s4 1935823168
    %v2805 = vunpack.c.0.s8 %v2804
    %v2806 = vlaneseq
    %v2807 = vshrl.u32 %v2806, 7
    %v2808 = vsub.s32 %v2805, %v2807
    %v2809 = vrot.slane %v2745, %v2808
    %2810 = vst.msk [vmem:[#allocation3] ss:$8 sm:$0x3] %vm1215, 0.0
    %2811 = vst.msk [vmem:[#allocation3] ss:$8 sm:$0x0] %vm1215, 0.0
    %s2812 = scalar_lea.vmem [#allocation3], 32
    %2813 = vst.msk [vmem:[%s2812] ss:$8 sm:$0x3] %vm1215, 0.0
    %2814 = vst.msk [vmem:[%s2812] ss:$8 sm:$0x0] %vm1215, 0.0
    %s2815 = scalar_lea.vmem [#allocation3], 64
    %2816 = vst.msk [vmem:[%s2815] ss:$8 sm:$0x3] %vm1215, 0.0
    %2817 = vst.msk [vmem:[%s2815] ss:$8 sm:$0x0] %vm1215, 0.0
    %s2818 = scalar_lea.vmem [#allocation3], 96
    %2819 = vst.msk [vmem:[%s2818] ss:$8 sm:$0x3] %vm1215, 0.0
    %2820 = vst.msk [vmem:[%s2818] ss:$8 sm:$0x0] %vm1215, 0.0
    %s2821 = scalar_lea.vmem [#allocation3], 17
    %2822 = vst.msk [vmem:[%s2821] ss:$8 sm:$0x3] %vm1215, 0.0
    %2823 = vst.msk [vmem:[%s2821] ss:$8 sm:$0x0] %vm1215, 0.0
    %s2824 = scalar_lea.vmem [#allocation3], 49
    %2825 = vst.msk [vmem:[%s2824] ss:$8 sm:$0x3] %vm1215, 0.0
    %2826 = vst.msk [vmem:[%s2824] ss:$8 sm:$0x0] %vm1215, 0.0
    %s2827 = scalar_lea.vmem [#allocation3], 81
    %2828 = vst.msk [vmem:[%s2827] ss:$8 sm:$0x3] %vm1215, 0.0
    %2829 = vst.msk [vmem:[%s2827] ss:$8 sm:$0x0] %vm1215, 0.0
    %s2830 = scalar_lea.vmem [#allocation3], 113
    %2831 = vst.msk [vmem:[%s2830] ss:$8 sm:$0x3] %vm1215, 0.0
    %2832 = vst.msk [vmem:[%s2830] ss:$8 sm:$0x0] %vm1215, 0.0
    %v2841 = vcombine.low %v2760, %v2767
    %v2842 = vcombine.high %v2760, %v2767
    %v2843 = vcombine.low %v2774, %v2781
    %v2844 = vcombine.high %v2774, %v2781
    %v2845 = vcombine.low %v2788, %v2795
    %v2846 = vcombine.high %v2788, %v2795
    %v2847 = vcombine.low %v2802, %v2809
    %v2848 = vcombine.high %v2802, %v2809
    %v2849 = vrot.slane %v2841, 7
    %v2850 = vrot.slane %v2842, 7
    %v2851 = vrot.slane %v2843, 7
    %v2852 = vrot.slane %v2844, 7
    %v2853 = vrot.slane %v2845, 7
    %v2854 = vrot.slane %v2846, 7
    %v2855 = vrot.slane %v2847, 7
    %v2856 = vrot.slane %v2848, 7
    %2865 = vst [vmem:[#allocation3] sm:$0xfe] %v2849
    %2866 = vst [vmem:[#allocation3 + $0x8] sm:$0xfe] %v2850
    %2867 = vst [vmem:[#allocation3 + $0x10] sm:$0x1] %v2849
    %2868 = vst [vmem:[#allocation3 + $0x18] sm:$0x1] %v2850
    %2869 = vst [vmem:[#allocation3 + $0x20] sm:$0xfe] %v2851
    %2870 = vst [vmem:[#allocation3 + $0x28] sm:$0xfe] %v2852
    %2871 = vst [vmem:[#allocation3 + $0x30] sm:$0x1] %v2851
    %2872 = vst [vmem:[#allocation3 + $0x38] sm:$0x1] %v2852
    %2873 = vst [vmem:[#allocation3 + $0x40] sm:$0xfe] %v2853
    %2874 = vst [vmem:[#allocation3 + $0x48] sm:$0xfe] %v2854
    %2875 = vst [vmem:[#allocation3 + $0x50] sm:$0x1] %v2853
    %2876 = vst [vmem:[#allocation3 + $0x58] sm:$0x1] %v2854
    %2877 = vst [vmem:[#allocation3 + $0x60] sm:$0xfe] %v2855
    %2878 = vst [vmem:[#allocation3 + $0x68] sm:$0xfe] %v2856
    %2879 = vst [vmem:[#allocation3 + $0x70] sm:$0x1] %v2855
    %2880 = vst [vmem:[#allocation3 + $0x78] sm:$0x1] %v2856
    %v2881 = vld [vmem:[%s18] sm:$0x3]
    %v2882 = vld [vmem:[#allocation3] sm:$0xff]
    %v2883 = vld [vmem:[#allocation3 + $0x8] sm:$0xff]
    %v2884 = vld [vmem:[#allocation3 + $0x10] sm:$0x3]
    %v2885 = vld [vmem:[#allocation3 + $0x18] sm:$0x3]
    %v2886 = vld [vmem:[#allocation3 + $0x20] sm:$0xff]
    %v2887 = vld [vmem:[#allocation3 + $0x28] sm:$0xff]
    %v2888 = vld [vmem:[#allocation3 + $0x30] sm:$0x3]
    %v2889 = vld [vmem:[#allocation3 + $0x38] sm:$0x3]
    %v2890 = vld [vmem:[#allocation3 + $0x40] sm:$0xff]
    %v2891 = vld [vmem:[#allocation3 + $0x48] sm:$0xff]
    %v2892 = vld [vmem:[#allocation3 + $0x50] sm:$0x3]
    %v2893 = vld [vmem:[#allocation3 + $0x58] sm:$0x3]
    %v2894 = vld [vmem:[#allocation3 + $0x60] sm:$0xff]
    %v2895 = vld [vmem:[#allocation3 + $0x68] sm:$0xff]
    %v2896 = vld [vmem:[#allocation3 + $0x70] sm:$0x3]
    %v2897 = vld [vmem:[#allocation3 + $0x78] sm:$0x3]
    %v2898 = vld [vmem:[#allocation16] sm:$0xff]
    %v2899 = vld [vmem:[#allocation16 + $0x8] sm:$0xff]
    %v2900 = vld [vmem:[#allocation16 + $0x10] sm:$0xff]
    %v2901 = vld [vmem:[#allocation16 + $0x18] sm:$0xff]
    %v2902 = vld [vmem:[#allocation16 + $0x20] sm:$0xff]
    %v2903 = vld [vmem:[#allocation16 + $0x28] sm:$0xff]
    %v2904 = vld [vmem:[#allocation16 + $0x30] sm:$0xff]
    %v2905 = vld [vmem:[#allocation16 + $0x38] sm:$0xff]
    %v2906 = vld [vmem:[#allocation16 + $0x40] sm:$0xff]
    %v2907 = vld [vmem:[#allocation16 + $0x48] sm:$0xff]
    %v2908 = vld [vmem:[#allocation16 + $0x50] sm:$0xff]
    %v2909 = vld [vmem:[#allocation16 + $0x58] sm:$0xff]
    %v2910 = vld [vmem:[#allocation16 + $0x60] sm:$0xff]
    %v2911 = vld [vmem:[#allocation16 + $0x68] sm:$0xff]
    %v2912 = vld [vmem:[#allocation16 + $0x70] sm:$0xff]
    %v2913 = vld [vmem:[#allocation16 + $0x78] sm:$0xff]
    %v2914 = vld [vmem:[#allocation16 + $0x80] sm:$0xff]
    %v2915 = vld [vmem:[#allocation16 + $0x88] sm:$0xff]
    %v2916 = vld [vmem:[#allocation16 + $0x90] sm:$0xff]
    %v2917 = vld [vmem:[#allocation16 + $0x98] sm:$0xff]
    %v2918 = vld [vmem:[#allocation16 + $0xa0] sm:$0xff]
    %v2919 = vld [vmem:[#allocation16 + $0xa8] sm:$0xff]
    %v2920 = vld [vmem:[#allocation16 + $0xb0] sm:$0xff]
    %v2921 = vld [vmem:[#allocation16 + $0xb8] sm:$0xff]
    %v2922 = vld [vmem:[#allocation16 + $0xc0] sm:$0xff]
    %v2923 = vld [vmem:[#allocation16 + $0xc8] sm:$0xff]
    %v2924 = vld [vmem:[#allocation16 + $0xd0] sm:$0xff]
    %v2925 = vld [vmem:[#allocation16 + $0xd8] sm:$0xff]
    %v2926 = vld [vmem:[#allocation16 + $0xe0] sm:$0xff]
    %v2927 = vld [vmem:[#allocation16 + $0xe8] sm:$0xff]
    %v2928 = vld [vmem:[#allocation16 + $0xf0] sm:$0xff]
    %v2929 = vld [vmem:[#allocation16 + $0xf8] sm:$0xff]
    %v2930 = vld [vmem:[#allocation16 + $0x100] sm:$0xff]
    %v2931 = vld [vmem:[#allocation16 + $0x108] sm:$0xff]
    %v2932 = vld [vmem:[#allocation16 + $0x110] sm:$0xff]
    %v2933 = vld [vmem:[#allocation16 + $0x118] sm:$0xff]
    %v2934 = vld [vmem:[#allocation16 + $0x120] sm:$0xff]
    %v2935 = vld [vmem:[#allocation16 + $0x128] sm:$0xff]
    %v2936 = vld [vmem:[#allocation16 + $0x130] sm:$0xff]
    %v2937 = vld [vmem:[#allocation16 + $0x138] sm:$0xff]
    %v2938 = vld [vmem:[#allocation16 + $0x140] sm:$0xff]
    %v2939 = vld [vmem:[#allocation16 + $0x148] sm:$0xff]
    %v2940 = vld [vmem:[#allocation16 + $0x150] sm:$0xff]
    %v2941 = vld [vmem:[#allocation16 + $0x158] sm:$0xff]
    %v2942 = vld [vmem:[#allocation16 + $0x160] sm:$0xff]
    %v2943 = vld [vmem:[#allocation16 + $0x168] sm:$0xff]
    %v2944 = vld [vmem:[#allocation16 + $0x170] sm:$0xff]
    %v2945 = vld [vmem:[#allocation16 + $0x178] sm:$0xff]
    %v2946 = vld [vmem:[#allocation16 + $0x180] sm:$0xff]
    %v2947 = vld [vmem:[#allocation16 + $0x188] sm:$0xff]
    %v2948 = vld [vmem:[#allocation16 + $0x190] sm:$0xff]
    %v2949 = vld [vmem:[#allocation16 + $0x198] sm:$0xff]
    %v2950 = vld [vmem:[#allocation16 + $0x1a0] sm:$0xff]
    %v2951 = vld [vmem:[#allocation16 + $0x1a8] sm:$0xff]
    %v2952 = vld [vmem:[#allocation16 + $0x1b0] sm:$0xff]
    %v2953 = vld [vmem:[#allocation16 + $0x1b8] sm:$0xff]
    %v2954 = vld [vmem:[#allocation16 + $0x1c0] sm:$0xff]
    %v2955 = vld [vmem:[#allocation16 + $0x1c8] sm:$0xff]
    %v2956 = vld [vmem:[#allocation16 + $0x1d0] sm:$0xff]
    %v2957 = vld [vmem:[#allocation16 + $0x1d8] sm:$0xff]
    %v2958 = vld [vmem:[#allocation16 + $0x1e0] sm:$0xff]
    %v2959 = vld [vmem:[#allocation16 + $0x1e8] sm:$0xff]
    %v2960 = vld [vmem:[#allocation16 + $0x1f0] sm:$0xff]
    %v2961 = vld [vmem:[#allocation16 + $0x1f8] sm:$0xff]
    %v2962 = vld [vmem:[#allocation18] sm:$0xff]
    %v2963 = vld [vmem:[#allocation18 + $0x8] sm:$0xff]
    %v2964 = vld [vmem:[#allocation18 + $0x10] sm:$0xff]
    %v2965 = vld [vmem:[#allocation18 + $0x18] sm:$0xff]
    %v2966 = vld [vmem:[#allocation18 + $0x20] sm:$0xff]
    %v2967 = vld [vmem:[#allocation18 + $0x28] sm:$0xff]
    %v2968 = vld [vmem:[#allocation18 + $0x30] sm:$0xff]
    %v2969 = vld [vmem:[#allocation18 + $0x38] sm:$0xff]
    %v2970 = vld [vmem:[#allocation18 + $0x40] sm:$0xff]
    %v2971 = vld [vmem:[#allocation18 + $0x48] sm:$0xff]
    %v2972 = vld [vmem:[#allocation18 + $0x50] sm:$0xff]
    %v2973 = vld [vmem:[#allocation18 + $0x58] sm:$0xff]
    %v2974 = vld [vmem:[#allocation18 + $0x60] sm:$0xff]
    %v2975 = vld [vmem:[#allocation18 + $0x68] sm:$0xff]
    %v2976 = vld [vmem:[#allocation18 + $0x70] sm:$0xff]
    %v2977 = vld [vmem:[#allocation18 + $0x78] sm:$0xff]
    %v2978 = vld [vmem:[#allocation18 + $0x80] sm:$0xff]
    %v2979 = vld [vmem:[#allocation18 + $0x88] sm:$0xff]
    %v2980 = vld [vmem:[#allocation18 + $0x90] sm:$0xff]
    %v2981 = vld [vmem:[#allocation18 + $0x98] sm:$0xff]
    %v2982 = vld [vmem:[#allocation18 + $0xa0] sm:$0xff]
    %v2983 = vld [vmem:[#allocation18 + $0xa8] sm:$0xff]
    %v2984 = vld [vmem:[#allocation18 + $0xb0] sm:$0xff]
    %v2985 = vld [vmem:[#allocation18 + $0xb8] sm:$0xff]
    %v2986 = vld [vmem:[#allocation18 + $0xc0] sm:$0xff]
    %v2987 = vld [vmem:[#allocation18 + $0xc8] sm:$0xff]
    %v2988 = vld [vmem:[#allocation18 + $0xd0] sm:$0xff]
    %v2989 = vld [vmem:[#allocation18 + $0xd8] sm:$0xff]
    %v2990 = vld [vmem:[#allocation18 + $0xe0] sm:$0xff]
    %v2991 = vld [vmem:[#allocation18 + $0xe8] sm:$0xff]
    %v2992 = vld [vmem:[#allocation18 + $0xf0] sm:$0xff]
    %v2993 = vld [vmem:[#allocation18 + $0xf8] sm:$0xff]
    %v2994 = vld [vmem:[#allocation18 + $0x100] sm:$0xff]
    %v2995 = vld [vmem:[#allocation18 + $0x108] sm:$0xff]
    %v2996 = vld [vmem:[#allocation18 + $0x110] sm:$0xff]
    %v2997 = vld [vmem:[#allocation18 + $0x118] sm:$0xff]
    %v2998 = vld [vmem:[#allocation18 + $0x120] sm:$0xff]
    %v2999 = vld [vmem:[#allocation18 + $0x128] sm:$0xff]
    %v3000 = vld [vmem:[#allocation18 + $0x130] sm:$0xff]
    %v3001 = vld [vmem:[#allocation18 + $0x138] sm:$0xff]
    %v3002 = vld [vmem:[#allocation18 + $0x140] sm:$0xff]
    %v3003 = vld [vmem:[#allocation18 + $0x148] sm:$0xff]
    %v3004 = vld [vmem:[#allocation18 + $0x150] sm:$0xff]
    %v3005 = vld [vmem:[#allocation18 + $0x158] sm:$0xff]
    %v3006 = vld [vmem:[#allocation18 + $0x160] sm:$0xff]
    %v3007 = vld [vmem:[#allocation18 + $0x168] sm:$0xff]
    %v3008 = vld [vmem:[#allocation18 + $0x170] sm:$0xff]
    %v3009 = vld [vmem:[#allocation18 + $0x178] sm:$0xff]
    %v3010 = vld [vmem:[#allocation18 + $0x180] sm:$0xff]
    %v3011 = vld [vmem:[#allocation18 + $0x188] sm:$0xff]
    %v3012 = vld [vmem:[#allocation18 + $0x190] sm:$0xff]
    %v3013 = vld [vmem:[#allocation18 + $0x198] sm:$0xff]
    %v3014 = vld [vmem:[#allocation18 + $0x1a0] sm:$0xff]
    %v3015 = vld [vmem:[#allocation18 + $0x1a8] sm:$0xff]
    %v3016 = vld [vmem:[#allocation18 + $0x1b0] sm:$0xff]
    %v3017 = vld [vmem:[#allocation18 + $0x1b8] sm:$0xff]
    %v3018 = vld [vmem:[#allocation18 + $0x1c0] sm:$0xff]
    %v3019 = vld [vmem:[#allocation18 + $0x1c8] sm:$0xff]
    %v3020 = vld [vmem:[#allocation18 + $0x1d0] sm:$0xff]
    %v3021 = vld [vmem:[#allocation18 + $0x1d8] sm:$0xff]
    %v3022 = vld [vmem:[#allocation18 + $0x1e0] sm:$0xff]
    %v3023 = vld [vmem:[#allocation18 + $0x1e8] sm:$0xff]
    %v3024 = vld [vmem:[#allocation18 + $0x1f0] sm:$0xff]
    %v3025 = vld [vmem:[#allocation18 + $0x1f8] sm:$0xff]
    %v3034 = vrot.slane %v2882, 7
    %v3035 = vrot.slane %v2883, 7
    %v3036 = vrot.slane %v2886, 7
    %v3037 = vrot.slane %v2887, 7
    %v3038 = vrot.slane %v2890, 7
    %v3039 = vrot.slane %v2891, 7
    %v3040 = vrot.slane %v2894, 7
    %v3041 = vrot.slane %v2895, 7
    %vm3050 = vcmask 1046528
    %v3051 = vrot.slane %v2882, 1
    %v3052 = vrot.slane %v2884, 1
    %v3053 = vsel %vm3050, %v3051, %v3052
    %v3054 = vrot.slane %v2883, 1
    %v3055 = vrot.slane %v2885, 1
    %v3056 = vsel %vm3050, %v3054, %v3055
    %v3057 = vrot.slane %v3034, 1
    %v3058 = vsel %vm3050, %v3057, %v3057
    %v3059 = vrot.slane %v3035, 1
    %v3060 = vsel %vm3050, %v3059, %v3059
    %v3061 = vrot.slane %v2886, 1
    %v3062 = vrot.slane %v2888, 1
    %v3063 = vsel %vm3050, %v3061, %v3062
    %v3064 = vrot.slane %v2887, 1
    %v3065 = vrot.slane %v2889, 1
    %v3066 = vsel %vm3050, %v3064, %v3065
    %v3067 = vrot.slane %v3036, 1
    %v3068 = vsel %vm3050, %v3067, %v3067
    %v3069 = vrot.slane %v3037, 1
    %v3070 = vsel %vm3050, %v3069, %v3069
    %v3071 = vrot.slane %v2890, 1
    %v3072 = vrot.slane %v2892, 1
    %v3073 = vsel %vm3050, %v3071, %v3072
    %v3074 = vrot.slane %v2891, 1
    %v3075 = vrot.slane %v2893, 1
    %v3076 = vsel %vm3050, %v3074, %v3075
    %v3077 = vrot.slane %v3038, 1
    %v3078 = vsel %vm3050, %v3077, %v3077
    %v3079 = vrot.slane %v3039, 1
    %v3080 = vsel %vm3050, %v3079, %v3079
    %v3081 = vrot.slane %v2894, 1
    %v3082 = vrot.slane %v2896, 1
    %v3083 = vsel %vm3050, %v3081, %v3082
    %v3084 = vrot.slane %v2895, 1
    %v3085 = vrot.slane %v2897, 1
    %v3086 = vsel %vm3050, %v3084, %v3085
    %v3087 = vrot.slane %v3040, 1
    %v3088 = vsel %vm3050, %v3087, %v3087
    %v3089 = vrot.slane %v3041, 1
    %v3090 = vsel %vm3050, %v3089, %v3089
    %v3107 = vpack.c.bf16 %v3063, %v3053
    %v3108 = vpack.c.bf16 %v3066, %v3056
    %v3109 = vpack.c.bf16 %v3068, %v3058
    %v3110 = vpack.c.bf16 %v3070, %v3060
    %v3111 = vpack.c.bf16 %v3083, %v3073
    %v3112 = vpack.c.bf16 %v3086, %v3076
    %v3113 = vpack.c.bf16 %v3088, %v3078
    %v3114 = vpack.c.bf16 %v3090, %v3080
    %v3116 = vlaneseq
    %v3117 = vshrl.u32 %v3116, 7
    %v3118 = vsub.s32 0, %v3117
    %v3119 = vrot.slane %v2881, %v3118
    %v3120 = vlaneseq
    %v3121 = vshrl.u32 %v3120, 7
    %v3122 = vsub.s32 1, %v3121
    %v3123 = vrot.slane %v2881, %v3122
    %v3190 = vunpack.c.l.b16 %v2898
    %v3191 = vunpack.c.h.b16 %v2898
    %v3192 = vunpack.c.l.b16 %v2899
    %v3193 = vunpack.c.h.b16 %v2899
    %v3194 = vunpack.c.l.b16 %v2900
    %v3195 = vunpack.c.h.b16 %v2900
    %v3196 = vunpack.c.l.b16 %v2901
    %v3197 = vunpack.c.h.b16 %v2901
    %v3198 = vunpack.c.l.b16 %v2902
    %v3199 = vunpack.c.h.b16 %v2902
    %v3200 = vunpack.c.l.b16 %v2903
    %v3201 = vunpack.c.h.b16 %v2903
    %v3202 = vunpack.c.l.b16 %v2904
    %v3203 = vunpack.c.h.b16 %v2904
    %v3204 = vunpack.c.l.b16 %v2905
    %v3205 = vunpack.c.h.b16 %v2905
    %v3206 = vunpack.c.l.b16 %v2906
    %v3207 = vunpack.c.h.b16 %v2906
    %v3208 = vunpack.c.l.b16 %v2907
    %v3209 = vunpack.c.h.b16 %v2907
    %v3210 = vunpack.c.l.b16 %v2908
    %v3211 = vunpack.c.h.b16 %v2908
    %v3212 = vunpack.c.l.b16 %v2909
    %v3213 = vunpack.c.h.b16 %v2909
    %v3214 = vunpack.c.l.b16 %v2910
    %v3215 = vunpack.c.h.b16 %v2910
    %v3216 = vunpack.c.l.b16 %v2911
    %v3217 = vunpack.c.h.b16 %v2911
    %v3218 = vunpack.c.l.b16 %v2912
    %v3219 = vunpack.c.h.b16 %v2912
    %v3220 = vunpack.c.l.b16 %v2913
    %v3221 = vunpack.c.h.b16 %v2913
    %v3222 = vunpack.c.l.b16 %v2914
    %v3223 = vunpack.c.h.b16 %v2914
    %v3224 = vunpack.c.l.b16 %v2915
    %v3225 = vunpack.c.h.b16 %v2915
    %v3226 = vunpack.c.l.b16 %v2916
    %v3227 = vunpack.c.h.b16 %v2916
    %v3228 = vunpack.c.l.b16 %v2917
    %v3229 = vunpack.c.h.b16 %v2917
    %v3230 = vunpack.c.l.b16 %v2918
    %v3231 = vunpack.c.h.b16 %v2918
    %v3232 = vunpack.c.l.b16 %v2919
    %v3233 = vunpack.c.h.b16 %v2919
    %v3234 = vunpack.c.l.b16 %v2920
    %v3235 = vunpack.c.h.b16 %v2920
    %v3236 = vunpack.c.l.b16 %v2921
    %v3237 = vunpack.c.h.b16 %v2921
    %v3238 = vunpack.c.l.b16 %v2922
    %v3239 = vunpack.c.h.b16 %v2922
    %v3240 = vunpack.c.l.b16 %v2923
    %v3241 = vunpack.c.h.b16 %v2923
    %v3242 = vunpack.c.l.b16 %v2924
    %v3243 = vunpack.c.h.b16 %v2924
    %v3244 = vunpack.c.l.b16 %v2925
    %v3245 = vunpack.c.h.b16 %v2925
    %v3246 = vunpack.c.l.b16 %v2926
    %v3247 = vunpack.c.h.b16 %v2926
    %v3248 = vunpack.c.l.b16 %v2927
    %v3249 = vunpack.c.h.b16 %v2927
    %v3250 = vunpack.c.l.b16 %v2928
    %v3251 = vunpack.c.h.b16 %v2928
    %v3252 = vunpack.c.l.b16 %v2929
    %v3253 = vunpack.c.h.b16 %v2929
    %v3254 = vunpack.c.l.b16 %v2930
    %v3255 = vunpack.c.h.b16 %v2930
    %v3256 = vunpack.c.l.b16 %v2931
    %v3257 = vunpack.c.h.b16 %v2931
    %v3258 = vunpack.c.l.b16 %v2932
    %v3259 = vunpack.c.h.b16 %v2932
    %v3260 = vunpack.c.l.b16 %v2933
    %v3261 = vunpack.c.h.b16 %v2933
    %v3262 = vunpack.c.l.b16 %v2934
    %v3263 = vunpack.c.h.b16 %v2934
    %v3264 = vunpack.c.l.b16 %v2935
    %v3265 = vunpack.c.h.b16 %v2935
    %v3266 = vunpack.c.l.b16 %v2936
    %v3267 = vunpack.c.h.b16 %v2936
    %v3268 = vunpack.c.l.b16 %v2937
    %v3269 = vunpack.c.h.b16 %v2937
    %v3270 = vunpack.c.l.b16 %v2938
    %v3271 = vunpack.c.h.b16 %v2938
    %v3272 = vunpack.c.l.b16 %v2939
    %v3273 = vunpack.c.h.b16 %v2939
    %v3274 = vunpack.c.l.b16 %v2940
    %v3275 = vunpack.c.h.b16 %v2940
    %v3276 = vunpack.c.l.b16 %v2941
    %v3277 = vunpack.c.h.b16 %v2941
    %v3278 = vunpack.c.l.b16 %v2942
    %v3279 = vunpack.c.h.b16 %v2942
    %v3280 = vunpack.c.l.b16 %v2943
    %v3281 = vunpack.c.h.b16 %v2943
    %v3282 = vunpack.c.l.b16 %v2944
    %v3283 = vunpack.c.h.b16 %v2944
    %v3284 = vunpack.c.l.b16 %v2945
    %v3285 = vunpack.c.h.b16 %v2945
    %v3286 = vunpack.c.l.b16 %v2946
    %v3287 = vunpack.c.h.b16 %v2946
    %v3288 = vunpack.c.l.b16 %v2947
    %v3289 = vunpack.c.h.b16 %v2947
    %v3290 = vunpack.c.l.b16 %v2948
    %v3291 = vunpack.c.h.b16 %v2948
    %v3292 = vunpack.c.l.b16 %v2949
    %v3293 = vunpack.c.h.b16 %v2949
    %v3294 = vunpack.c.l.b16 %v2950
    %v3295 = vunpack.c.h.b16 %v2950
    %v3296 = vunpack.c.l.b16 %v2951
    %v3297 = vunpack.c.h.b16 %v2951
    %v3298 = vunpack.c.l.b16 %v2952
    %v3299 = vunpack.c.h.b16 %v2952
    %v3300 = vunpack.c.l.b16 %v2953
    %v3301 = vunpack.c.h.b16 %v2953
    %v3302 = vunpack.c.l.b16 %v2954
    %v3303 = vunpack.c.h.b16 %v2954
    %v3304 = vunpack.c.l.b16 %v2955
    %v3305 = vunpack.c.h.b16 %v2955
    %v3306 = vunpack.c.l.b16 %v2956
    %v3307 = vunpack.c.h.b16 %v2956
    %v3308 = vunpack.c.l.b16 %v2957
    %v3309 = vunpack.c.h.b16 %v2957
    %v3310 = vunpack.c.l.b16 %v2958
    %v3311 = vunpack.c.h.b16 %v2958
    %v3312 = vunpack.c.l.b16 %v2959
    %v3313 = vunpack.c.h.b16 %v2959
    %v3314 = vunpack.c.l.b16 %v2960
    %v3315 = vunpack.c.h.b16 %v2960
    %v3316 = vunpack.c.l.b16 %v2961
    %v3317 = vunpack.c.h.b16 %v2961
    %v3318 = vpack.c.b16 %v3192, %v3190
    %v3319 = vpack.c.b16 %v3193, %v3191
    %v3320 = vpack.c.b16 %v3196, %v3194
    %v3321 = vpack.c.b16 %v3197, %v3195
    %v3322 = vpack.c.b16 %v3200, %v3198
    %v3323 = vpack.c.b16 %v3201, %v3199
    %v3324 = vpack.c.b16 %v3204, %v3202
    %v3325 = vpack.c.b16 %v3205, %v3203
    %v3326 = vpack.c.b16 %v3208, %v3206
    %v3327 = vpack.c.b16 %v3209, %v3207
    %v3328 = vpack.c.b16 %v3212, %v3210
    %v3329 = vpack.c.b16 %v3213, %v3211
    %v3330 = vpack.c.b16 %v3216, %v3214
    %v3331 = vpack.c.b16 %v3217, %v3215
    %v3332 = vpack.c.b16 %v3220, %v3218
    %v3333 = vpack.c.b16 %v3221, %v3219
    %v3334 = vpack.c.b16 %v3224, %v3222
    %v3335 = vpack.c.b16 %v3225, %v3223
    %v3336 = vpack.c.b16 %v3228, %v3226
    %v3337 = vpack.c.b16 %v3229, %v3227
    %v3338 = vpack.c.b16 %v3232, %v3230
    %v3339 = vpack.c.b16 %v3233, %v3231
    %v3340 = vpack.c.b16 %v3236, %v3234
    %v3341 = vpack.c.b16 %v3237, %v3235
    %v3342 = vpack.c.b16 %v3240, %v3238
    %v3343 = vpack.c.b16 %v3241, %v3239
    %v3344 = vpack.c.b16 %v3244, %v3242
    %v3345 = vpack.c.b16 %v3245, %v3243
    %v3346 = vpack.c.b16 %v3248, %v3246
    %v3347 = vpack.c.b16 %v3249, %v3247
    %v3348 = vpack.c.b16 %v3252, %v3250
    %v3349 = vpack.c.b16 %v3253, %v3251
    %v3350 = vpack.c.b16 %v3256, %v3254
    %v3351 = vpack.c.b16 %v3257, %v3255
    %v3352 = vpack.c.b16 %v3260, %v3258
    %v3353 = vpack.c.b16 %v3261, %v3259
    %v3354 = vpack.c.b16 %v3264, %v3262
    %v3355 = vpack.c.b16 %v3265, %v3263
    %v3356 = vpack.c.b16 %v3268, %v3266
    %v3357 = vpack.c.b16 %v3269, %v3267
    %v3358 = vpack.c.b16 %v3272, %v3270
    %v3359 = vpack.c.b16 %v3273, %v3271
    %v3360 = vpack.c.b16 %v3276, %v3274
    %v3361 = vpack.c.b16 %v3277, %v3275
    %v3362 = vpack.c.b16 %v3280, %v3278
    %v3363 = vpack.c.b16 %v3281, %v3279
    %v3364 = vpack.c.b16 %v3284, %v3282
    %v3365 = vpack.c.b16 %v3285, %v3283
    %v3366 = vpack.c.b16 %v3288, %v3286
    %v3367 = vpack.c.b16 %v3289, %v3287
    %v3368 = vpack.c.b16 %v3292, %v3290
    %v3369 = vpack.c.b16 %v3293, %v3291
    %v3370 = vpack.c.b16 %v3296, %v3294
    %v3371 = vpack.c.b16 %v3297, %v3295
    %v3372 = vpack.c.b16 %v3300, %v3298
    %v3373 = vpack.c.b16 %v3301, %v3299
    %v3374 = vpack.c.b16 %v3304, %v3302
    %v3375 = vpack.c.b16 %v3305, %v3303
    %v3376 = vpack.c.b16 %v3308, %v3306
    %v3377 = vpack.c.b16 %v3309, %v3307
    %v3378 = vpack.c.b16 %v3312, %v3310
    %v3379 = vpack.c.b16 %v3313, %v3311
    %v3380 = vpack.c.b16 %v3316, %v3314
    %v3381 = vpack.c.b16 %v3317, %v3315
    %3446 = vmatprep.subr.bf16.mxu0 %v3333
    %3447 = vmatpush1.bf16.msra.mxu0 %v3332
    %3448 = vmatprep.subr.bf16.mxu0 %v3331
    %3449 = vmatpush1.bf16.msra.mxu0 %v3330
    %3450 = vmatprep.subr.bf16.mxu0 %v3329
    %3451 = vmatpush1.bf16.msra.mxu0 %v3328
    %3452 = vmatprep.subr.bf16.mxu0 %v3327
    %3453 = vmatpush1.bf16.msra.mxu0 %v3326
    %3454 = vmatprep.subr.bf16.mxu0 %v3325
    %3455 = vmatpush1.bf16.msra.mxu0 %v3324
    %3456 = vmatprep.subr.bf16.mxu0 %v3323
    %3457 = vmatpush1.bf16.msra.mxu0 %v3322
    %3458 = vmatprep.subr.bf16.mxu0 %v3321
    %3459 = vmatpush1.bf16.msra.mxu0 %v3320
    %3460 = vmatprep.subr.bf16.mxu0 %v3319
    %3461 = vmatpush1.bf16.msra.mxu0 %v3318
    %3462 = vmatprep.subr.bf16.mxu0 %v3349
    %3463 = vmatpush2.bf16.msra.mxu0 %v3348
    %3464 = vmatprep.subr.bf16.mxu0 %v3347
    %3465 = vmatpush2.bf16.msra.mxu0 %v3346
    %3466 = vmatprep.subr.bf16.mxu0 %v3345
    %3467 = vmatpush2.bf16.msra.mxu0 %v3344
    %3468 = vmatprep.subr.bf16.mxu0 %v3343
    %3469 = vmatpush2.bf16.msra.mxu0 %v3342
    %3470 = vmatprep.subr.bf16.mxu0 %v3341
    %3471 = vmatpush2.bf16.msra.mxu0 %v3340
    %3472 = vmatprep.subr.bf16.mxu0 %v3339
    %3473 = vmatpush2.bf16.msra.mxu0 %v3338
    %3474 = vmatprep.subr.bf16.mxu0 %v3337
    %3475 = vmatpush2.bf16.msra.mxu0 %v3336
    %3476 = vmatprep.subr.bf16.mxu0 %v3335
    %3477 = vmatpush2.bf16.msra.mxu0 %v3334
    %3478 = vmatprep.mubr.bf16.mxu0 %v3108
    %3479 = vmatmul.mubr.bf16.gmra.mxu0 %v3107
    %v3480 = vpop.f32.mrf.mxu0
    %v3481 = vadd.f32 %v3119, %v3480
    %v3482 = vpop.f32.mrf.mxu0
    %v3483 = vadd.f32 %v3123, %v3482
    %v3484 = vpop.f32.mrf.mxu0
    %v3485 = vadd.f32 %v3119, %v3484
    %v3486 = vpop.f32.mrf.mxu0
    %v3487 = vadd.f32 %v3123, %v3486
    %3488 = vmatprep.mubr.bf16.mxu0 %v3112
    %3489 = vmatmul.mubr.bf16.gmra.mxu0 %v3111
    %v3490 = vpop.f32.mrf.mxu0
    %v3491 = vadd.f32 %v3119, %v3490
    %v3492 = vpop.f32.mrf.mxu0
    %v3493 = vadd.f32 %v3123, %v3492
    %v3494 = vpop.f32.mrf.mxu0
    %v3495 = vadd.f32 %v3119, %v3494
    %v3496 = vpop.f32.mrf.mxu0
    %v3497 = vadd.f32 %v3123, %v3496
    %3498 = vdwg.mxu0
    %3499 = vmatprep.subr.bf16.mxu0 %v3365
    %3500 = vmatpush1.bf16.msra.mxu0 %v3364
    %3501 = vmatprep.subr.bf16.mxu0 %v3363
    %3502 = vmatpush1.bf16.msra.mxu0 %v3362
    %3503 = vmatprep.subr.bf16.mxu0 %v3361
    %3504 = vmatpush1.bf16.msra.mxu0 %v3360
    %3505 = vmatprep.subr.bf16.mxu0 %v3359
    %3506 = vmatpush1.bf16.msra.mxu0 %v3358
    %3507 = vmatprep.subr.bf16.mxu0 %v3357
    %3508 = vmatpush1.bf16.msra.mxu0 %v3356
    %3509 = vmatprep.subr.bf16.mxu0 %v3355
    %3510 = vmatpush1.bf16.msra.mxu0 %v3354
    %3511 = vmatprep.subr.bf16.mxu0 %v3353
    %3512 = vmatpush1.bf16.msra.mxu0 %v3352
    %3513 = vmatprep.subr.bf16.mxu0 %v3351
    %3514 = vmatpush1.bf16.msra.mxu0 %v3350
    %3515 = vmatprep.subr.bf16.mxu0 %v3381
    %3516 = vmatpush2.bf16.msra.mxu0 %v3380
    %3517 = vmatprep.subr.bf16.mxu0 %v3379
    %3518 = vmatpush2.bf16.msra.mxu0 %v3378
    %3519 = vmatprep.subr.bf16.mxu0 %v3377
    %3520 = vmatpush2.bf16.msra.mxu0 %v3376
    %3521 = vmatprep.subr.bf16.mxu0 %v3375
    %3522 = vmatpush2.bf16.msra.mxu0 %v3374
    %3523 = vmatprep.subr.bf16.mxu0 %v3373
    %3524 = vmatpush2.bf16.msra.mxu0 %v3372
    %3525 = vmatprep.subr.bf16.mxu0 %v3371
    %3526 = vmatpush2.bf16.msra.mxu0 %v3370
    %3527 = vmatprep.subr.bf16.mxu0 %v3369
    %3528 = vmatpush2.bf16.msra.mxu0 %v3368
    %3529 = vmatprep.subr.bf16.mxu0 %v3367
    %3530 = vmatpush2.bf16.msra.mxu0 %v3366
    %3531 = vmatprep.mubr.bf16.mxu0 %v3110
    %3532 = vmatmul.mubr.bf16.gmra.mxu0 %v3109
    %v3533 = vpop.f32.mrf.mxu0
    %v3534 = vadd.f32 %v3481, %v3533
    %v3535 = vpop.f32.mrf.mxu0
    %v3536 = vadd.f32 %v3483, %v3535
    %v3537 = vpop.f32.mrf.mxu0
    %v3538 = vadd.f32 %v3485, %v3537
    %v3539 = vpop.f32.mrf.mxu0
    %v3540 = vadd.f32 %v3487, %v3539
    %3541 = vmatprep.mubr.bf16.mxu0 %v3114
    %3542 = vmatmul.mubr.bf16.gmra.mxu0 %v3113
    %v3543 = vpop.f32.mrf.mxu0
    %v3544 = vadd.f32 %v3491, %v3543
    %v3545 = vpop.f32.mrf.mxu0
    %v3546 = vadd.f32 %v3493, %v3545
    %v3547 = vpop.f32.mrf.mxu0
    %v3548 = vadd.f32 %v3495, %v3547
    %v3549 = vpop.f32.mrf.mxu0
    %v3550 = vadd.f32 %v3497, %v3549
    %3551 = vdwg.mxu0
    %v3552 = vrot.slane %v3053, 1
    %v3553 = vrot.slane %v3052, 1
    %v3554 = vsel %vm3050, %v3552, %v3553
    %v3555 = vrot.slane %v3056, 1
    %v3556 = vrot.slane %v3055, 1
    %v3557 = vsel %vm3050, %v3555, %v3556
    %v3558 = vrot.slane %v3063, 1
    %v3559 = vrot.slane %v3062, 1
    %v3560 = vsel %vm3050, %v3558, %v3559
    %v3561 = vrot.slane %v3066, 1
    %v3562 = vrot.slane %v3065, 1
    %v3563 = vsel %vm3050, %v3561, %v3562
    %v3564 = vrot.slane %v3073, 1
    %v3565 = vrot.slane %v3072, 1
    %v3566 = vsel %vm3050, %v3564, %v3565
    %v3567 = vrot.slane %v3076, 1
    %v3568 = vrot.slane %v3075, 1
    %v3569 = vsel %vm3050, %v3567, %v3568
    %v3570 = vrot.slane %v3083, 1
    %v3571 = vrot.slane %v3082, 1
    %v3572 = vsel %vm3050, %v3570, %v3571
    %v3573 = vrot.slane %v3086, 1
    %v3574 = vrot.slane %v3085, 1
    %v3575 = vsel %vm3050, %v3573, %v3574
    %v3584 = vpack.c.bf16 %v3560, %v3554
    %v3585 = vpack.c.bf16 %v3563, %v3557
    %v3586 = vpack.c.bf16 %v3572, %v3566
    %v3587 = vpack.c.bf16 %v3575, %v3569
    %v3652 = vunpack.c.l.b16 %v2962
    %v3653 = vunpack.c.h.b16 %v2962
    %v3654 = vunpack.c.l.b16 %v2963
    %v3655 = vunpack.c.h.b16 %v2963
    %v3656 = vunpack.c.l.b16 %v2964
    %v3657 = vunpack.c.h.b16 %v2964
    %v3658 = vunpack.c.l.b16 %v2965
    %v3659 = vunpack.c.h.b16 %v2965
    %v3660 = vunpack.c.l.b16 %v2966
    %v3661 = vunpack.c.h.b16 %v2966
    %v3662 = vunpack.c.l.b16 %v2967
    %v3663 = vunpack.c.h.b16 %v2967
    %v3664 = vunpack.c.l.b16 %v2968
    %v3665 = vunpack.c.h.b16 %v2968
    %v3666 = vunpack.c.l.b16 %v2969
    %v3667 = vunpack.c.h.b16 %v2969
    %v3668 = vunpack.c.l.b16 %v2970
    %v3669 = vunpack.c.h.b16 %v2970
    %v3670 = vunpack.c.l.b16 %v2971
    %v3671 = vunpack.c.h.b16 %v2971
    %v3672 = vunpack.c.l.b16 %v2972
    %v3673 = vunpack.c.h.b16 %v2972
    %v3674 = vunpack.c.l.b16 %v2973
    %v3675 = vunpack.c.h.b16 %v2973
    %v3676 = vunpack.c.l.b16 %v2974
    %v3677 = vunpack.c.h.b16 %v2974
    %v3678 = vunpack.c.l.b16 %v2975
    %v3679 = vunpack.c.h.b16 %v2975
    %v3680 = vunpack.c.l.b16 %v2976
    %v3681 = vunpack.c.h.b16 %v2976
    %v3682 = vunpack.c.l.b16 %v2977
    %v3683 = vunpack.c.h.b16 %v2977
    %v3684 = vunpack.c.l.b16 %v2978
    %v3685 = vunpack.c.h.b16 %v2978
    %v3686 = vunpack.c.l.b16 %v2979
    %v3687 = vunpack.c.h.b16 %v2979
    %v3688 = vunpack.c.l.b16 %v2980
    %v3689 = vunpack.c.h.b16 %v2980
    %v3690 = vunpack.c.l.b16 %v2981
    %v3691 = vunpack.c.h.b16 %v2981
    %v3692 = vunpack.c.l.b16 %v2982
    %v3693 = vunpack.c.h.b16 %v2982
    %v3694 = vunpack.c.l.b16 %v2983
    %v3695 = vunpack.c.h.b16 %v2983
    %v3696 = vunpack.c.l.b16 %v2984
    %v3697 = vunpack.c.h.b16 %v2984
    %v3698 = vunpack.c.l.b16 %v2985
    %v3699 = vunpack.c.h.b16 %v2985
    %v3700 = vunpack.c.l.b16 %v2986
    %v3701 = vunpack.c.h.b16 %v2986
    %v3702 = vunpack.c.l.b16 %v2987
    %v3703 = vunpack.c.h.b16 %v2987
    %v3704 = vunpack.c.l.b16 %v2988
    %v3705 = vunpack.c.h.b16 %v2988
    %v3706 = vunpack.c.l.b16 %v2989
    %v3707 = vunpack.c.h.b16 %v2989
    %v3708 = vunpack.c.l.b16 %v2990
    %v3709 = vunpack.c.h.b16 %v2990
    %v3710 = vunpack.c.l.b16 %v2991
    %v3711 = vunpack.c.h.b16 %v2991
    %v3712 = vunpack.c.l.b16 %v2992
    %v3713 = vunpack.c.h.b16 %v2992
    %v3714 = vunpack.c.l.b16 %v2993
    %v3715 = vunpack.c.h.b16 %v2993
    %v3716 = vunpack.c.l.b16 %v2994
    %v3717 = vunpack.c.h.b16 %v2994
    %v3718 = vunpack.c.l.b16 %v2995
    %v3719 = vunpack.c.h.b16 %v2995
    %v3720 = vunpack.c.l.b16 %v2996
    %v3721 = vunpack.c.h.b16 %v2996
    %v3722 = vunpack.c.l.b16 %v2997
    %v3723 = vunpack.c.h.b16 %v2997
    %v3724 = vunpack.c.l.b16 %v2998
    %v3725 = vunpack.c.h.b16 %v2998
    %v3726 = vunpack.c.l.b16 %v2999
    %v3727 = vunpack.c.h.b16 %v2999
    %v3728 = vunpack.c.l.b16 %v3000
    %v3729 = vunpack.c.h.b16 %v3000
    %v3730 = vunpack.c.l.b16 %v3001
    %v3731 = vunpack.c.h.b16 %v3001
    %v3732 = vunpack.c.l.b16 %v3002
    %v3733 = vunpack.c.h.b16 %v3002
    %v3734 = vunpack.c.l.b16 %v3003
    %v3735 = vunpack.c.h.b16 %v3003
    %v3736 = vunpack.c.l.b16 %v3004
    %v3737 = vunpack.c.h.b16 %v3004
    %v3738 = vunpack.c.l.b16 %v3005
    %v3739 = vunpack.c.h.b16 %v3005
    %v3740 = vunpack.c.l.b16 %v3006
    %v3741 = vunpack.c.h.b16 %v3006
    %v3742 = vunpack.c.l.b16 %v3007
    %v3743 = vunpack.c.h.b16 %v3007
    %v3744 = vunpack.c.l.b16 %v3008
    %v3745 = vunpack.c.h.b16 %v3008
    %v3746 = vunpack.c.l.b16 %v3009
    %v3747 = vunpack.c.h.b16 %v3009
    %v3748 = vunpack.c.l.b16 %v3010
    %v3749 = vunpack.c.h.b16 %v3010
    %v3750 = vunpack.c.l.b16 %v3011
    %v3751 = vunpack.c.h.b16 %v3011
    %v3752 = vunpack.c.l.b16 %v3012
    %v3753 = vunpack.c.h.b16 %v3012
    %v3754 = vunpack.c.l.b16 %v3013
    %v3755 = vunpack.c.h.b16 %v3013
    %v3756 = vunpack.c.l.b16 %v3014
    %v3757 = vunpack.c.h.b16 %v3014
    %v3758 = vunpack.c.l.b16 %v3015
    %v3759 = vunpack.c.h.b16 %v3015
    %v3760 = vunpack.c.l.b16 %v3016
    %v3761 = vunpack.c.h.b16 %v3016
    %v3762 = vunpack.c.l.b16 %v3017
    %v3763 = vunpack.c.h.b16 %v3017
    %v3764 = vunpack.c.l.b16 %v3018
    %v3765 = vunpack.c.h.b16 %v3018
    %v3766 = vunpack.c.l.b16 %v3019
    %v3767 = vunpack.c.h.b16 %v3019
    %v3768 = vunpack.c.l.b16 %v3020
    %v3769 = vunpack.c.h.b16 %v3020
    %v3770 = vunpack.c.l.b16 %v3021
    %v3771 = vunpack.c.h.b16 %v3021
    %v3772 = vunpack.c.l.b16 %v3022
    %v3773 = vunpack.c.h.b16 %v3022
    %v3774 = vunpack.c.l.b16 %v3023
    %v3775 = vunpack.c.h.b16 %v3023
    %v3776 = vunpack.c.l.b16 %v3024
    %v3777 = vunpack.c.h.b16 %v3024
    %v3778 = vunpack.c.l.b16 %v3025
    %v3779 = vunpack.c.h.b16 %v3025
    %v3780 = vpack.c.b16 %v3654, %v3652
    %v3781 = vpack.c.b16 %v3655, %v3653
    %v3782 = vpack.c.b16 %v3658, %v3656
    %v3783 = vpack.c.b16 %v3659, %v3657
    %v3784 = vpack.c.b16 %v3662, %v3660
    %v3785 = vpack.c.b16 %v3663, %v3661
    %v3786 = vpack.c.b16 %v3666, %v3664
    %v3787 = vpack.c.b16 %v3667, %v3665
    %v3788 = vpack.c.b16 %v3670, %v3668
    %v3789 = vpack.c.b16 %v3671, %v3669
    %v3790 = vpack.c.b16 %v3674, %v3672
    %v3791 = vpack.c.b16 %v3675, %v3673
    %v3792 = vpack.c.b16 %v3678, %v3676
    %v3793 = vpack.c.b16 %v3679, %v3677
    %v3794 = vpack.c.b16 %v3682, %v3680
    %v3795 = vpack.c.b16 %v3683, %v3681
    %v3796 = vpack.c.b16 %v3686, %v3684
    %v3797 = vpack.c.b16 %v3687, %v3685
    %v3798 = vpack.c.b16 %v3690, %v3688
    %v3799 = vpack.c.b16 %v3691, %v3689
    %v3800 = vpack.c.b16 %v3694, %v3692
    %v3801 = vpack.c.b16 %v3695, %v3693
    %v3802 = vpack.c.b16 %v3698, %v3696
    %v3803 = vpack.c.b16 %v3699, %v3697
    %v3804 = vpack.c.b16 %v3702, %v3700
    %v3805 = vpack.c.b16 %v3703, %v3701
    %v3806 = vpack.c.b16 %v3706, %v3704
    %v3807 = vpack.c.b16 %v3707, %v3705
    %v3808 = vpack.c.b16 %v3710, %v3708
    %v3809 = vpack.c.b16 %v3711, %v3709
    %v3810 = vpack.c.b16 %v3714, %v3712
    %v3811 = vpack.c.b16 %v3715, %v3713
    %v3812 = vpack.c.b16 %v3718, %v3716
    %v3813 = vpack.c.b16 %v3719, %v3717
    %v3814 = vpack.c.b16 %v3722, %v3720
    %v3815 = vpack.c.b16 %v3723, %v3721
    %v3816 = vpack.c.b16 %v3726, %v3724
    %v3817 = vpack.c.b16 %v3727, %v3725
    %v3818 = vpack.c.b16 %v3730, %v3728
    %v3819 = vpack.c.b16 %v3731, %v3729
    %v3820 = vpack.c.b16 %v3734, %v3732
    %v3821 = vpack.c.b16 %v3735, %v3733
    %v3822 = vpack.c.b16 %v3738, %v3736
    %v3823 = vpack.c.b16 %v3739, %v3737
    %v3824 = vpack.c.b16 %v3742, %v3740
    %v3825 = vpack.c.b16 %v3743, %v3741
    %v3826 = vpack.c.b16 %v3746, %v3744
    %v3827 = vpack.c.b16 %v3747, %v3745
    %v3828 = vpack.c.b16 %v3750, %v3748
    %v3829 = vpack.c.b16 %v3751, %v3749
    %v3830 = vpack.c.b16 %v3754, %v3752
    %v3831 = vpack.c.b16 %v3755, %v3753
    %v3832 = vpack.c.b16 %v3758, %v3756
    %v3833 = vpack.c.b16 %v3759, %v3757
    %v3834 = vpack.c.b16 %v3762, %v3760
    %v3835 = vpack.c.b16 %v3763, %v3761
    %v3836 = vpack.c.b16 %v3766, %v3764
    %v3837 = vpack.c.b16 %v3767, %v3765
    %v3838 = vpack.c.b16 %v3770, %v3768
    %v3839 = vpack.c.b16 %v3771, %v3769
    %v3840 = vpack.c.b16 %v3774, %v3772
    %v3841 = vpack.c.b16 %v3775, %v3773
    %v3842 = vpack.c.b16 %v3778, %v3776
    %v3843 = vpack.c.b16 %v3779, %v3777
    %3908 = vmatprep.subr.bf16.mxu0 %v3795
    %3909 = vmatpush1.bf16.msra.mxu0 %v3794
    %3910 = vmatprep.subr.bf16.mxu0 %v3793
    %3911 = vmatpush1.bf16.msra.mxu0 %v3792
    %3912 = vmatprep.subr.bf16.mxu0 %v3791
    %3913 = vmatpush1.bf16.msra.mxu0 %v3790
    %3914 = vmatprep.subr.bf16.mxu0 %v3789
    %3915 = vmatpush1.bf16.msra.mxu0 %v3788
    %3916 = vmatprep.subr.bf16.mxu0 %v3787
    %3917 = vmatpush1.bf16.msra.mxu0 %v3786
    %3918 = vmatprep.subr.bf16.mxu0 %v3785
    %3919 = vmatpush1.bf16.msra.mxu0 %v3784
    %3920 = vmatprep.subr.bf16.mxu0 %v3783
    %3921 = vmatpush1.bf16.msra.mxu0 %v3782
    %3922 = vmatprep.subr.bf16.mxu0 %v3781
    %3923 = vmatpush1.bf16.msra.mxu0 %v3780
    %3924 = vmatprep.subr.bf16.mxu0 %v3811
    %3925 = vmatpush2.bf16.msra.mxu0 %v3810
    %3926 = vmatprep.subr.bf16.mxu0 %v3809
    %3927 = vmatpush2.bf16.msra.mxu0 %v3808
    %3928 = vmatprep.subr.bf16.mxu0 %v3807
    %3929 = vmatpush2.bf16.msra.mxu0 %v3806
    %3930 = vmatprep.subr.bf16.mxu0 %v3805
    %3931 = vmatpush2.bf16.msra.mxu0 %v3804
    %3932 = vmatprep.subr.bf16.mxu0 %v3803
    %3933 = vmatpush2.bf16.msra.mxu0 %v3802
    %3934 = vmatprep.subr.bf16.mxu0 %v3801
    %3935 = vmatpush2.bf16.msra.mxu0 %v3800
    %3936 = vmatprep.subr.bf16.mxu0 %v3799
    %3937 = vmatpush2.bf16.msra.mxu0 %v3798
    %3938 = vmatprep.subr.bf16.mxu0 %v3797
    %3939 = vmatpush2.bf16.msra.mxu0 %v3796
    %3940 = vmatprep.mubr.bf16.mxu0 %v3108
    %3941 = vmatmul.mubr.bf16.gmra.mxu0 %v3107
    %v3942 = vpop.f32.mrf.mxu0
    %v3943 = vadd.f32 %v3119, %v3942
    %v3944 = vpop.f32.mrf.mxu0
    %v3945 = vadd.f32 %v3123, %v3944
    %v3946 = vpop.f32.mrf.mxu0
    %v3947 = vadd.f32 %v3119, %v3946
    %v3948 = vpop.f32.mrf.mxu0
    %v3949 = vadd.f32 %v3123, %v3948
    %3950 = vmatprep.mubr.bf16.mxu0 %v3112
    %3951 = vmatmul.mubr.bf16.gmra.mxu0 %v3111
    %v3952 = vpop.f32.mrf.mxu0
    %v3953 = vadd.f32 %v3119, %v3952
    %v3954 = vpop.f32.mrf.mxu0
    %v3955 = vadd.f32 %v3123, %v3954
    %v3956 = vpop.f32.mrf.mxu0
    %v3957 = vadd.f32 %v3119, %v3956
    %v3958 = vpop.f32.mrf.mxu0
    %v3959 = vadd.f32 %v3123, %v3958
    %3960 = vdwg.mxu0
    %3961 = vmatprep.subr.bf16.mxu0 %v3827
    %3962 = vmatpush1.bf16.msra.mxu0 %v3826
    %3963 = vmatprep.subr.bf16.mxu0 %v3825
    %3964 = vmatpush1.bf16.msra.mxu0 %v3824
    %3965 = vmatprep.subr.bf16.mxu0 %v3823
    %3966 = vmatpush1.bf16.msra.mxu0 %v3822
    %3967 = vmatprep.subr.bf16.mxu0 %v3821
    %3968 = vmatpush1.bf16.msra.mxu0 %v3820
    %3969 = vmatprep.subr.bf16.mxu0 %v3819
    %3970 = vmatpush1.bf16.msra.mxu0 %v3818
    %3971 = vmatprep.subr.bf16.mxu0 %v3817
    %3972 = vmatpush1.bf16.msra.mxu0 %v3816
    %3973 = vmatprep.subr.bf16.mxu0 %v3815
    %3974 = vmatpush1.bf16.msra.mxu0 %v3814
    %3975 = vmatprep.subr.bf16.mxu0 %v3813
    %3976 = vmatpush1.bf16.msra.mxu0 %v3812
    %3977 = vmatprep.subr.bf16.mxu0 %v3843
    %3978 = vmatpush2.bf16.msra.mxu0 %v3842
    %3979 = vmatprep.subr.bf16.mxu0 %v3841
    %3980 = vmatpush2.bf16.msra.mxu0 %v3840
    %3981 = vmatprep.subr.bf16.mxu0 %v3839
    %3982 = vmatpush2.bf16.msra.mxu0 %v3838
    %3983 = vmatprep.subr.bf16.mxu0 %v3837
    %3984 = vmatpush2.bf16.msra.mxu0 %v3836
    %3985 = vmatprep.subr.bf16.mxu0 %v3835
    %3986 = vmatpush2.bf16.msra.mxu0 %v3834
    %3987 = vmatprep.subr.bf16.mxu0 %v3833
    %3988 = vmatpush2.bf16.msra.mxu0 %v3832
    %3989 = vmatprep.subr.bf16.mxu0 %v3831
    %3990 = vmatpush2.bf16.msra.mxu0 %v3830
    %3991 = vmatprep.subr.bf16.mxu0 %v3829
    %3992 = vmatpush2.bf16.msra.mxu0 %v3828
    %3993 = vmatprep.mubr.bf16.mxu0 %v3585
    %3994 = vmatmul.mubr.bf16.gmra.mxu0 %v3584
    %v3995 = vpop.f32.mrf.mxu0
    %v3996 = vadd.f32 %v3943, %v3995
    %v3997 = vpop.f32.mrf.mxu0
    %v3998 = vadd.f32 %v3945, %v3997
    %v3999 = vpop.f32.mrf.mxu0
    %v4000 = vadd.f32 %v3947, %v3999
    %v4001 = vpop.f32.mrf.mxu0
    %v4002 = vadd.f32 %v3949, %v4001
    %4003 = vmatprep.mubr.bf16.mxu0 %v3587
    %4004 = vmatmul.mubr.bf16.gmra.mxu0 %v3586
    %v4005 = vpop.f32.mrf.mxu0
    %v4006 = vadd.f32 %v3953, %v4005
    %v4007 = vpop.f32.mrf.mxu0
    %v4008 = vadd.f32 %v3955, %v4007
    %v4009 = vpop.f32.mrf.mxu0
    %v4010 = vadd.f32 %v3957, %v4009
    %v4011 = vpop.f32.mrf.mxu0
    %v4012 = vadd.f32 %v3959, %v4011
    %4013 = vdwg.mxu0
    %v4014 = vmax.f32 %v3534, 0.0
    %v4015 = vmax.f32 %v3536, 0.0
    %v4016 = vmax.f32 %v3538, 0.0
    %v4017 = vmax.f32 %v3540, 0.0
    %v4018 = vmax.f32 %v3544, 0.0
    %v4019 = vmax.f32 %v3546, 0.0
    %v4020 = vmax.f32 %v3548, 0.0
    %v4021 = vmax.f32 %v3550, 0.0
    %v4022 = vmax.f32 %v3996, 0.0
    %v4023 = vmax.f32 %v3998, 0.0
    %v4024 = vmax.f32 %v4000, 0.0
    %v4025 = vmax.f32 %v4002, 0.0
    %v4026 = vmax.f32 %v4006, 0.0
    %v4027 = vmax.f32 %v4008, 0.0
    %v4028 = vmax.f32 %v4010, 0.0
    %v4029 = vmax.f32 %v4012, 0.0
    %v4046 = vcombine.low %v4014, %v4015
    %v4047 = vcombine.high %v4014, %v4015
    %v4048 = vcombine.low %v4022, %v4023
    %v4049 = vcombine.high %v4022, %v4023
    %v4051 = vunpack.c.l.s4 1983009808
    %v4052 = vunpack.c.0.s8 %v4051
    %v4053 = vlaneseq
    %v4054 = vshrl.u32 %v4053, 7
    %v4055 = vsub.s32 %v4052, %v4054
    %v4056 = vrot.slane %v4046, %v4055
    %v4058 = vunpack.c.l.s4 1983009808
    %v4059 = vunpack.c.0.s8 %v4058
    %v4060 = vlaneseq
    %v4061 = vshrl.u32 %v4060, 7
    %v4062 = vsub.s32 %v4059, %v4061
    %v4063 = vrot.slane %v4047, %v4062
    %v4065 = vunpack.c.l.s4 1983009808
    %v4066 = vunpack.c.0.s8 %v4065
    %v4067 = vlaneseq
    %v4068 = vshrl.u32 %v4067, 7
    %v4069 = vsub.s32 %v4066, %v4068
    %v4070 = vrot.slane %v4048, %v4069
    %v4072 = vunpack.c.l.s4 1983009808
    %v4073 = vunpack.c.0.s8 %v4072
    %v4074 = vlaneseq
    %v4075 = vshrl.u32 %v4074, 7
    %v4076 = vsub.s32 %v4073, %v4075
    %v4077 = vrot.slane %v4049, %v4076
    %v4078 = vcombine.low %v4056, %v4070
    %v4079 = vcombine.high %v4056, %v4070
    %v4080 = vcombine.low %v4063, %v4077
    %v4081 = vcombine.high %v4063, %v4077
    %v4082 = vcombine.low %v4016, %v4017
    %v4083 = vcombine.high %v4016, %v4017
    %v4084 = vcombine.low %v4024, %v4025
    %v4085 = vcombine.high %v4024, %v4025
    %v4087 = vunpack.c.l.s4 1983009808
    %v4088 = vunpack.c.0.s8 %v4087
    %v4089 = vlaneseq
    %v4090 = vshrl.u32 %v4089, 7
    %v4091 = vsub.s32 %v4088, %v4090
    %v4092 = vrot.slane %v4082, %v4091
    %v4094 = vunpack.c.l.s4 1983009808
    %v4095 = vunpack.c.0.s8 %v4094
    %v4096 = vlaneseq
    %v4097 = vshrl.u32 %v4096, 7
    %v4098 = vsub.s32 %v4095, %v4097
    %v4099 = vrot.slane %v4083, %v4098
    %v4101 = vunpack.c.l.s4 1983009808
    %v4102 = vunpack.c.0.s8 %v4101
    %v4103 = vlaneseq
    %v4104 = vshrl.u32 %v4103, 7
    %v4105 = vsub.s32 %v4102, %v4104
    %v4106 = vrot.slane %v4084, %v4105
    %v4108 = vunpack.c.l.s4 1983009808
    %v4109 = vunpack.c.0.s8 %v4108
    %v4110 = vlaneseq
    %v4111 = vshrl.u32 %v4110, 7
    %v4112 = vsub.s32 %v4109, %v4111
    %v4113 = vrot.slane %v4085, %v4112
    %v4114 = vcombine.low %v4092, %v4106
    %v4115 = vcombine.high %v4092, %v4106
    %v4116 = vcombine.low %v4099, %v4113
    %v4117 = vcombine.high %v4099, %v4113
    %v4118 = vcombine.low %v4018, %v4019
    %v4119 = vcombine.high %v4018, %v4019
    %v4120 = vcombine.low %v4026, %v4027
    %v4121 = vcombine.high %v4026, %v4027
    %v4123 = vunpack.c.l.s4 1983009808
    %v4124 = vunpack.c.0.s8 %v4123
    %v4125 = vlaneseq
    %v4126 = vshrl.u32 %v4125, 7
    %v4127 = vsub.s32 %v4124, %v4126
    %v4128 = vrot.slane %v4118, %v4127
    %v4130 = vunpack.c.l.s4 1983009808
    %v4131 = vunpack.c.0.s8 %v4130
    %v4132 = vlaneseq
    %v4133 = vshrl.u32 %v4132, 7
    %v4134 = vsub.s32 %v4131, %v4133
    %v4135 = vrot.slane %v4119, %v4134
    %v4137 = vunpack.c.l.s4 1983009808
    %v4138 = vunpack.c.0.s8 %v4137
    %v4139 = vlaneseq
    %v4140 = vshrl.u32 %v4139, 7
    %v4141 = vsub.s32 %v4138, %v4140
    %v4142 = vrot.slane %v4120, %v4141
    %v4144 = vunpack.c.l.s4 1983009808
    %v4145 = vunpack.c.0.s8 %v4144
    %v4146 = vlaneseq
    %v4147 = vshrl.u32 %v4146, 7
    %v4148 = vsub.s32 %v4145, %v4147
    %v4149 = vrot.slane %v4121, %v4148
    %v4150 = vcombine.low %v4128, %v4142
    %v4151 = vcombine.high %v4128, %v4142
    %v4152 = vcombine.low %v4135, %v4149
    %v4153 = vcombine.high %v4135, %v4149
    %v4154 = vcombine.low %v4020, %v4021
    %v4155 = vcombine.high %v4020, %v4021
    %v4156 = vcombine.low %v4028, %v4029
    %v4157 = vcombine.high %v4028, %v4029
    %v4159 = vunpack.c.l.s4 1983009808
    %v4160 = vunpack.c.0.s8 %v4159
    %v4161 = vlaneseq
    %v4162 = vshrl.u32 %v4161, 7
    %v4163 = vsub.s32 %v4160, %v4162
    %v4164 = vrot.slane %v4154, %v4163
    %v4166 = vunpack.c.l.s4 1983009808
    %v4167 = vunpack.c.0.s8 %v4166
    %v4168 = vlaneseq
    %v4169 = vshrl.u32 %v4168, 7
    %v4170 = vsub.s32 %v4167, %v4169
    %v4171 = vrot.slane %v4155, %v4170
    %v4173 = vunpack.c.l.s4 1983009808
    %v4174 = vunpack.c.0.s8 %v4173
    %v4175 = vlaneseq
    %v4176 = vshrl.u32 %v4175, 7
    %v4177 = vsub.s32 %v4174, %v4176
    %v4178 = vrot.slane %v4156, %v4177
    %v4180 = vunpack.c.l.s4 1983009808
    %v4181 = vunpack.c.0.s8 %v4180
    %v4182 = vlaneseq
    %v4183 = vshrl.u32 %v4182, 7
    %v4184 = vsub.s32 %v4181, %v4183
    %v4185 = vrot.slane %v4157, %v4184
    %v4186 = vcombine.low %v4164, %v4178
    %v4187 = vcombine.high %v4164, %v4178
    %v4188 = vcombine.low %v4171, %v4185
    %v4189 = vcombine.high %v4171, %v4185
    %v4207 = vunpack.c.l.s4 1935823168
    %v4208 = vunpack.c.0.s8 %v4207
    %v4209 = vlaneseq
    %v4210 = vshrl.u32 %v4209, 7
    %v4211 = vsub.s32 %v4208, %v4210
    %v4212 = vrot.slane %v4078, %v4211
    %v4214 = vunpack.c.l.s4 1935823168
    %v4215 = vunpack.c.0.s8 %v4214
    %v4216 = vlaneseq
    %v4217 = vshrl.u32 %v4216, 7
    %v4218 = vsub.s32 %v4215, %v4217
    %v4219 = vrot.slane %v4079, %v4218
    %v4221 = vunpack.c.l.s4 1935823168
    %v4222 = vunpack.c.0.s8 %v4221
    %v4223 = vlaneseq
    %v4224 = vshrl.u32 %v4223, 7
    %v4225 = vsub.s32 %v4222, %v4224
    %v4226 = vrot.slane %v4080, %v4225
    %v4228 = vunpack.c.l.s4 1935823168
    %v4229 = vunpack.c.0.s8 %v4228
    %v4230 = vlaneseq
    %v4231 = vshrl.u32 %v4230, 7
    %v4232 = vsub.s32 %v4229, %v4231
    %v4233 = vrot.slane %v4081, %v4232
    %v4235 = vunpack.c.l.s4 1935823168
    %v4236 = vunpack.c.0.s8 %v4235
    %v4237 = vlaneseq
    %v4238 = vshrl.u32 %v4237, 7
    %v4239 = vsub.s32 %v4236, %v4238
    %v4240 = vrot.slane %v4114, %v4239
    %v4242 = vunpack.c.l.s4 1935823168
    %v4243 = vunpack.c.0.s8 %v4242
    %v4244 = vlaneseq
    %v4245 = vshrl.u32 %v4244, 7
    %v4246 = vsub.s32 %v4243, %v4245
    %v4247 = vrot.slane %v4115, %v4246
    %v4249 = vunpack.c.l.s4 1935823168
    %v4250 = vunpack.c.0.s8 %v4249
    %v4251 = vlaneseq
    %v4252 = vshrl.u32 %v4251, 7
    %v4253 = vsub.s32 %v4250, %v4252
    %v4254 = vrot.slane %v4116, %v4253
    %v4256 = vunpack.c.l.s4 1935823168
    %v4257 = vunpack.c.0.s8 %v4256
    %v4258 = vlaneseq
    %v4259 = vshrl.u32 %v4258, 7
    %v4260 = vsub.s32 %v4257, %v4259
    %v4261 = vrot.slane %v4117, %v4260
    %v4263 = vunpack.c.l.s4 1935823168
    %v4264 = vunpack.c.0.s8 %v4263
    %v4265 = vlaneseq
    %v4266 = vshrl.u32 %v4265, 7
    %v4267 = vsub.s32 %v4264, %v4266
    %v4268 = vrot.slane %v4150, %v4267
    %v4270 = vunpack.c.l.s4 1935823168
    %v4271 = vunpack.c.0.s8 %v4270
    %v4272 = vlaneseq
    %v4273 = vshrl.u32 %v4272, 7
    %v4274 = vsub.s32 %v4271, %v4273
    %v4275 = vrot.slane %v4151, %v4274
    %v4277 = vunpack.c.l.s4 1935823168
    %v4278 = vunpack.c.0.s8 %v4277
    %v4279 = vlaneseq
    %v4280 = vshrl.u32 %v4279, 7
    %v4281 = vsub.s32 %v4278, %v4280
    %v4282 = vrot.slane %v4152, %v4281
    %v4284 = vunpack.c.l.s4 1935823168
    %v4285 = vunpack.c.0.s8 %v4284
    %v4286 = vlaneseq
    %v4287 = vshrl.u32 %v4286, 7
    %v4288 = vsub.s32 %v4285, %v4287
    %v4289 = vrot.slane %v4153, %v4288
    %v4291 = vunpack.c.l.s4 1935823168
    %v4292 = vunpack.c.0.s8 %v4291
    %v4293 = vlaneseq
    %v4294 = vshrl.u32 %v4293, 7
    %v4295 = vsub.s32 %v4292, %v4294
    %v4296 = vrot.slane %v4186, %v4295
    %v4298 = vunpack.c.l.s4 1935823168
    %v4299 = vunpack.c.0.s8 %v4298
    %v4300 = vlaneseq
    %v4301 = vshrl.u32 %v4300, 7
    %v4302 = vsub.s32 %v4299, %v4301
    %v4303 = vrot.slane %v4187, %v4302
    %v4305 = vunpack.c.l.s4 1935823168
    %v4306 = vunpack.c.0.s8 %v4305
    %v4307 = vlaneseq
    %v4308 = vshrl.u32 %v4307, 7
    %v4309 = vsub.s32 %v4306, %v4308
    %v4310 = vrot.slane %v4188, %v4309
    %v4312 = vunpack.c.l.s4 1935823168
    %v4313 = vunpack.c.0.s8 %v4312
    %v4314 = vlaneseq
    %v4315 = vshrl.u32 %v4314, 7
    %v4316 = vsub.s32 %v4313, %v4315
    %v4317 = vrot.slane %v4189, %v4316
    %4318 = vst.msk [vmem:[#allocation4] ss:$8 sm:$0x3] %vm1215, 0.0
    %4319 = vst.msk [vmem:[#allocation4] ss:$8 sm:$0x0] %vm1215, 0.0
    %s4320 = scalar_lea.vmem [#allocation4], 48
    %4321 = vst.msk [vmem:[%s4320] ss:$8 sm:$0x3] %vm1215, 0.0
    %4322 = vst.msk [vmem:[%s4320] ss:$8 sm:$0x0] %vm1215, 0.0
    %s4323 = scalar_lea.vmem [#allocation4], 96
    %4324 = vst.msk [vmem:[%s4323] ss:$8 sm:$0x3] %vm1215, 0.0
    %4325 = vst.msk [vmem:[%s4323] ss:$8 sm:$0x0] %vm1215, 0.0
    %s4326 = scalar_lea.vmem [#allocation4], 144
    %4327 = vst.msk [vmem:[%s4326] ss:$8 sm:$0x3] %vm1215, 0.0
    %4328 = vst.msk [vmem:[%s4326] ss:$8 sm:$0x0] %vm1215, 0.0
    %s4329 = scalar_lea.vmem [#allocation4], 33
    %4330 = vst.msk [vmem:[%s4329] ss:$8 sm:$0x3] %vm1215, 0.0
    %4331 = vst.msk [vmem:[%s4329] ss:$8 sm:$0x0] %vm1215, 0.0
    %s4332 = scalar_lea.vmem [#allocation4], 81
    %4333 = vst.msk [vmem:[%s4332] ss:$8 sm:$0x3] %vm1215, 0.0
    %4334 = vst.msk [vmem:[%s4332] ss:$8 sm:$0x0] %vm1215, 0.0
    %s4335 = scalar_lea.vmem [#allocation4], 129
    %4336 = vst.msk [vmem:[%s4335] ss:$8 sm:$0x3] %vm1215, 0.0
    %4337 = vst.msk [vmem:[%s4335] ss:$8 sm:$0x0] %vm1215, 0.0
    %s4338 = scalar_lea.vmem [#allocation4], 177
    %4339 = vst.msk [vmem:[%s4338] ss:$8 sm:$0x3] %vm1215, 0.0
    %4340 = vst.msk [vmem:[%s4338] ss:$8 sm:$0x0] %vm1215, 0.0
    %v4357 = vcombine.low %v4212, %v4219
    %v4358 = vcombine.high %v4212, %v4219
    %v4359 = vcombine.low %v4226, %v4233
    %v4360 = vcombine.high %v4226, %v4233
    %v4361 = vcombine.low %v4240, %v4247
    %v4362 = vcombine.high %v4240, %v4247
    %v4363 = vcombine.low %v4254, %v4261
    %v4364 = vcombine.high %v4254, %v4261
    %v4365 = vcombine.low %v4268, %v4275
    %v4366 = vcombine.high %v4268, %v4275
    %v4367 = vcombine.low %v4282, %v4289
    %v4368 = vcombine.high %v4282, %v4289
    %v4369 = vcombine.low %v4296, %v4303
    %v4370 = vcombine.high %v4296, %v4303
    %v4371 = vcombine.low %v4310, %v4317
    %v4372 = vcombine.high %v4310, %v4317
    %vm4373 = vcmask 1040384
    %v4374 = vrot.slane %v4357, 7
    %v4375 = vrot.slane %v4358, 7
    %v4376 = vrot.slane %v4359, 7
    %v4377 = vsel %vm4373, %v4374, %v4376
    %v4378 = vrot.slane %v4360, 7
    %v4379 = vsel %vm4373, %v4375, %v4378
    %v4380 = vrot.slane %v4361, 7
    %v4381 = vrot.slane %v4362, 7
    %v4382 = vrot.slane %v4363, 7
    %v4383 = vsel %vm4373, %v4380, %v4382
    %v4384 = vrot.slane %v4364, 7
    %v4385 = vsel %vm4373, %v4381, %v4384
    %v4386 = vrot.slane %v4365, 7
    %v4387 = vrot.slane %v4366, 7
    %v4388 = vrot.slane %v4367, 7
    %v4389 = vsel %vm4373, %v4386, %v4388
    %v4390 = vrot.slane %v4368, 7
    %v4391 = vsel %vm4373, %v4387, %v4390
    %v4392 = vrot.slane %v4369, 7
    %v4393 = vrot.slane %v4370, 7
    %v4394 = vrot.slane %v4371, 7
    %v4395 = vsel %vm4373, %v4392, %v4394
    %v4396 = vrot.slane %v4372, 7
    %v4397 = vsel %vm4373, %v4393, %v4396
    %4422 = vst [vmem:[#allocation4] sm:$0xfe] %v4374
    %4423 = vst [vmem:[#allocation4 + $0x8] sm:$0xfe] %v4375
    %4424 = vst [vmem:[#allocation4 + $0x10] sm:$0xff] %v4377
    %4425 = vst [vmem:[#allocation4 + $0x18] sm:$0xff] %v4379
    %4426 = vst [vmem:[#allocation4 + $0x20] sm:$0x1] %v4376
    %4427 = vst [vmem:[#allocation4 + $0x28] sm:$0x1] %v4378
    %4428 = vst [vmem:[#allocation4 + $0x30] sm:$0xfe] %v4380
    %4429 = vst [vmem:[#allocation4 + $0x38] sm:$0xfe] %v4381
    %4430 = vst [vmem:[#allocation4 + $0x40] sm:$0xff] %v4383
    %4431 = vst [vmem:[#allocation4 + $0x48] sm:$0xff] %v4385
    %4432 = vst [vmem:[#allocation4 + $0x50] sm:$0x1] %v4382
    %4433 = vst [vmem:[#allocation4 + $0x58] sm:$0x1] %v4384
    %4434 = vst [vmem:[#allocation4 + $0x60] sm:$0xfe] %v4386
    %4435 = vst [vmem:[#allocation4 + $0x68] sm:$0xfe] %v4387
    %4436 = vst [vmem:[#allocation4 + $0x70] sm:$0xff] %v4389
    %4437 = vst [vmem:[#allocation4 + $0x78] sm:$0xff] %v4391
    %4438 = vst [vmem:[#allocation4 + $0x80] sm:$0x1] %v4388
    %4439 = vst [vmem:[#allocation4 + $0x88] sm:$0x1] %v4390
    %4440 = vst [vmem:[#allocation4 + $0x90] sm:$0xfe] %v4392
    %4441 = vst [vmem:[#allocation4 + $0x98] sm:$0xfe] %v4393
    %4442 = vst [vmem:[#allocation4 + $0xa0] sm:$0xff] %v4395
    %4443 = vst [vmem:[#allocation4 + $0xa8] sm:$0xff] %v4397
    %4444 = vst [vmem:[#allocation4 + $0xb0] sm:$0x1] %v4394
    %4445 = vst [vmem:[#allocation4 + $0xb8] sm:$0x1] %v4396
    %v4446 = vld [vmem:[%s21] sm:$0x1]
    %v4447 = vld [vmem:[#allocation4] sm:$0xff]
    %v4448 = vld [vmem:[#allocation4 + $0x8] sm:$0xff]
    %v4449 = vld [vmem:[#allocation4 + $0x10] sm:$0xff]
    %v4450 = vld [vmem:[#allocation4 + $0x18] sm:$0xff]
    %v4451 = vld [vmem:[#allocation4 + $0x20] sm:$0x3]
    %v4452 = vld [vmem:[#allocation4 + $0x28] sm:$0x3]
    %v4453 = vld [vmem:[#allocation4 + $0x30] sm:$0xff]
    %v4454 = vld [vmem:[#allocation4 + $0x38] sm:$0xff]
    %v4455 = vld [vmem:[#allocation4 + $0x40] sm:$0xff]
    %v4456 = vld [vmem:[#allocation4 + $0x48] sm:$0xff]
    %v4457 = vld [vmem:[#allocation4 + $0x50] sm:$0x3]
    %v4458 = vld [vmem:[#allocation4 + $0x58] sm:$0x3]
    %v4459 = vld [vmem:[#allocation4 + $0x60] sm:$0xff]
    %v4460 = vld [vmem:[#allocation4 + $0x68] sm:$0xff]
    %v4461 = vld [vmem:[#allocation4 + $0x70] sm:$0xff]
    %v4462 = vld [vmem:[#allocation4 + $0x78] sm:$0xff]
    %v4463 = vld [vmem:[#allocation4 + $0x80] sm:$0x3]
    %v4464 = vld [vmem:[#allocation4 + $0x88] sm:$0x3]
    %v4465 = vld [vmem:[#allocation4 + $0x90] sm:$0xff]
    %v4466 = vld [vmem:[#allocation4 + $0x98] sm:$0xff]
    %v4467 = vld [vmem:[#allocation4 + $0xa0] sm:$0xff]
    %v4468 = vld [vmem:[#allocation4 + $0xa8] sm:$0xff]
    %v4469 = vld [vmem:[#allocation4 + $0xb0] sm:$0x3]
    %v4470 = vld [vmem:[#allocation4 + $0xb8] sm:$0x3]
    %v4471 = vld [vmem:[#allocation19] sm:$0xf]
    %v4472 = vld [vmem:[#allocation19 + $0x4] sm:$0xf]
    %v4473 = vld [vmem:[#allocation19 + $0x8] sm:$0xf]
    %v4474 = vld [vmem:[#allocation19 + $0xc] sm:$0xf]
    %v4475 = vld [vmem:[#allocation19 + $0x10] sm:$0xf]
    %v4476 = vld [vmem:[#allocation19 + $0x14] sm:$0xf]
    %v4477 = vld [vmem:[#allocation19 + $0x18] sm:$0xf]
    %v4478 = vld [vmem:[#allocation19 + $0x1c] sm:$0xf]
    %v4479 = vld [vmem:[#allocation19 + $0x20] sm:$0xf]
    %v4480 = vld [vmem:[#allocation19 + $0x24] sm:$0xf]
    %v4481 = vld [vmem:[#allocation19 + $0x28] sm:$0xf]
    %v4482 = vld [vmem:[#allocation19 + $0x2c] sm:$0xf]
    %v4483 = vld [vmem:[#allocation19 + $0x30] sm:$0xf]
    %v4484 = vld [vmem:[#allocation19 + $0x34] sm:$0xf]
    %v4485 = vld [vmem:[#allocation19 + $0x38] sm:$0xf]
    %v4486 = vld [vmem:[#allocation19 + $0x3c] sm:$0xf]
    %v4487 = vld [vmem:[#allocation19 + $0x40] sm:$0xf]
    %v4488 = vld [vmem:[#allocation19 + $0x44] sm:$0xf]
    %v4489 = vld [vmem:[#allocation19 + $0x48] sm:$0xf]
    %v4490 = vld [vmem:[#allocation19 + $0x4c] sm:$0xf]
    %v4491 = vld [vmem:[#allocation19 + $0x50] sm:$0xf]
    %v4492 = vld [vmem:[#allocation19 + $0x54] sm:$0xf]
    %v4493 = vld [vmem:[#allocation19 + $0x58] sm:$0xf]
    %v4494 = vld [vmem:[#allocation19 + $0x5c] sm:$0xf]
    %v4495 = vld [vmem:[#allocation19 + $0x60] sm:$0xf]
    %v4496 = vld [vmem:[#allocation19 + $0x64] sm:$0xf]
    %v4497 = vld [vmem:[#allocation19 + $0x68] sm:$0xf]
    %v4498 = vld [vmem:[#allocation19 + $0x6c] sm:$0xf]
    %v4499 = vld [vmem:[#allocation19 + $0x70] sm:$0xf]
    %v4500 = vld [vmem:[#allocation19 + $0x74] sm:$0xf]
    %v4501 = vld [vmem:[#allocation19 + $0x78] sm:$0xf]
    %v4502 = vld [vmem:[#allocation19 + $0x7c] sm:$0xf]
    %v4503 = vld [vmem:[#allocation19 + $0x80] sm:$0xf]
    %v4504 = vld [vmem:[#allocation19 + $0x84] sm:$0xf]
    %v4505 = vld [vmem:[#allocation19 + $0x88] sm:$0xf]
    %v4506 = vld [vmem:[#allocation19 + $0x8c] sm:$0xf]
    %v4507 = vld [vmem:[#allocation19 + $0x90] sm:$0xf]
    %v4508 = vld [vmem:[#allocation19 + $0x94] sm:$0xf]
    %v4509 = vld [vmem:[#allocation19 + $0x98] sm:$0xf]
    %v4510 = vld [vmem:[#allocation19 + $0x9c] sm:$0xf]
    %v4511 = vld [vmem:[#allocation19 + $0xa0] sm:$0xf]
    %v4512 = vld [vmem:[#allocation19 + $0xa4] sm:$0xf]
    %v4513 = vld [vmem:[#allocation19 + $0xa8] sm:$0xf]
    %v4514 = vld [vmem:[#allocation19 + $0xac] sm:$0xf]
    %v4515 = vld [vmem:[#allocation19 + $0xb0] sm:$0xf]
    %v4516 = vld [vmem:[#allocation19 + $0xb4] sm:$0xf]
    %v4517 = vld [vmem:[#allocation19 + $0xb8] sm:$0xf]
    %v4518 = vld [vmem:[#allocation19 + $0xbc] sm:$0xf]
    %v4519 = vld [vmem:[#allocation19 + $0xc0] sm:$0xf]
    %v4520 = vld [vmem:[#allocation19 + $0xc4] sm:$0xf]
    %v4521 = vld [vmem:[#allocation19 + $0xc8] sm:$0xf]
    %v4522 = vld [vmem:[#allocation19 + $0xcc] sm:$0xf]
    %v4523 = vld [vmem:[#allocation19 + $0xd0] sm:$0xf]
    %v4524 = vld [vmem:[#allocation19 + $0xd4] sm:$0xf]
    %v4525 = vld [vmem:[#allocation19 + $0xd8] sm:$0xf]
    %v4526 = vld [vmem:[#allocation19 + $0xdc] sm:$0xf]
    %v4527 = vld [vmem:[#allocation19 + $0xe0] sm:$0xf]
    %v4528 = vld [vmem:[#allocation19 + $0xe4] sm:$0xf]
    %v4529 = vld [vmem:[#allocation19 + $0xe8] sm:$0xf]
    %v4530 = vld [vmem:[#allocation19 + $0xec] sm:$0xf]
    %v4531 = vld [vmem:[#allocation19 + $0xf0] sm:$0xf]
    %v4532 = vld [vmem:[#allocation19 + $0xf4] sm:$0xf]
    %v4533 = vld [vmem:[#allocation19 + $0xf8] sm:$0xf]
    %v4534 = vld [vmem:[#allocation19 + $0xfc] sm:$0xf]
    %v4535 = vld [vmem:[#allocation21] sm:$0xf]
    %v4536 = vld [vmem:[#allocation21 + $0x4] sm:$0xf]
    %v4537 = vld [vmem:[#allocation21 + $0x8] sm:$0xf]
    %v4538 = vld [vmem:[#allocation21 + $0xc] sm:$0xf]
    %v4539 = vld [vmem:[#allocation21 + $0x10] sm:$0xf]
    %v4540 = vld [vmem:[#allocation21 + $0x14] sm:$0xf]
    %v4541 = vld [vmem:[#allocation21 + $0x18] sm:$0xf]
    %v4542 = vld [vmem:[#allocation21 + $0x1c] sm:$0xf]
    %v4543 = vld [vmem:[#allocation21 + $0x20] sm:$0xf]
    %v4544 = vld [vmem:[#allocation21 + $0x24] sm:$0xf]
    %v4545 = vld [vmem:[#allocation21 + $0x28] sm:$0xf]
    %v4546 = vld [vmem:[#allocation21 + $0x2c] sm:$0xf]
    %v4547 = vld [vmem:[#allocation21 + $0x30] sm:$0xf]
    %v4548 = vld [vmem:[#allocation21 + $0x34] sm:$0xf]
    %v4549 = vld [vmem:[#allocation21 + $0x38] sm:$0xf]
    %v4550 = vld [vmem:[#allocation21 + $0x3c] sm:$0xf]
    %v4551 = vld [vmem:[#allocation21 + $0x40] sm:$0xf]
    %v4552 = vld [vmem:[#allocation21 + $0x44] sm:$0xf]
    %v4553 = vld [vmem:[#allocation21 + $0x48] sm:$0xf]
    %v4554 = vld [vmem:[#allocation21 + $0x4c] sm:$0xf]
    %v4555 = vld [vmem:[#allocation21 + $0x50] sm:$0xf]
    %v4556 = vld [vmem:[#allocation21 + $0x54] sm:$0xf]
    %v4557 = vld [vmem:[#allocation21 + $0x58] sm:$0xf]
    %v4558 = vld [vmem:[#allocation21 + $0x5c] sm:$0xf]
    %v4559 = vld [vmem:[#allocation21 + $0x60] sm:$0xf]
    %v4560 = vld [vmem:[#allocation21 + $0x64] sm:$0xf]
    %v4561 = vld [vmem:[#allocation21 + $0x68] sm:$0xf]
    %v4562 = vld [vmem:[#allocation21 + $0x6c] sm:$0xf]
    %v4563 = vld [vmem:[#allocation21 + $0x70] sm:$0xf]
    %v4564 = vld [vmem:[#allocation21 + $0x74] sm:$0xf]
    %v4565 = vld [vmem:[#allocation21 + $0x78] sm:$0xf]
    %v4566 = vld [vmem:[#allocation21 + $0x7c] sm:$0xf]
    %v4567 = vld [vmem:[#allocation21 + $0x80] sm:$0xf]
    %v4568 = vld [vmem:[#allocation21 + $0x84] sm:$0xf]
    %v4569 = vld [vmem:[#allocation21 + $0x88] sm:$0xf]
    %v4570 = vld [vmem:[#allocation21 + $0x8c] sm:$0xf]
    %v4571 = vld [vmem:[#allocation21 + $0x90] sm:$0xf]
    %v4572 = vld [vmem:[#allocation21 + $0x94] sm:$0xf]
    %v4573 = vld [vmem:[#allocation21 + $0x98] sm:$0xf]
    %v4574 = vld [vmem:[#allocation21 + $0x9c] sm:$0xf]
    %v4575 = vld [vmem:[#allocation21 + $0xa0] sm:$0xf]
    %v4576 = vld [vmem:[#allocation21 + $0xa4] sm:$0xf]
    %v4577 = vld [vmem:[#allocation21 + $0xa8] sm:$0xf]
    %v4578 = vld [vmem:[#allocation21 + $0xac] sm:$0xf]
    %v4579 = vld [vmem:[#allocation21 + $0xb0] sm:$0xf]
    %v4580 = vld [vmem:[#allocation21 + $0xb4] sm:$0xf]
    %v4581 = vld [vmem:[#allocation21 + $0xb8] sm:$0xf]
    %v4582 = vld [vmem:[#allocation21 + $0xbc] sm:$0xf]
    %v4583 = vld [vmem:[#allocation21 + $0xc0] sm:$0xf]
    %v4584 = vld [vmem:[#allocation21 + $0xc4] sm:$0xf]
    %v4585 = vld [vmem:[#allocation21 + $0xc8] sm:$0xf]
    %v4586 = vld [vmem:[#allocation21 + $0xcc] sm:$0xf]
    %v4587 = vld [vmem:[#allocation21 + $0xd0] sm:$0xf]
    %v4588 = vld [vmem:[#allocation21 + $0xd4] sm:$0xf]
    %v4589 = vld [vmem:[#allocation21 + $0xd8] sm:$0xf]
    %v4590 = vld [vmem:[#allocation21 + $0xdc] sm:$0xf]
    %v4591 = vld [vmem:[#allocation21 + $0xe0] sm:$0xf]
    %v4592 = vld [vmem:[#allocation21 + $0xe4] sm:$0xf]
    %v4593 = vld [vmem:[#allocation21 + $0xe8] sm:$0xf]
    %v4594 = vld [vmem:[#allocation21 + $0xec] sm:$0xf]
    %v4595 = vld [vmem:[#allocation21 + $0xf0] sm:$0xf]
    %v4596 = vld [vmem:[#allocation21 + $0xf4] sm:$0xf]
    %v4597 = vld [vmem:[#allocation21 + $0xf8] sm:$0xf]
    %v4598 = vld [vmem:[#allocation21 + $0xfc] sm:$0xf]
    %v4615 = vrot.slane %v4447, 7
    %v4616 = vrot.slane %v4448, 7
    %v4617 = vrot.slane %v4449, 7
    %v4618 = vsel %vm4373, %v4615, %v4617
    %v4619 = vrot.slane %v4450, 7
    %v4620 = vsel %vm4373, %v4616, %v4619
    %v4621 = vrot.slane %v4453, 7
    %v4622 = vrot.slane %v4454, 7
    %v4623 = vrot.slane %v4455, 7
    %v4624 = vsel %vm4373, %v4621, %v4623
    %v4625 = vrot.slane %v4456, 7
    %v4626 = vsel %vm4373, %v4622, %v4625
    %v4627 = vrot.slane %v4459, 7
    %v4628 = vrot.slane %v4460, 7
    %v4629 = vrot.slane %v4461, 7
    %v4630 = vsel %vm4373, %v4627, %v4629
    %v4631 = vrot.slane %v4462, 7
    %v4632 = vsel %vm4373, %v4628, %v4631
    %v4633 = vrot.slane %v4465, 7
    %v4634 = vrot.slane %v4466, 7
    %v4635 = vrot.slane %v4467, 7
    %v4636 = vsel %vm4373, %v4633, %v4635
    %v4637 = vrot.slane %v4468, 7
    %v4638 = vsel %vm4373, %v4634, %v4637
    %v4647 = vrot.slane %v4447, 1
    %v4648 = vrot.slane %v4449, 1
    %v4649 = vsel %vm3050, %v4647, %v4648
    %v4650 = vrot.slane %v4448, 1
    %v4651 = vrot.slane %v4450, 1
    %v4652 = vsel %vm3050, %v4650, %v4651
    %v4653 = vrot.slane %v4615, 1
    %v4654 = vrot.slane %v4618, 1
    %v4655 = vsel %vm3050, %v4653, %v4654
    %v4656 = vrot.slane %v4616, 1
    %v4657 = vrot.slane %v4620, 1
    %v4658 = vsel %vm3050, %v4656, %v4657
    %v4659 = vrot.slane %v4451, 1
    %v4660 = vsel %vm3050, %v4648, %v4659
    %v4661 = vrot.slane %v4452, 1
    %v4662 = vsel %vm3050, %v4651, %v4661
    %v4663 = vrot.slane %v4617, 1
    %v4664 = vsel %vm3050, %v4654, %v4663
    %v4665 = vrot.slane %v4619, 1
    %v4666 = vsel %vm3050, %v4657, %v4665
    %v4667 = vrot.slane %v4453, 1
    %v4668 = vrot.slane %v4455, 1
    %v4669 = vsel %vm3050, %v4667, %v4668
    %v4670 = vrot.slane %v4454, 1
    %v4671 = vrot.slane %v4456, 1
    %v4672 = vsel %vm3050, %v4670, %v4671
    %v4673 = vrot.slane %v4621, 1
    %v4674 = vrot.slane %v4624, 1
    %v4675 = vsel %vm3050, %v4673, %v4674
    %v4676 = vrot.slane %v4622, 1
    %v4677 = vrot.slane %v4626, 1
    %v4678 = vsel %vm3050, %v4676, %v4677
    %v4679 = vrot.slane %v4457, 1
    %v4680 = vsel %vm3050, %v4668, %v4679
    %v4681 = vrot.slane %v4458, 1
    %v4682 = vsel %vm3050, %v4671, %v4681
    %v4683 = vrot.slane %v4623, 1
    %v4684 = vsel %vm3050, %v4674, %v4683
    %v4685 = vrot.slane %v4625, 1
    %v4686 = vsel %vm3050, %v4677, %v4685
    %v4687 = vrot.slane %v4459, 1
    %v4688 = vrot.slane %v4461, 1
    %v4689 = vsel %vm3050, %v4687, %v4688
    %v4690 = vrot.slane %v4460, 1
    %v4691 = vrot.slane %v4462, 1
    %v4692 = vsel %vm3050, %v4690, %v4691
    %v4693 = vrot.slane %v4627, 1
    %v4694 = vrot.slane %v4630, 1
    %v4695 = vsel %vm3050, %v4693, %v4694
    %v4696 = vrot.slane %v4628, 1
    %v4697 = vrot.slane %v4632, 1
    %v4698 = vsel %vm3050, %v4696, %v4697
    %v4699 = vrot.slane %v4463, 1
    %v4700 = vsel %vm3050, %v4688, %v4699
    %v4701 = vrot.slane %v4464, 1
    %v4702 = vsel %vm3050, %v4691, %v4701
    %v4703 = vrot.slane %v4629, 1
    %v4704 = vsel %vm3050, %v4694, %v4703
    %v4705 = vrot.slane %v4631, 1
    %v4706 = vsel %vm3050, %v4697, %v4705
    %v4707 = vrot.slane %v4465, 1
    %v4708 = vrot.slane %v4467, 1
    %v4709 = vsel %vm3050, %v4707, %v4708
    %v4710 = vrot.slane %v4466, 1
    %v4711 = vrot.slane %v4468, 1
    %v4712 = vsel %vm3050, %v4710, %v4711
    %v4713 = vrot.slane %v4633, 1
    %v4714 = vrot.slane %v4636, 1
    %v4715 = vsel %vm3050, %v4713, %v4714
    %v4716 = vrot.slane %v4634, 1
    %v4717 = vrot.slane %v4638, 1
    %v4718 = vsel %vm3050, %v4716, %v4717
    %v4719 = vrot.slane %v4469, 1
    %v4720 = vsel %vm3050, %v4708, %v4719
    %v4721 = vrot.slane %v4470, 1
    %v4722 = vsel %vm3050, %v4711, %v4721
    %v4723 = vrot.slane %v4635, 1
    %v4724 = vsel %vm3050, %v4714, %v4723
    %v4725 = vrot.slane %v4637, 1
    %v4726 = vsel %vm3050, %v4717, %v4725
    %v4759 = vpack.c.bf16 %v4660, %v4649
    %v4760 = vpack.c.bf16 %v4662, %v4652
    %v4761 = vpack.c.bf16 %v4664, %v4655
    %v4762 = vpack.c.bf16 %v4666, %v4658
    %v4763 = vpack.c.bf16 %v4680, %v4669
    %v4764 = vpack.c.bf16 %v4682, %v4672
    %v4765 = vpack.c.bf16 %v4684, %v4675
    %v4766 = vpack.c.bf16 %v4686, %v4678
    %v4767 = vpack.c.bf16 %v4700, %v4689
    %v4768 = vpack.c.bf16 %v4702, %v4692
    %v4769 = vpack.c.bf16 %v4704, %v4695
    %v4770 = vpack.c.bf16 %v4706, %v4698
    %v4771 = vpack.c.bf16 %v4720, %v4709
    %v4772 = vpack.c.bf16 %v4722, %v4712
    %v4773 = vpack.c.bf16 %v4724, %v4715
    %v4774 = vpack.c.bf16 %v4726, %v4718
    %v4776 = vlaneseq
    %v4777 = vshrl.u32 %v4776, 7
    %v4778 = vsub.s32 0, %v4777
    %v4779 = vrot.slane %v4446, %v4778
    %v4845 = vunpack.c.l.b16 %v4471
    %v4846 = vunpack.c.l.b16 %v4472
    %v4847 = vunpack.c.l.b16 %v4473
    %v4848 = vunpack.c.l.b16 %v4474
    %v4849 = vunpack.c.l.b16 %v4475
    %v4850 = vunpack.c.l.b16 %v4476
    %v4851 = vunpack.c.l.b16 %v4477
    %v4852 = vunpack.c.l.b16 %v4478
    %v4853 = vunpack.c.l.b16 %v4479
    %v4854 = vunpack.c.l.b16 %v4480
    %v4855 = vunpack.c.l.b16 %v4481
    %v4856 = vunpack.c.l.b16 %v4482
    %v4857 = vunpack.c.l.b16 %v4483
    %v4858 = vunpack.c.l.b16 %v4484
    %v4859 = vunpack.c.l.b16 %v4485
    %v4860 = vunpack.c.l.b16 %v4486
    %v4861 = vunpack.c.l.b16 %v4487
    %v4862 = vunpack.c.l.b16 %v4488
    %v4863 = vunpack.c.l.b16 %v4489
    %v4864 = vunpack.c.l.b16 %v4490
    %v4865 = vunpack.c.l.b16 %v4491
    %v4866 = vunpack.c.l.b16 %v4492
    %v4867 = vunpack.c.l.b16 %v4493
    %v4868 = vunpack.c.l.b16 %v4494
    %v4869 = vunpack.c.l.b16 %v4495
    %v4870 = vunpack.c.l.b16 %v4496
    %v4871 = vunpack.c.l.b16 %v4497
    %v4872 = vunpack.c.l.b16 %v4498
    %v4873 = vunpack.c.l.b16 %v4499
    %v4874 = vunpack.c.l.b16 %v4500
    %v4875 = vunpack.c.l.b16 %v4501
    %v4876 = vunpack.c.l.b16 %v4502
    %v4877 = vunpack.c.l.b16 %v4503
    %v4878 = vunpack.c.l.b16 %v4504
    %v4879 = vunpack.c.l.b16 %v4505
    %v4880 = vunpack.c.l.b16 %v4506
    %v4881 = vunpack.c.l.b16 %v4507
    %v4882 = vunpack.c.l.b16 %v4508
    %v4883 = vunpack.c.l.b16 %v4509
    %v4884 = vunpack.c.l.b16 %v4510
    %v4885 = vunpack.c.l.b16 %v4511
    %v4886 = vunpack.c.l.b16 %v4512
    %v4887 = vunpack.c.l.b16 %v4513
    %v4888 = vunpack.c.l.b16 %v4514
    %v4889 = vunpack.c.l.b16 %v4515
    %v4890 = vunpack.c.l.b16 %v4516
    %v4891 = vunpack.c.l.b16 %v4517
    %v4892 = vunpack.c.l.b16 %v4518
    %v4893 = vunpack.c.l.b16 %v4519
    %v4894 = vunpack.c.l.b16 %v4520
    %v4895 = vunpack.c.l.b16 %v4521
    %v4896 = vunpack.c.l.b16 %v4522
    %v4897 = vunpack.c.l.b16 %v4523
    %v4898 = vunpack.c.l.b16 %v4524
    %v4899 = vunpack.c.l.b16 %v4525
    %v4900 = vunpack.c.l.b16 %v4526
    %v4901 = vunpack.c.l.b16 %v4527
    %v4902 = vunpack.c.l.b16 %v4528
    %v4903 = vunpack.c.l.b16 %v4529
    %v4904 = vunpack.c.l.b16 %v4530
    %v4905 = vunpack.c.l.b16 %v4531
    %v4906 = vunpack.c.l.b16 %v4532
    %v4907 = vunpack.c.l.b16 %v4533
    %v4908 = vunpack.c.l.b16 %v4534
    %v4909 = vpack.c.b16 %v4846, %v4845
    %v4910 = vpack.c.b16 %v4848, %v4847
    %v4911 = vpack.c.b16 %v4850, %v4849
    %v4912 = vpack.c.b16 %v4852, %v4851
    %v4913 = vpack.c.b16 %v4854, %v4853
    %v4914 = vpack.c.b16 %v4856, %v4855
    %v4915 = vpack.c.b16 %v4858, %v4857
    %v4916 = vpack.c.b16 %v4860, %v4859
    %v4917 = vpack.c.b16 %v4862, %v4861
    %v4918 = vpack.c.b16 %v4864, %v4863
    %v4919 = vpack.c.b16 %v4866, %v4865
    %v4920 = vpack.c.b16 %v4868, %v4867
    %v4921 = vpack.c.b16 %v4870, %v4869
    %v4922 = vpack.c.b16 %v4872, %v4871
    %v4923 = vpack.c.b16 %v4874, %v4873
    %v4924 = vpack.c.b16 %v4876, %v4875
    %v4925 = vpack.c.b16 %v4878, %v4877
    %v4926 = vpack.c.b16 %v4880, %v4879
    %v4927 = vpack.c.b16 %v4882, %v4881
    %v4928 = vpack.c.b16 %v4884, %v4883
    %v4929 = vpack.c.b16 %v4886, %v4885
    %v4930 = vpack.c.b16 %v4888, %v4887
    %v4931 = vpack.c.b16 %v4890, %v4889
    %v4932 = vpack.c.b16 %v4892, %v4891
    %v4933 = vpack.c.b16 %v4894, %v4893
    %v4934 = vpack.c.b16 %v4896, %v4895
    %v4935 = vpack.c.b16 %v4898, %v4897
    %v4936 = vpack.c.b16 %v4900, %v4899
    %v4937 = vpack.c.b16 %v4902, %v4901
    %v4938 = vpack.c.b16 %v4904, %v4903
    %v4939 = vpack.c.b16 %v4906, %v4905
    %v4940 = vpack.c.b16 %v4908, %v4907
    %4973 = vmatprep.subr.bf16.mxu0 0
    %4974 = vmatpush1.bf16.msra.mxu0 %v4916
    %4975 = vmatprep.subr.bf16.mxu0 0
    %4976 = vmatpush1.bf16.msra.mxu0 %v4915
    %4977 = vmatprep.subr.bf16.mxu0 0
    %4978 = vmatpush1.bf16.msra.mxu0 %v4914
    %4979 = vmatprep.subr.bf16.mxu0 0
    %4980 = vmatpush1.bf16.msra.mxu0 %v4913
    %4981 = vmatprep.subr.bf16.mxu0 0
    %4982 = vmatpush1.bf16.msra.mxu0 %v4912
    %4983 = vmatprep.subr.bf16.mxu0 0
    %4984 = vmatpush1.bf16.msra.mxu0 %v4911
    %4985 = vmatprep.subr.bf16.mxu0 0
    %4986 = vmatpush1.bf16.msra.mxu0 %v4910
    %4987 = vmatprep.subr.bf16.mxu0 0
    %4988 = vmatpush1.bf16.msra.mxu0 %v4909
    %4989 = vmatprep.subr.bf16.mxu0 0
    %4990 = vmatpush2.bf16.msra.mxu0 %v4924
    %4991 = vmatprep.subr.bf16.mxu0 0
    %4992 = vmatpush2.bf16.msra.mxu0 %v4923
    %4993 = vmatprep.subr.bf16.mxu0 0
    %4994 = vmatpush2.bf16.msra.mxu0 %v4922
    %4995 = vmatprep.subr.bf16.mxu0 0
    %4996 = vmatpush2.bf16.msra.mxu0 %v4921
    %4997 = vmatprep.subr.bf16.mxu0 0
    %4998 = vmatpush2.bf16.msra.mxu0 %v4920
    %4999 = vmatprep.subr.bf16.mxu0 0
    %5000 = vmatpush2.bf16.msra.mxu0 %v4919
    %5001 = vmatprep.subr.bf16.mxu0 0
    %5002 = vmatpush2.bf16.msra.mxu0 %v4918
    %5003 = vmatprep.subr.bf16.mxu0 0
    %5004 = vmatpush2.bf16.msra.mxu0 %v4917
    %5005 = vmatprep.mubr.bf16.mxu0 %v4760
    %5006 = vmatmul.mubr.bf16.gmra.mxu0 %v4759
    %v5007 = vpop.f32.mrf.mxu0
    %v5008 = vadd.f32 %v4779, %v5007
    %v5009 = vpop.f32.mrf.mxu0
    %v5010 = vpop.f32.mrf.mxu0
    %v5011 = vadd.f32 %v4779, %v5010
    %v5012 = vpop.f32.mrf.mxu0
    %5013 = vmatprep.mubr.bf16.mxu0 %v4764
    %5014 = vmatmul.mubr.bf16.gmra.mxu0 %v4763
    %v5015 = vpop.f32.mrf.mxu0
    %v5016 = vadd.f32 %v4779, %v5015
    %v5017 = vpop.f32.mrf.mxu0
    %v5018 = vpop.f32.mrf.mxu0
    %v5019 = vadd.f32 %v4779, %v5018
    %v5020 = vpop.f32.mrf.mxu0
    %5021 = vmatprep.mubr.bf16.mxu0 %v4768
    %5022 = vmatmul.mubr.bf16.gmra.mxu0 %v4767
    %v5023 = vpop.f32.mrf.mxu0
    %v5024 = vadd.f32 %v4779, %v5023
    %v5025 = vpop.f32.mrf.mxu0
    %v5026 = vpop.f32.mrf.mxu0
    %v5027 = vadd.f32 %v4779, %v5026
    %v5028 = vpop.f32.mrf.mxu0
    %5029 = vmatprep.mubr.bf16.mxu0 %v4772
    %5030 = vmatmul.mubr.bf16.gmra.mxu0 %v4771
    %v5031 = vpop.f32.mrf.mxu0
    %v5032 = vadd.f32 %v4779, %v5031
    %v5033 = vpop.f32.mrf.mxu0
    %v5034 = vpop.f32.mrf.mxu0
    %v5035 = vadd.f32 %v4779, %v5034
    %v5036 = vpop.f32.mrf.mxu0
    %5037 = vdwg.mxu0
    %5038 = vmatprep.subr.bf16.mxu0 0
    %5039 = vmatpush1.bf16.msra.mxu0 %v4932
    %5040 = vmatprep.subr.bf16.mxu0 0
    %5041 = vmatpush1.bf16.msra.mxu0 %v4931
    %5042 = vmatprep.subr.bf16.mxu0 0
    %5043 = vmatpush1.bf16.msra.mxu0 %v4930
    %5044 = vmatprep.subr.bf16.mxu0 0
    %5045 = vmatpush1.bf16.msra.mxu0 %v4929
    %5046 = vmatprep.subr.bf16.mxu0 0
    %5047 = vmatpush1.bf16.msra.mxu0 %v4928
    %5048 = vmatprep.subr.bf16.mxu0 0
    %5049 = vmatpush1.bf16.msra.mxu0 %v4927
    %5050 = vmatprep.subr.bf16.mxu0 0
    %5051 = vmatpush1.bf16.msra.mxu0 %v4926
    %5052 = vmatprep.subr.bf16.mxu0 0
    %5053 = vmatpush1.bf16.msra.mxu0 %v4925
    %5054 = vmatprep.subr.bf16.mxu0 0
    %5055 = vmatpush2.bf16.msra.mxu0 %v4940
    %5056 = vmatprep.subr.bf16.mxu0 0
    %5057 = vmatpush2.bf16.msra.mxu0 %v4939
    %5058 = vmatprep.subr.bf16.mxu0 0
    %5059 = vmatpush2.bf16.msra.mxu0 %v4938
    %5060 = vmatprep.subr.bf16.mxu0 0
    %5061 = vmatpush2.bf16.msra.mxu0 %v4937
    %5062 = vmatprep.subr.bf16.mxu0 0
    %5063 = vmatpush2.bf16.msra.mxu0 %v4936
    %5064 = vmatprep.subr.bf16.mxu0 0
    %5065 = vmatpush2.bf16.msra.mxu0 %v4935
    %5066 = vmatprep.subr.bf16.mxu0 0
    %5067 = vmatpush2.bf16.msra.mxu0 %v4934
    %5068 = vmatprep.subr.bf16.mxu0 0
    %5069 = vmatpush2.bf16.msra.mxu0 %v4933
    %5070 = vmatprep.mubr.bf16.mxu0 %v4762
    %5071 = vmatmul.mubr.bf16.gmra.mxu0 %v4761
    %v5072 = vpop.f32.mrf.mxu0
    %v5073 = vadd.f32 %v5008, %v5072
    %v5074 = vpop.f32.mrf.mxu0
    %v5075 = vpop.f32.mrf.mxu0
    %v5076 = vadd.f32 %v5011, %v5075
    %v5077 = vpop.f32.mrf.mxu0
    %5078 = vmatprep.mubr.bf16.mxu0 %v4766
    %5079 = vmatmul.mubr.bf16.gmra.mxu0 %v4765
    %v5080 = vpop.f32.mrf.mxu0
    %v5081 = vadd.f32 %v5016, %v5080
    %v5082 = vpop.f32.mrf.mxu0
    %v5083 = vpop.f32.mrf.mxu0
    %v5084 = vadd.f32 %v5019, %v5083
    %v5085 = vpop.f32.mrf.mxu0
    %5086 = vmatprep.mubr.bf16.mxu0 %v4770
    %5087 = vmatmul.mubr.bf16.gmra.mxu0 %v4769
    %v5088 = vpop.f32.mrf.mxu0
    %v5089 = vadd.f32 %v5024, %v5088
    %v5090 = vpop.f32.mrf.mxu0
    %v5091 = vpop.f32.mrf.mxu0
    %v5092 = vadd.f32 %v5027, %v5091
    %v5093 = vpop.f32.mrf.mxu0
    %5094 = vmatprep.mubr.bf16.mxu0 %v4774
    %5095 = vmatmul.mubr.bf16.gmra.mxu0 %v4773
    %v5096 = vpop.f32.mrf.mxu0
    %v5097 = vadd.f32 %v5032, %v5096
    %v5098 = vpop.f32.mrf.mxu0
    %v5099 = vpop.f32.mrf.mxu0
    %v5100 = vadd.f32 %v5035, %v5099
    %v5101 = vpop.f32.mrf.mxu0
    %5102 = vdwg.mxu0
    %v5103 = vrot.slane %v4649, 1
    %v5104 = vrot.slane %v4660, 1
    %v5105 = vsel %vm3050, %v5103, %v5104
    %v5106 = vrot.slane %v4652, 1
    %v5107 = vrot.slane %v4662, 1
    %v5108 = vsel %vm3050, %v5106, %v5107
    %v5109 = vrot.slane %v4659, 1
    %v5110 = vsel %vm3050, %v5104, %v5109
    %v5111 = vrot.slane %v4661, 1
    %v5112 = vsel %vm3050, %v5107, %v5111
    %v5113 = vrot.slane %v4669, 1
    %v5114 = vrot.slane %v4680, 1
    %v5115 = vsel %vm3050, %v5113, %v5114
    %v5116 = vrot.slane %v4672, 1
    %v5117 = vrot.slane %v4682, 1
    %v5118 = vsel %vm3050, %v5116, %v5117
    %v5119 = vrot.slane %v4679, 1
    %v5120 = vsel %vm3050, %v5114, %v5119
    %v5121 = vrot.slane %v4681, 1
    %v5122 = vsel %vm3050, %v5117, %v5121
    %v5123 = vrot.slane %v4689, 1
    %v5124 = vrot.slane %v4700, 1
    %v5125 = vsel %vm3050, %v5123, %v5124
    %v5126 = vrot.slane %v4692, 1
    %v5127 = vrot.slane %v4702, 1
    %v5128 = vsel %vm3050, %v5126, %v5127
    %v5129 = vrot.slane %v4699, 1
    %v5130 = vsel %vm3050, %v5124, %v5129
    %v5131 = vrot.slane %v4701, 1
    %v5132 = vsel %vm3050, %v5127, %v5131
    %v5133 = vrot.slane %v4709, 1
    %v5134 = vrot.slane %v4720, 1
    %v5135 = vsel %vm3050, %v5133, %v5134
    %v5136 = vrot.slane %v4712, 1
    %v5137 = vrot.slane %v4722, 1
    %v5138 = vsel %vm3050, %v5136, %v5137
    %v5139 = vrot.slane %v4719, 1
    %v5140 = vsel %vm3050, %v5134, %v5139
    %v5141 = vrot.slane %v4721, 1
    %v5142 = vsel %vm3050, %v5137, %v5141
    %v5159 = vpack.c.bf16 %v5110, %v5105
    %v5160 = vpack.c.bf16 %v5112, %v5108
    %v5161 = vpack.c.bf16 %v5120, %v5115
    %v5162 = vpack.c.bf16 %v5122, %v5118
    %v5163 = vpack.c.bf16 %v5130, %v5125
    %v5164 = vpack.c.bf16 %v5132, %v5128
    %v5165 = vpack.c.bf16 %v5140, %v5135
    %v5166 = vpack.c.bf16 %v5142, %v5138
    %v5231 = vunpack.c.l.b16 %v4535
    %v5232 = vunpack.c.l.b16 %v4536
    %v5233 = vunpack.c.l.b16 %v4537
    %v5234 = vunpack.c.l.b16 %v4538
    %v5235 = vunpack.c.l.b16 %v4539
    %v5236 = vunpack.c.l.b16 %v4540
    %v5237 = vunpack.c.l.b16 %v4541
    %v5238 = vunpack.c.l.b16 %v4542
    %v5239 = vunpack.c.l.b16 %v4543
    %v5240 = vunpack.c.l.b16 %v4544
    %v5241 = vunpack.c.l.b16 %v4545
    %v5242 = vunpack.c.l.b16 %v4546
    %v5243 = vunpack.c.l.b16 %v4547
    %v5244 = vunpack.c.l.b16 %v4548
    %v5245 = vunpack.c.l.b16 %v4549
    %v5246 = vunpack.c.l.b16 %v4550
    %v5247 = vunpack.c.l.b16 %v4551
    %v5248 = vunpack.c.l.b16 %v4552
    %v5249 = vunpack.c.l.b16 %v4553
    %v5250 = vunpack.c.l.b16 %v4554
    %v5251 = vunpack.c.l.b16 %v4555
    %v5252 = vunpack.c.l.b16 %v4556
    %v5253 = vunpack.c.l.b16 %v4557
    %v5254 = vunpack.c.l.b16 %v4558
    %v5255 = vunpack.c.l.b16 %v4559
    %v5256 = vunpack.c.l.b16 %v4560
    %v5257 = vunpack.c.l.b16 %v4561
    %v5258 = vunpack.c.l.b16 %v4562
    %v5259 = vunpack.c.l.b16 %v4563
    %v5260 = vunpack.c.l.b16 %v4564
    %v5261 = vunpack.c.l.b16 %v4565
    %v5262 = vunpack.c.l.b16 %v4566
    %v5263 = vunpack.c.l.b16 %v4567
    %v5264 = vunpack.c.l.b16 %v4568
    %v5265 = vunpack.c.l.b16 %v4569
    %v5266 = vunpack.c.l.b16 %v4570
    %v5267 = vunpack.c.l.b16 %v4571
    %v5268 = vunpack.c.l.b16 %v4572
    %v5269 = vunpack.c.l.b16 %v4573
    %v5270 = vunpack.c.l.b16 %v4574
    %v5271 = vunpack.c.l.b16 %v4575
    %v5272 = vunpack.c.l.b16 %v4576
    %v5273 = vunpack.c.l.b16 %v4577
    %v5274 = vunpack.c.l.b16 %v4578
    %v5275 = vunpack.c.l.b16 %v4579
    %v5276 = vunpack.c.l.b16 %v4580
    %v5277 = vunpack.c.l.b16 %v4581
    %v5278 = vunpack.c.l.b16 %v4582
    %v5279 = vunpack.c.l.b16 %v4583
    %v5280 = vunpack.c.l.b16 %v4584
    %v5281 = vunpack.c.l.b16 %v4585
    %v5282 = vunpack.c.l.b16 %v4586
    %v5283 = vunpack.c.l.b16 %v4587
    %v5284 = vunpack.c.l.b16 %v4588
    %v5285 = vunpack.c.l.b16 %v4589
    %v5286 = vunpack.c.l.b16 %v4590
    %v5287 = vunpack.c.l.b16 %v4591
    %v5288 = vunpack.c.l.b16 %v4592
    %v5289 = vunpack.c.l.b16 %v4593
    %v5290 = vunpack.c.l.b16 %v4594
    %v5291 = vunpack.c.l.b16 %v4595
    %v5292 = vunpack.c.l.b16 %v4596
    %v5293 = vunpack.c.l.b16 %v4597
    %v5294 = vunpack.c.l.b16 %v4598
    %v5295 = vpack.c.b16 %v5232, %v5231
    %v5296 = vpack.c.b16 %v5234, %v5233
    %v5297 = vpack.c.b16 %v5236, %v5235
    %v5298 = vpack.c.b16 %v5238, %v5237
    %v5299 = vpack.c.b16 %v5240, %v5239
    %v5300 = vpack.c.b16 %v5242, %v5241
    %v5301 = vpack.c.b16 %v5244, %v5243
    %v5302 = vpack.c.b16 %v5246, %v5245
    %v5303 = vpack.c.b16 %v5248, %v5247
    %v5304 = vpack.c.b16 %v5250, %v5249
    %v5305 = vpack.c.b16 %v5252, %v5251
    %v5306 = vpack.c.b16 %v5254, %v5253
    %v5307 = vpack.c.b16 %v5256, %v5255
    %v5308 = vpack.c.b16 %v5258, %v5257
    %v5309 = vpack.c.b16 %v5260, %v5259
    %v5310 = vpack.c.b16 %v5262, %v5261
    %v5311 = vpack.c.b16 %v5264, %v5263
    %v5312 = vpack.c.b16 %v5266, %v5265
    %v5313 = vpack.c.b16 %v5268, %v5267
    %v5314 = vpack.c.b16 %v5270, %v5269
    %v5315 = vpack.c.b16 %v5272, %v5271
    %v5316 = vpack.c.b16 %v5274, %v5273
    %v5317 = vpack.c.b16 %v5276, %v5275
    %v5318 = vpack.c.b16 %v5278, %v5277
    %v5319 = vpack.c.b16 %v5280, %v5279
    %v5320 = vpack.c.b16 %v5282, %v5281
    %v5321 = vpack.c.b16 %v5284, %v5283
    %v5322 = vpack.c.b16 %v5286, %v5285
    %v5323 = vpack.c.b16 %v5288, %v5287
    %v5324 = vpack.c.b16 %v5290, %v5289
    %v5325 = vpack.c.b16 %v5292, %v5291
    %v5326 = vpack.c.b16 %v5294, %v5293
    %5359 = vmatprep.subr.bf16.mxu0 0
    %5360 = vmatpush1.bf16.msra.mxu0 %v5302
    %5361 = vmatprep.subr.bf16.mxu0 0
    %5362 = vmatpush1.bf16.msra.mxu0 %v5301
    %5363 = vmatprep.subr.bf16.mxu0 0
    %5364 = vmatpush1.bf16.msra.mxu0 %v5300
    %5365 = vmatprep.subr.bf16.mxu0 0
    %5366 = vmatpush1.bf16.msra.mxu0 %v5299
    %5367 = vmatprep.subr.bf16.mxu0 0
    %5368 = vmatpush1.bf16.msra.mxu0 %v5298
    %5369 = vmatprep.subr.bf16.mxu0 0
    %5370 = vmatpush1.bf16.msra.mxu0 %v5297
    %5371 = vmatprep.subr.bf16.mxu0 0
    %5372 = vmatpush1.bf16.msra.mxu0 %v5296
    %5373 = vmatprep.subr.bf16.mxu0 0
    %5374 = vmatpush1.bf16.msra.mxu0 %v5295
    %5375 = vmatprep.subr.bf16.mxu0 0
    %5376 = vmatpush2.bf16.msra.mxu0 %v5310
    %5377 = vmatprep.subr.bf16.mxu0 0
    %5378 = vmatpush2.bf16.msra.mxu0 %v5309
    %5379 = vmatprep.subr.bf16.mxu0 0
    %5380 = vmatpush2.bf16.msra.mxu0 %v5308
    %5381 = vmatprep.subr.bf16.mxu0 0
    %5382 = vmatpush2.bf16.msra.mxu0 %v5307
    %5383 = vmatprep.subr.bf16.mxu0 0
    %5384 = vmatpush2.bf16.msra.mxu0 %v5306
    %5385 = vmatprep.subr.bf16.mxu0 0
    %5386 = vmatpush2.bf16.msra.mxu0 %v5305
    %5387 = vmatprep.subr.bf16.mxu0 0
    %5388 = vmatpush2.bf16.msra.mxu0 %v5304
    %5389 = vmatprep.subr.bf16.mxu0 0
    %5390 = vmatpush2.bf16.msra.mxu0 %v5303
    %5391 = vmatprep.mubr.bf16.mxu0 %v4760
    %5392 = vmatmul.mubr.bf16.gmra.mxu0 %v4759
    %v5393 = vpop.f32.mrf.mxu0
    %v5394 = vadd.f32 %v4779, %v5393
    %v5395 = vpop.f32.mrf.mxu0
    %v5396 = vpop.f32.mrf.mxu0
    %v5397 = vadd.f32 %v4779, %v5396
    %v5398 = vpop.f32.mrf.mxu0
    %5399 = vmatprep.mubr.bf16.mxu0 %v4764
    %5400 = vmatmul.mubr.bf16.gmra.mxu0 %v4763
    %v5401 = vpop.f32.mrf.mxu0
    %v5402 = vadd.f32 %v4779, %v5401
    %v5403 = vpop.f32.mrf.mxu0
    %v5404 = vpop.f32.mrf.mxu0
    %v5405 = vadd.f32 %v4779, %v5404
    %v5406 = vpop.f32.mrf.mxu0
    %5407 = vmatprep.mubr.bf16.mxu0 %v4768
    %5408 = vmatmul.mubr.bf16.gmra.mxu0 %v4767
    %v5409 = vpop.f32.mrf.mxu0
    %v5410 = vadd.f32 %v4779, %v5409
    %v5411 = vpop.f32.mrf.mxu0
    %v5412 = vpop.f32.mrf.mxu0
    %v5413 = vadd.f32 %v4779, %v5412
    %v5414 = vpop.f32.mrf.mxu0
    %5415 = vmatprep.mubr.bf16.mxu0 %v4772
    %5416 = vmatmul.mubr.bf16.gmra.mxu0 %v4771
    %v5417 = vpop.f32.mrf.mxu0
    %v5418 = vadd.f32 %v4779, %v5417
    %v5419 = vpop.f32.mrf.mxu0
    %v5420 = vpop.f32.mrf.mxu0
    %v5421 = vadd.f32 %v4779, %v5420
    %v5422 = vpop.f32.mrf.mxu0
    %5423 = vdwg.mxu0
    %5424 = vmatprep.subr.bf16.mxu0 0
    %5425 = vmatpush1.bf16.msra.mxu0 %v5318
    %5426 = vmatprep.subr.bf16.mxu0 0
    %5427 = vmatpush1.bf16.msra.mxu0 %v5317
    %5428 = vmatprep.subr.bf16.mxu0 0
    %5429 = vmatpush1.bf16.msra.mxu0 %v5316
    %5430 = vmatprep.subr.bf16.mxu0 0
    %5431 = vmatpush1.bf16.msra.mxu0 %v5315
    %5432 = vmatprep.subr.bf16.mxu0 0
    %5433 = vmatpush1.bf16.msra.mxu0 %v5314
    %5434 = vmatprep.subr.bf16.mxu0 0
    %5435 = vmatpush1.bf16.msra.mxu0 %v5313
    %5436 = vmatprep.subr.bf16.mxu0 0
    %5437 = vmatpush1.bf16.msra.mxu0 %v5312
    %5438 = vmatprep.subr.bf16.mxu0 0
    %5439 = vmatpush1.bf16.msra.mxu0 %v5311
    %5440 = vmatprep.subr.bf16.mxu0 0
    %5441 = vmatpush2.bf16.msra.mxu0 %v5326
    %5442 = vmatprep.subr.bf16.mxu0 0
    %5443 = vmatpush2.bf16.msra.mxu0 %v5325
    %5444 = vmatprep.subr.bf16.mxu0 0
    %5445 = vmatpush2.bf16.msra.mxu0 %v5324
    %5446 = vmatprep.subr.bf16.mxu0 0
    %5447 = vmatpush2.bf16.msra.mxu0 %v5323
    %5448 = vmatprep.subr.bf16.mxu0 0
    %5449 = vmatpush2.bf16.msra.mxu0 %v5322
    %5450 = vmatprep.subr.bf16.mxu0 0
    %5451 = vmatpush2.bf16.msra.mxu0 %v5321
    %5452 = vmatprep.subr.bf16.mxu0 0
    %5453 = vmatpush2.bf16.msra.mxu0 %v5320
    %5454 = vmatprep.subr.bf16.mxu0 0
    %5455 = vmatpush2.bf16.msra.mxu0 %v5319
    %5456 = vmatprep.mubr.bf16.mxu0 %v5160
    %5457 = vmatmul.mubr.bf16.gmra.mxu0 %v5159
    %v5458 = vpop.f32.mrf.mxu0
    %v5459 = vadd.f32 %v5394, %v5458
    %v5460 = vpop.f32.mrf.mxu0
    %v5461 = vpop.f32.mrf.mxu0
    %v5462 = vadd.f32 %v5397, %v5461
    %v5463 = vpop.f32.mrf.mxu0
    %5464 = vmatprep.mubr.bf16.mxu0 %v5162
    %5465 = vmatmul.mubr.bf16.gmra.mxu0 %v5161
    %v5466 = vpop.f32.mrf.mxu0
    %v5467 = vadd.f32 %v5402, %v5466
    %v5468 = vpop.f32.mrf.mxu0
    %v5469 = vpop.f32.mrf.mxu0
    %v5470 = vadd.f32 %v5405, %v5469
    %v5471 = vpop.f32.mrf.mxu0
    %5472 = vmatprep.mubr.bf16.mxu0 %v5164
    %5473 = vmatmul.mubr.bf16.gmra.mxu0 %v5163
    %v5474 = vpop.f32.mrf.mxu0
    %v5475 = vadd.f32 %v5410, %v5474
    %v5476 = vpop.f32.mrf.mxu0
    %v5477 = vpop.f32.mrf.mxu0
    %v5478 = vadd.f32 %v5413, %v5477
    %v5479 = vpop.f32.mrf.mxu0
    %5480 = vmatprep.mubr.bf16.mxu0 %v5166
    %5481 = vmatmul.mubr.bf16.gmra.mxu0 %v5165
    %v5482 = vpop.f32.mrf.mxu0
    %v5483 = vadd.f32 %v5418, %v5482
    %v5484 = vpop.f32.mrf.mxu0
    %v5485 = vpop.f32.mrf.mxu0
    %v5486 = vadd.f32 %v5421, %v5485
    %v5487 = vpop.f32.mrf.mxu0
    %5488 = vdwg.mxu0
    %v5505 = vcombine.low %v5073, %v5459
    %v5506 = vcombine.high %v5073, %v5459
    %v5507 = vcombine.low %v5076, %v5462
    %v5508 = vcombine.high %v5076, %v5462
    %v5509 = vcombine.low %v5081, %v5467
    %v5510 = vcombine.high %v5081, %v5467
    %v5511 = vcombine.low %v5084, %v5470
    %v5512 = vcombine.high %v5084, %v5470
    %v5513 = vcombine.low %v5089, %v5475
    %v5514 = vcombine.high %v5089, %v5475
    %v5515 = vcombine.low %v5092, %v5478
    %v5516 = vcombine.high %v5092, %v5478
    %v5517 = vcombine.low %v5097, %v5483
    %v5518 = vcombine.high %v5097, %v5483
    %v5519 = vcombine.low %v5100, %v5486
    %v5520 = vcombine.high %v5100, %v5486
    %v5538 = vunpack.c.l.s4 1935823168
    %v5539 = vunpack.c.0.s8 %v5538
    %v5540 = vlaneseq
    %v5541 = vshrl.u32 %v5540, 7
    %v5542 = vsub.s32 %v5539, %v5541
    %v5543 = vrot.slane %v5505, %v5542
    %v5545 = vunpack.c.l.s4 1935823168
    %v5546 = vunpack.c.0.s8 %v5545
    %v5547 = vlaneseq
    %v5548 = vshrl.u32 %v5547, 7
    %v5549 = vsub.s32 %v5546, %v5548
    %v5550 = vrot.slane %v5506, %v5549
    %v5552 = vunpack.c.l.s4 1935823168
    %v5553 = vunpack.c.0.s8 %v5552
    %v5554 = vlaneseq
    %v5555 = vshrl.u32 %v5554, 7
    %v5556 = vsub.s32 %v5553, %v5555
    %v5557 = vrot.slane %v5507, %v5556
    %v5559 = vunpack.c.l.s4 1935823168
    %v5560 = vunpack.c.0.s8 %v5559
    %v5561 = vlaneseq
    %v5562 = vshrl.u32 %v5561, 7
    %v5563 = vsub.s32 %v5560, %v5562
    %v5564 = vrot.slane %v5508, %v5563
    %v5566 = vunpack.c.l.s4 1935823168
    %v5567 = vunpack.c.0.s8 %v5566
    %v5568 = vlaneseq
    %v5569 = vshrl.u32 %v5568, 7
    %v5570 = vsub.s32 %v5567, %v5569
    %v5571 = vrot.slane %v5509, %v5570
    %v5573 = vunpack.c.l.s4 1935823168
    %v5574 = vunpack.c.0.s8 %v5573
    %v5575 = vlaneseq
    %v5576 = vshrl.u32 %v5575, 7
    %v5577 = vsub.s32 %v5574, %v5576
    %v5578 = vrot.slane %v5510, %v5577
    %v5580 = vunpack.c.l.s4 1935823168
    %v5581 = vunpack.c.0.s8 %v5580
    %v5582 = vlaneseq
    %v5583 = vshrl.u32 %v5582, 7
    %v5584 = vsub.s32 %v5581, %v5583
    %v5585 = vrot.slane %v5511, %v5584
    %v5587 = vunpack.c.l.s4 1935823168
    %v5588 = vunpack.c.0.s8 %v5587
    %v5589 = vlaneseq
    %v5590 = vshrl.u32 %v5589, 7
    %v5591 = vsub.s32 %v5588, %v5590
    %v5592 = vrot.slane %v5512, %v5591
    %v5594 = vunpack.c.l.s4 1935823168
    %v5595 = vunpack.c.0.s8 %v5594
    %v5596 = vlaneseq
    %v5597 = vshrl.u32 %v5596, 7
    %v5598 = vsub.s32 %v5595, %v5597
    %v5599 = vrot.slane %v5513, %v5598
    %v5601 = vunpack.c.l.s4 1935823168
    %v5602 = vunpack.c.0.s8 %v5601
    %v5603 = vlaneseq
    %v5604 = vshrl.u32 %v5603, 7
    %v5605 = vsub.s32 %v5602, %v5604
    %v5606 = vrot.slane %v5514, %v5605
    %v5608 = vunpack.c.l.s4 1935823168
    %v5609 = vunpack.c.0.s8 %v5608
    %v5610 = vlaneseq
    %v5611 = vshrl.u32 %v5610, 7
    %v5612 = vsub.s32 %v5609, %v5611
    %v5613 = vrot.slane %v5515, %v5612
    %v5615 = vunpack.c.l.s4 1935823168
    %v5616 = vunpack.c.0.s8 %v5615
    %v5617 = vlaneseq
    %v5618 = vshrl.u32 %v5617, 7
    %v5619 = vsub.s32 %v5616, %v5618
    %v5620 = vrot.slane %v5516, %v5619
    %v5622 = vunpack.c.l.s4 1935823168
    %v5623 = vunpack.c.0.s8 %v5622
    %v5624 = vlaneseq
    %v5625 = vshrl.u32 %v5624, 7
    %v5626 = vsub.s32 %v5623, %v5625
    %v5627 = vrot.slane %v5517, %v5626
    %v5629 = vunpack.c.l.s4 1935823168
    %v5630 = vunpack.c.0.s8 %v5629
    %v5631 = vlaneseq
    %v5632 = vshrl.u32 %v5631, 7
    %v5633 = vsub.s32 %v5630, %v5632
    %v5634 = vrot.slane %v5518, %v5633
    %v5636 = vunpack.c.l.s4 1935823168
    %v5637 = vunpack.c.0.s8 %v5636
    %v5638 = vlaneseq
    %v5639 = vshrl.u32 %v5638, 7
    %v5640 = vsub.s32 %v5637, %v5639
    %v5641 = vrot.slane %v5519, %v5640
    %v5643 = vunpack.c.l.s4 1935823168
    %v5644 = vunpack.c.0.s8 %v5643
    %v5645 = vlaneseq
    %v5646 = vshrl.u32 %v5645, 7
    %v5647 = vsub.s32 %v5644, %v5646
    %v5648 = vrot.slane %v5520, %v5647
    %5649 = vst [vmem:[%s22] sm:$0xff] %v5543
    %5650 = vst [vmem:[%s22 + $0x8] sm:$0xff] %v5550
    %5651 = vst [vmem:[%s22 + $0x10] sm:$0xff] %v5557
    %5652 = vst [vmem:[%s22 + $0x18] sm:$0xff] %v5564
    %5653 = vst [vmem:[%s22 + $0x20] sm:$0xff] %v5571
    %5654 = vst [vmem:[%s22 + $0x28] sm:$0xff] %v5578
    %5655 = vst [vmem:[%s22 + $0x30] sm:$0xff] %v5585
    %5656 = vst [vmem:[%s22 + $0x38] sm:$0xff] %v5592
    %5657 = vst [vmem:[%s22 + $0x40] sm:$0xff] %v5599
    %5658 = vst [vmem:[%s22 + $0x48] sm:$0xff] %v5606
    %5659 = vst [vmem:[%s22 + $0x50] sm:$0xff] %v5613
    %5660 = vst [vmem:[%s22 + $0x58] sm:$0xff] %v5620
    %5661 = vst [vmem:[%s22 + $0x60] sm:$0xff] %v5627
    %5662 = vst [vmem:[%s22 + $0x68] sm:$0xff] %v5634
    %5663 = vst [vmem:[%s22 + $0x70] sm:$0xff] %v5641
    %5664 = vst [vmem:[%s22 + $0x78] sm:$0xff] %v5648
    // Predicated region
    $region134: #{_lambda_.1} parent=1 // pred_check
      _
    $region135: #{_lambda_.1} parent=1 // pred_check_branch
      %5666 = sbr.rel (0) target = $region137
    $region136: #{_lambda_.1} parent=1 // pred_region
      _
    $region137: #{_lambda_.1} parent=1 // pred_fallthru
      _
    // Predicated region
    $region138: #{_lambda_.1} parent=1 // pred_check
      _
    $region139: #{_lambda_.1} parent=1 // pred_check_branch
      %5668 = sbr.rel (0) target = $region141
    $region140: #{_lambda_.1} parent=1 // pred_region
      _
    $region141: #{_lambda_.1} parent=1 // pred_fallthru
      _
    %5669 = vsyncpa [#allocation6], 1
    %5670 = vsyncpa [#allocation8], 1
    %5671 = vsyncpa [#allocation11], 1
    %5672 = vsyncpa [#allocation14], 1
    %5673 = vsyncpa [#allocation17], 1
    %5674 = vsyncpa [#allocation20], 1

</llo_original>
